<compile_context>
chip_gen: v5e
topology: v5e:2x2
jax: 0.10.0
libtpu: 0.0.40
codegen_flags: <defaults>
</compile_context>

<pallas_src>
import functools

import jax
import jax.numpy as jnp
from jax.experimental import pallas as pl
from jax.experimental.pallas import tpu as pltpu


# ------------------------------ small helpers -------------------------------


def _round_up(v, m):
    return ((v + m - 1) // m) * m


def _row_tile(m, cap=256):
    """Largest multiple-of-8 divisor of m that is <= min(cap, m//2).

    Favours >=2 row tiles so dimension_semantics=('parallel', ...) can use both
    TensorCores on v7x; falls back to a single full-extent tile.
    """
    if m <= 8:
        return m
    t = (min(cap, m // 2) // 8) * 8
    while t >= 8:
        if m % t == 0:
            return t
        t -= 8
    return m


def _col_tile(n, cap=512):
    if n <= 128:
        return n
    t = (min(cap, n) // 128) * 128
    while t >= 128:
        if n % t == 0:
            return t
        t -= 128
    return n


# ----------------------------- generic matmul -------------------------------


def _mm_kernel(a_ref, b_ref, bias_ref, o_ref, *, act):
    y = jnp.dot(a_ref[...], b_ref[...], preferred_element_type=jnp.float32)
    y = y + bias_ref[...]
    if act == "relu":
        y = jnp.maximum(y, 0.0)
    o_ref[...] = y.astype(o_ref.dtype)


def matmul_bias_act(a, b, bias, act="none", out_dtype=jnp.bfloat16):
    """o = act(a @ b + bias); a:(M,K) bf16, b:(K,N) bf16 (pre-cast), bias:(1,N) f32."""
    M, K = a.shape
    K2, N = b.shape
    assert K == K2, (a.shape, b.shape)
    tm = _row_tile(M)
    tn = _col_tile(N)
    return pl.pallas_call(
        functools.partial(_mm_kernel, act=act),
        out_shape=jax.ShapeDtypeStruct((M, N), out_dtype),
        grid=(M // tm, N // tn),
        in_specs=[
            pl.BlockSpec((tm, K), lambda i, j: (i, 0)),
            pl.BlockSpec((K, tn), lambda i, j: (0, j)),
            pl.BlockSpec((1, tn), lambda i, j: (0, j)),
        ],
        out_specs=pl.BlockSpec((tm, tn), lambda i, j: (i, j)),
        compiler_params=pltpu.CompilerParams(
            dimension_semantics=("parallel", "parallel")),
    )(a, b, bias)


# ----------------------- fused transformer block kernel ---------------------


def _block_kernel(tok_ref, ln1g_ref, ln1b_ref, qkvw_ref, qkvb_ref,
                  pw_ref, pb_ref, ln2g_ref, ln2b_ref,
                  fc1w_ref, fc1b_ref, fc2w_ref, fc2b_ref, o_ref,
                  *, num_heads, scale, eps, s_valid):
    x = tok_ref[0].astype(jnp.float32)                 # (S, D)
    S, D = x.shape
    Dh = D // num_heads

    def _ln(z, g, b):
        mu = jnp.mean(z, axis=-1, keepdims=True)
        var = jnp.mean((z - mu) ** 2, axis=-1, keepdims=True)
        return (z - mu) * jax.lax.rsqrt(var + eps) * g + b

    # ---- pre-LN + QKV projection (one MXU matmul for all heads) ----
    xn = _ln(x, ln1g_ref[...], ln1b_ref[...])
    qkv = jnp.dot(xn.astype(jnp.bfloat16), qkvw_ref[...],
                  preferred_element_type=jnp.float32) + qkvb_ref[...]
    q = qkv[:, :D].astype(jnp.bfloat16)                # 128-lane aligned slices
    k = qkv[:, D:2 * D].astype(jnp.bfloat16)
    v = qkv[:, 2 * D:].astype(jnp.bfloat16)

    # key-padding mask (sequence is padded to a sublane multiple), hoisted.
    kmask = jax.lax.broadcasted_iota(jnp.int32, (S, S), 1) < s_valid

    # ---- MHSA; each head's PV result is folded directly through the
    #      out-projection slice pw_ref[h], so no lane-axis concat and only a
    #      single (S, D) f32 accumulator stays live. ----
    attn = jnp.zeros((S, D), jnp.float32)
    for h in range(num_heads):                         # small static head count
        sl = slice(h * Dh, (h + 1) * Dh)
        s = jax.lax.dot_general(q[:, sl], k[:, sl], (((1,), (1,)), ((), ())),
                                preferred_element_type=jnp.float32) * scale
        s = jnp.where(kmask, s, -1e30)
        s = s - jnp.max(s, axis=-1, keepdims=True)
        p = jnp.exp(s)
        # approx reciprocal (EUP) for the softmax denominator; fine for inference.
        p = p * pl.reciprocal(jnp.sum(p, axis=-1, keepdims=True), approx=True)
        pv = jnp.dot(p.astype(jnp.bfloat16), v[:, sl],
                     preferred_element_type=jnp.float32)
        attn = attn + jnp.dot(pv.astype(jnp.bfloat16), pw_ref[h],
                              preferred_element_type=jnp.float32)

    x = x + attn + pb_ref[...]                          # residual 1 (+ proj bias)

    # ---- pre-LN + MLP ----
    xn2 = _ln(x, ln2g_ref[...], ln2b_ref[...])
    hmid = jnp.dot(xn2.astype(jnp.bfloat16), fc1w_ref[...],
                   preferred_element_type=jnp.float32) + fc1b_ref[...]
    # TODO(synk): timm ViT uses exact (erf) GELU; tanh approximation used here.
    hmid = jax.nn.gelu(hmid, approximate=True)
    x = x + jnp.dot(hmid.astype(jnp.bfloat16), fc2w_ref[...],
                    preferred_element_type=jnp.float32) + fc2b_ref[...]

    o_ref[0] = x.astype(o_ref.dtype)                    # residual 2, bf16 out


def transformer_block(tokens, blk, *, num_heads, s_valid, eps=1e-6):
    """tokens: (B, S_pad, D) bf16 -> (B, S_pad, D) bf16; one pallas_call per block."""
    B, S, D = tokens.shape
    Dh = D // num_heads
    mlp = blk["fc1_w"].shape[1]
    scale = Dh ** -0.5

    def wspec(shape):
        return pl.BlockSpec(shape, lambda b: (0,) * len(shape))

    return pl.pallas_call(
        functools.partial(_block_kernel, num_heads=num_heads, scale=scale,
                          eps=eps, s_valid=s_valid),
        out_shape=jax.ShapeDtypeStruct((B, S, D), jnp.bfloat16),
        grid=(B,),
        in_specs=[
            pl.BlockSpec((1, S, D), lambda b: (b, 0, 0)),
            wspec((1, D)), wspec((1, D)),                    # ln1
            wspec((D, 3 * D)), wspec((1, 3 * D)),            # qkv
            wspec((num_heads, Dh, D)), wspec((1, D)),        # out-proj (per-head)
            wspec((1, D)), wspec((1, D)),                    # ln2
            wspec((D, mlp)), wspec((1, mlp)),                # fc1
            wspec((mlp, D)), wspec((1, D)),                  # fc2
        ],
        out_specs=pl.BlockSpec((1, S, D), lambda b: (b, 0, 0)),
        compiler_params=pltpu.CompilerParams(
            dimension_semantics=("parallel",)),
    )(tokens, blk["ln1_g"], blk["ln1_b"], blk["qkv_w"], blk["qkv_b"],
      blk["proj_w"], blk["proj_b"], blk["ln2_g"], blk["ln2_b"],
      blk["fc1_w"], blk["fc1_b"], blk["fc2_w"], blk["fc2_b"])


# --------------------------- final LN + head kernel --------------------------


def _ln_head_kernel(x_ref, g_ref, b_ref, w_ref, bias_ref, o_ref, *, eps):
    x = x_ref[...].astype(jnp.float32)
    mu = jnp.mean(x, axis=-1, keepdims=True)
    var = jnp.mean((x - mu) ** 2, axis=-1, keepdims=True)
    xn = (x - mu) * jax.lax.rsqrt(var + eps) * g_ref[...] + b_ref[...]
    o_ref[...] = jnp.dot(xn.astype(jnp.bfloat16), w_ref[...],
                         preferred_element_type=jnp.float32) + bias_ref[...]


def ln_head(x, gamma, beta, w, bias, eps=1e-6):
    M, D = x.shape
    _, N = w.shape
    return pl.pallas_call(
        functools.partial(_ln_head_kernel, eps=eps),
        out_shape=jax.ShapeDtypeStruct((M, N), jnp.float32),
        grid=(1,),
        in_specs=[
            pl.BlockSpec((M, D), lambda i: (0, 0)),
            pl.BlockSpec((1, D), lambda i: (0, 0)),
            pl.BlockSpec((1, D), lambda i: (0, 0)),
            pl.BlockSpec((D, N), lambda i: (0, 0)),
            pl.BlockSpec((1, N), lambda i: (0, 0)),
        ],
        out_specs=pl.BlockSpec((M, N), lambda i: (0, 0)),
    )(x, gamma, beta, w, bias)


# ------------------------------- conv glue ----------------------------------


def _im2col_nhwc(x, kh, kw, stride, pad):
    """x: (B, H, W, C) -> cols: (B*oh*ow, kh*kw*C), channel-last tap order."""
    # TODO(synk): host-side im2col; an implicit-im2col Pallas conv (kh*kw shifted
    #             matmul accumulation) would avoid the expanded HBM tensor at scale.
    xp = jnp.pad(x, ((0, 0), (pad, pad), (pad, pad), (0, 0)))
    B, Hp, Wp, C = xp.shape
    oh = (Hp - kh) // stride + 1
    ow = (Wp - kw) // stride + 1
    cols = []
    for i in range(kh):
        for j in range(kw):
            cols.append(xp[:, i:i + stride * oh:stride, j:j + stride * ow:stride, :])
    col = jnp.concatenate(cols, axis=-1)          # (B, oh, ow, kh*kw*C)
    return col.reshape(B * oh * ow, kh * kw * C), oh, ow


def conv2d(x, w2, b, kh, kw, *, stride, pad, act="none"):
    """x: (B,H,W,Cin) bf16 NHWC; w2: (kh*kw*Cin, Cout) bf16 (pre-built at init)."""
    B = x.shape[0]
    cols, oh, ow = _im2col_nhwc(x, kh, kw, stride, pad)
    y = matmul_bias_act(cols, w2, b, act=act)     # (B*oh*ow, Cout) bf16
    return y.reshape(B, oh, ow, w2.shape[1]), oh, ow


# ------------------------------ model / params ------------------------------


def _normal(key, shape, std=0.02):
    return jax.random.normal(key, shape, dtype=jnp.float32) * std


def init_params(key, cfg):
    """Weights are stored pre-transposed / pre-cast (bf16) once, never per forward."""
    D = cfg["embed_dim"]
    H = cfg["num_heads"]
    Dh = D // H
    mlp = cfg["mlp_hidden"]
    c_stem, c_back = cfg["c_stem"], cfg["c_back"]
    n_tokens = cfg["num_patches"] + 1

    keys = iter(jax.random.split(key, 64))

    def conv_w2(k, cout, cin, kh, kw):
        w = _normal(k, (cout, cin, kh, kw))
        return w.transpose(2, 3, 1, 0).reshape(kh * kw * cin, cout).astype(jnp.bfloat16)

    params = {
        "stem_w": conv_w2(next(keys), c_stem, 3, 3, 3),
        "stem_b": jnp.zeros((1, c_stem), jnp.float32),
        "back_w": conv_w2(next(keys), c_back, c_stem, 3, 3),
        "back_b": jnp.zeros((1, c_back), jnp.float32),
        "proj_w": _normal(next(keys), (c_back, D)).astype(jnp.bfloat16),  # 1x1 conv
        "proj_b": jnp.zeros((1, D), jnp.float32),
        "cls": _normal(next(keys), (1, 1, D)),
        "pos": _normal(next(keys), (1, n_tokens, D)),
        "lnf_g": jnp.ones((1, D), jnp.float32),
        "lnf_b": jnp.zeros((1, D), jnp.float32),
        "head_w": _normal(next(keys), (D, cfg["out_dim"])).astype(jnp.bfloat16),
        "head_b": jnp.zeros((1, cfg["out_dim"]), jnp.float32),
        "blocks": [],
    }
    for _ in range(cfg["depth"]):
        params["blocks"].append({
            "ln1_g": jnp.ones((1, D), jnp.float32),
            "ln1_b": jnp.zeros((1, D), jnp.float32),
            "qkv_w": _normal(next(keys), (D, 3 * D)).astype(jnp.bfloat16),
            "qkv_b": jnp.zeros((1, 3 * D), jnp.float32),
            # out-projection stored per-head (H, Dh, D) so the fused kernel folds
            # each head's PV result through it without a lane-axis concatenate.
            "proj_w": _normal(next(keys), (D, D)).reshape(H, Dh, D).astype(jnp.bfloat16),
            "proj_b": jnp.zeros((1, D), jnp.float32),
            "ln2_g": jnp.ones((1, D), jnp.float32),
            "ln2_b": jnp.zeros((1, D), jnp.float32),
            "fc1_w": _normal(next(keys), (D, mlp)).astype(jnp.bfloat16),
            "fc1_b": jnp.zeros((1, mlp), jnp.float32),
            "fc2_w": _normal(next(keys), (mlp, D)).astype(jnp.bfloat16),
            "fc2_b": jnp.zeros((1, D), jnp.float32),
        })
    return params


def forward(params, x, *, cfg):
    """Hybrid ViT forward. x: (B, 3, H, W) NCHW float32 -> logits (B, out_dim)."""
    B = x.shape[0]
    D, H = cfg["embed_dim"], cfg["num_heads"]

    # single NCHW -> NHWC transpose + bf16 cast; everything downstream is bf16 NHWC
    x = x.transpose(0, 2, 3, 1).astype(jnp.bfloat16)

    # --- hybrid CNN backbone (stand-in for the ResNet-50-s32 feature extractor) ---
    # TODO(synk): full ResNet-50 backbone (bottleneck blocks, BatchNorm, maxpool)
    #             reduced to a deterministic 2-conv+ReLU stem at small scale.
    h, oh, ow = conv2d(x, params["stem_w"], params["stem_b"], 3, 3,
                       stride=2, pad=1, act="relu")
    h, oh, ow = conv2d(h, params["back_w"], params["back_b"], 3, 3,
                       stride=2, pad=1, act="relu")

    # --- patch embedding: 1x1 conv projection == per-pixel linear ---
    C = h.shape[-1]
    tokens = matmul_bias_act(h.reshape(B * oh * ow, C),
                             params["proj_w"], params["proj_b"])
    tokens = tokens.reshape(B, oh * ow, D)

    # --- cls token + positional embedding; pad sequence ONCE to a sublane multiple ---
    cls = jnp.broadcast_to(params["cls"], (B, 1, D)).astype(jnp.float32)
    tokens = jnp.concatenate([cls, tokens.astype(jnp.float32)], axis=1) + params["pos"]
    S = tokens.shape[1]
    Sp = _round_up(S, 8)
    tokens = jnp.pad(tokens, ((0, 0), (0, Sp - S), (0, 0))).astype(jnp.bfloat16)

    # --- transformer encoder: one fused pallas_call per block ---
    for blk in params["blocks"]:
        tokens = transformer_block(tokens, blk, num_heads=H, s_valid=S)

    # --- final LayerNorm + classification head on the cls token ---
    logits = ln_head(tokens[:, 0], params["lnf_g"], params["lnf_b"],
                     params["head_w"], params["head_b"])
    return logits


# ----------------------------------- main ------------------------------------

if __name__ == "__main__":
    # Small-scale config mirroring vit_large_r50_s32_384 structure:
    # CNN backbone -> 1x1-conv patch embed -> cls+pos -> transformer blocks -> head.
    # embed_dim chosen lane-dense (128) so activations map cleanly to vregs.
    IMG = 32
    cfg = dict(
        embed_dim=128,      # (1024 in ViT-Large)
        num_heads=4,        # (16)
        depth=2,            # (24)
        mlp_hidden=512,     # 4x embed_dim (4096 in ViT-Large)
        c_stem=16,
        c_back=32,
        out_dim=3,          # num_classes=3, as in the module
        num_patches=(IMG // 4) * (IMG // 4),  # backbone reduction = 4 here
    )

    key = jax.random.PRNGKey(0)
    pkey, xkey = jax.random.split(key)
    params = init_params(pkey, cfg)

    # NCHW input, like the PyTorch module (3-channel image).
    x = jax.random.normal(xkey, (2, 3, IMG, IMG), dtype=jnp.float32)

    fwd = jax.jit(functools.partial(forward, cfg=cfg))
    out = fwd(params, x)
    out = jax.block_until_ready(out)

    assert out.shape == (2, cfg["out_dim"]), out.shape
    assert bool(jnp.all(jnp.isfinite(out)))
    print("KERNEL_OK")
</pallas_src>

<mosaic_0001>
module attributes {stable_mosaic.version = 11 : i64} {
  func.func @_mm_kernel(%arg0: i32, %arg1: i32, %arg2: memref<256x27xbf16, #tpu.memory_space<vmem>>, %arg3: memref<27x16xbf16, #tpu.memory_space<vmem>>, %arg4: memref<1x16xf32, #tpu.memory_space<vmem>>, %arg5: memref<256x16xbf16, #tpu.memory_space<vmem>>) attributes {dimension_semantics = [#tpu.dimension_semantics<parallel>, #tpu.dimension_semantics<parallel>], iteration_bounds = array<i64: 2, 1>, scalar_prefetch = 0 : i64, scratch_operands = 0 : i64, tpu.core_type = #tpu.core_type<tc>, window_params = [{transform_indices = @transform_0, window_bounds = array<i64: 256, 27>}, {transform_indices = @transform_1, window_bounds = array<i64: 27, 16>}, {transform_indices = @transform_2, window_bounds = array<i64: 1, 16>}, {transform_indices = @transform_3, window_bounds = array<i64: 256, 16>}]} {
    %c0 = arith.constant 0 : index
    %c0_0 = arith.constant 0 : index
    %0 = vector.load %arg2[%c0, %c0_0] : memref<256x27xbf16, #tpu.memory_space<vmem>>, vector<256x27xbf16>
    %c0_1 = arith.constant 0 : index
    %c0_2 = arith.constant 0 : index
    %1 = vector.load %arg3[%c0_1, %c0_2] : memref<27x16xbf16, #tpu.memory_space<vmem>>, vector<27x16xbf16>
    %cst = arith.constant dense<0.000000e+00> : vector<256x16xf32>
    %2 = tpu.matmul %0, %1, %cst {dimension_numbers = #tpu.dot_dimension_numbers<[1], [0], [0], [1], [0, 0, 1, 1], [], []>} : vector<256x27xbf16>, vector<27x16xbf16>, vector<256x16xf32> -> vector<256x16xf32>
    %c0_3 = arith.constant 0 : index
    %c0_4 = arith.constant 0 : index
    %3 = vector.load %arg4[%c0_3, %c0_4] : memref<1x16xf32, #tpu.memory_space<vmem>>, vector<1x16xf32>
    %4 = vector.broadcast %3 : vector<1x16xf32> to vector<256x16xf32>
    %5 = arith.addf %2, %4 : vector<256x16xf32>
    %cst_5 = arith.constant 0.000000e+00 : f32
    %6 = vector.broadcast %cst_5 : f32 to vector<256x16xf32>
    %7 = arith.maximumf %5, %6 : vector<256x16xf32>
    %8 = arith.truncf %7 : vector<256x16xf32> to vector<256x16xbf16>
    %c0_6 = arith.constant 0 : index
    %c0_7 = arith.constant 0 : index
    %9 = vector.load %arg5[%c0_6, %c0_7] : memref<256x16xbf16, #tpu.memory_space<vmem>>, vector<256x16xbf16>
    tpu.vector_store %arg5[%c0_6, %c0_7], %8 {strides = array<i32>} : memref<256x16xbf16, #tpu.memory_space<vmem>>, vector<256x16xbf16>,
    return
  }
  func.func @transform_0(%arg0: i32, %arg1: i32) -> (i32, i32) {
    %c0_i32 = arith.constant 0 : i32
    %c0_i32_0 = arith.constant 0 : i32
    return %arg0, %c0_i32 : i32, i32
  }
  func.func @transform_1(%arg0: i32, %arg1: i32) -> (i32, i32) {
    %c0_i32 = arith.constant 0 : i32
    %c0_i32_0 = arith.constant 0 : i32
    return %c0_i32, %arg1 : i32, i32
  }
  func.func @transform_2(%arg0: i32, %arg1: i32) -> (i32, i32) {
    %c0_i32 = arith.constant 0 : i32
    %c0_i32_0 = arith.constant 0 : i32
    return %c0_i32, %arg1 : i32, i32
  }
  func.func @transform_3(%arg0: i32, %arg1: i32) -> (i32, i32) {
    %c0_i32 = arith.constant 0 : i32
    return %arg0, %arg1 : i32, i32
  }
}

module attributes {stable_mosaic.version = 11 : i64} {
  func.func @_mm_kernel(%arg0: i32, %arg1: i32, %arg2: memref<64x144xbf16, #tpu.memory_space<vmem>>, %arg3: memref<144x32xbf16, #tpu.memory_space<vmem>>, %arg4: memref<1x32xf32, #tpu.memory_space<vmem>>, %arg5: memref<64x32xbf16, #tpu.memory_space<vmem>>) attributes {dimension_semantics = [#tpu.dimension_semantics<parallel>, #tpu.dimension_semantics<parallel>], iteration_bounds = array<i64: 2, 1>, scalar_prefetch = 0 : i64, scratch_operands = 0 : i64, tpu.core_type = #tpu.core_type<tc>, window_params = [{transform_indices = @transform_0, window_bounds = array<i64: 64, 144>}, {transform_indices = @transform_1, window_bounds = array<i64: 144, 32>}, {transform_indices = @transform_2, window_bounds = array<i64: 1, 32>}, {transform_indices = @transform_3, window_bounds = array<i64: 64, 32>}]} {
    %c0 = arith.constant 0 : index
    %c0_0 = arith.constant 0 : index
    %0 = vector.load %arg2[%c0, %c0_0] : memref<64x144xbf16, #tpu.memory_space<vmem>>, vector<64x144xbf16>
    %c0_1 = arith.constant 0 : index
    %c0_2 = arith.constant 0 : index
    %1 = vector.load %arg3[%c0_1, %c0_2] : memref<144x32xbf16, #tpu.memory_space<vmem>>, vector<144x32xbf16>
    %cst = arith.constant dense<0.000000e+00> : vector<64x32xf32>
    %2 = tpu.matmul %0, %1, %cst {dimension_numbers = #tpu.dot_dimension_numbers<[1], [0], [0], [1], [0, 0, 1, 1], [], []>} : vector<64x144xbf16>, vector<144x32xbf16>, vector<64x32xf32> -> vector<64x32xf32>
    %c0_3 = arith.constant 0 : index
    %c0_4 = arith.constant 0 : index
    %3 = vector.load %arg4[%c0_3, %c0_4] : memref<1x32xf32, #tpu.memory_space<vmem>>, vector<1x32xf32>
    %4 = vector.broadcast %3 : vector<1x32xf32> to vector<64x32xf32>
    %5 = arith.addf %2, %4 : vector<64x32xf32>
    %cst_5 = arith.constant 0.000000e+00 : f32
    %6 = vector.broadcast %cst_5 : f32 to vector<64x32xf32>
    %7 = arith.maximumf %5, %6 : vector<64x32xf32>
    %8 = arith.truncf %7 : vector<64x32xf32> to vector<64x32xbf16>
    %c0_6 = arith.constant 0 : index
    %c0_7 = arith.constant 0 : index
    %9 = vector.load %arg5[%c0_6, %c0_7] : memref<64x32xbf16, #tpu.memory_space<vmem>>, vector<64x32xbf16>
    tpu.vector_store %arg5[%c0_6, %c0_7], %8 {strides = array<i32>} : memref<64x32xbf16, #tpu.memory_space<vmem>>, vector<64x32xbf16>,
    return
  }
  func.func @transform_0(%arg0: i32, %arg1: i32) -> (i32, i32) {
    %c0_i32 = arith.constant 0 : i32
    %c0_i32_0 = arith.constant 0 : i32
    return %arg0, %c0_i32 : i32, i32
  }
  func.func @transform_1(%arg0: i32, %arg1: i32) -> (i32, i32) {
    %c0_i32 = arith.constant 0 : i32
    %c0_i32_0 = arith.constant 0 : i32
    return %c0_i32, %arg1 : i32, i32
  }
  func.func @transform_2(%arg0: i32, %arg1: i32) -> (i32, i32) {
    %c0_i32 = arith.constant 0 : i32
    %c0_i32_0 = arith.constant 0 : i32
    return %c0_i32, %arg1 : i32, i32
  }
  func.func @transform_3(%arg0: i32, %arg1: i32) -> (i32, i32) {
    %c0_i32 = arith.constant 0 : i32
    return %arg0, %arg1 : i32, i32
  }
}

module attributes {stable_mosaic.version = 11 : i64} {
  func.func @_mm_kernel(%arg0: i32, %arg1: i32, %arg2: memref<64x32xbf16, #tpu.memory_space<vmem>>, %arg3: memref<32x128xbf16, #tpu.memory_space<vmem>>, %arg4: memref<1x128xf32, #tpu.memory_space<vmem>>, %arg5: memref<64x128xbf16, #tpu.memory_space<vmem>>) attributes {dimension_semantics = [#tpu.dimension_semantics<parallel>, #tpu.dimension_semantics<parallel>], iteration_bounds = array<i64: 2, 1>, scalar_prefetch = 0 : i64, scratch_operands = 0 : i64, tpu.core_type = #tpu.core_type<tc>, window_params = [{transform_indices = @transform_0, window_bounds = array<i64: 64, 32>}, {transform_indices = @transform_1, window_bounds = array<i64: 32, 128>}, {transform_indices = @transform_2, window_bounds = array<i64: 1, 128>}, {transform_indices = @transform_3, window_bounds = array<i64: 64, 128>}]} {
    %c0 = arith.constant 0 : index
    %c0_0 = arith.constant 0 : index
    %0 = vector.load %arg2[%c0, %c0_0] : memref<64x32xbf16, #tpu.memory_space<vmem>>, vector<64x32xbf16>
    %c0_1 = arith.constant 0 : index
    %c0_2 = arith.constant 0 : index
    %1 = vector.load %arg3[%c0_1, %c0_2] : memref<32x128xbf16, #tpu.memory_space<vmem>>, vector<32x128xbf16>
    %cst = arith.constant dense<0.000000e+00> : vector<64x128xf32>
    %2 = tpu.matmul %0, %1, %cst {dimension_numbers = #tpu.dot_dimension_numbers<[1], [0], [0], [1], [0, 0, 1, 1], [], []>} : vector<64x32xbf16>, vector<32x128xbf16>, vector<64x128xf32> -> vector<64x128xf32>
    %c0_3 = arith.constant 0 : index
    %c0_4 = arith.constant 0 : index
    %3 = vector.load %arg4[%c0_3, %c0_4] : memref<1x128xf32, #tpu.memory_space<vmem>>, vector<1x128xf32>
    %4 = vector.broadcast %3 : vector<1x128xf32> to vector<64x128xf32>
    %5 = arith.addf %2, %4 : vector<64x128xf32>
    %6 = arith.truncf %5 : vector<64x128xf32> to vector<64x128xbf16>
    %c0_5 = arith.constant 0 : index
    %c0_6 = arith.constant 0 : index
    %7 = vector.load %arg5[%c0_5, %c0_6] : memref<64x128xbf16, #tpu.memory_space<vmem>>, vector<64x128xbf16>
    tpu.vector_store %arg5[%c0_5, %c0_6], %6 {strides = array<i32>} : memref<64x128xbf16, #tpu.memory_space<vmem>>, vector<64x128xbf16>,
    return
  }
  func.func @transform_0(%arg0: i32, %arg1: i32) -> (i32, i32) {
    %c0_i32 = arith.constant 0 : i32
    %c0_i32_0 = arith.constant 0 : i32
    return %arg0, %c0_i32 : i32, i32
  }
  func.func @transform_1(%arg0: i32, %arg1: i32) -> (i32, i32) {
    %c0_i32 = arith.constant 0 : i32
    %c0_i32_0 = arith.constant 0 : i32
    return %c0_i32, %arg1 : i32, i32
  }
  func.func @transform_2(%arg0: i32, %arg1: i32) -> (i32, i32) {
    %c0_i32 = arith.constant 0 : i32
    %c0_i32_0 = arith.constant 0 : i32
    return %c0_i32, %arg1 : i32, i32
  }
  func.func @transform_3(%arg0: i32, %arg1: i32) -> (i32, i32) {
    %c0_i32 = arith.constant 0 : i32
    return %arg0, %arg1 : i32, i32
  }
}

module attributes {stable_mosaic.version = 11 : i64} {
  func.func @_ln_head_kernel(%arg0: i32, %arg1: memref<2x128xbf16, #tpu.memory_space<vmem>>, %arg2: memref<1x128xf32, #tpu.memory_space<vmem>>, %arg3: memref<1x128xf32, #tpu.memory_space<vmem>>, %arg4: memref<128x3xbf16, #tpu.memory_space<vmem>>, %arg5: memref<1x3xf32, #tpu.memory_space<vmem>>, %arg6: memref<2x3xf32, #tpu.memory_space<vmem>>) attributes {dimension_semantics = [#tpu.dimension_semantics<arbitrary>], iteration_bounds = array<i64: 1>, scalar_prefetch = 0 : i64, scratch_operands = 0 : i64, tpu.core_type = #tpu.core_type<tc>, window_params = [{pipeline_mode = #tpu.pipeline_mode<synchronous>, transform_indices = @transform_0, window_bounds = array<i64: 2, 128>}, {pipeline_mode = #tpu.pipeline_mode<synchronous>, transform_indices = @transform_1, window_bounds = array<i64: 1, 128>}, {pipeline_mode = #tpu.pipeline_mode<synchronous>, transform_indices = @transform_2, window_bounds = array<i64: 1, 128>}, {pipeline_mode = #tpu.pipeline_mode<synchronous>, transform_indices = @transform_3, window_bounds = array<i64: 128, 3>}, {pipeline_mode = #tpu.pipeline_mode<synchronous>, transform_indices = @transform_4, window_bounds = array<i64: 1, 3>}, {pipeline_mode = #tpu.pipeline_mode<synchronous>, transform_indices = @transform_5, window_bounds = array<i64: 2, 3>}]} {
    %c0 = arith.constant 0 : index
    %c0_0 = arith.constant 0 : index
    %0 = vector.load %arg1[%c0, %c0_0] : memref<2x128xbf16, #tpu.memory_space<vmem>>, vector<2x128xbf16>
    %1 = arith.extf %0 : vector<2x128xbf16> to vector<2x128xf32>
    %cst = arith.constant dense<0.000000e+00> : vector<2xf32>
    %2 = vector.multi_reduction <add>, %1, %cst [1] : vector<2x128xf32> to vector<2xf32>
    %3 = vector.shape_cast %2 : vector<2xf32> to vector<2x1xf32>
    %cst_1 = arith.constant 1.280000e+02 : f32
    %4 = vector.broadcast %cst_1 : f32 to vector<2x1xf32>
    %5 = arith.divf %3, %4 : vector<2x1xf32>
    %6 = vector.broadcast %5 : vector<2x1xf32> to vector<2x128xf32>
    %7 = arith.subf %1, %6 : vector<2x128xf32>
    %8 = arith.mulf %7, %7 : vector<2x128xf32>
    %cst_2 = arith.constant dense<0.000000e+00> : vector<2xf32>
    %9 = vector.multi_reduction <add>, %8, %cst_2 [1] : vector<2x128xf32> to vector<2xf32>
    %10 = vector.shape_cast %9 : vector<2xf32> to vector<2x1xf32>
    %cst_3 = arith.constant 1.280000e+02 : f32
    %11 = vector.broadcast %cst_3 : f32 to vector<2x1xf32>
    %12 = arith.divf %10, %11 : vector<2x1xf32>
    %13 = vector.broadcast %5 : vector<2x1xf32> to vector<2x128xf32>
    %14 = arith.subf %1, %13 : vector<2x128xf32>
    %cst_4 = arith.constant 9.99999997E-7 : f32
    %15 = vector.broadcast %cst_4 : f32 to vector<2x1xf32>
    %16 = arith.addf %12, %15 : vector<2x1xf32>
    %17 = math.rsqrt %16 : vector<2x1xf32>
    %18 = vector.broadcast %17 : vector<2x1xf32> to vector<2x128xf32>
    %19 = arith.mulf %14, %18 : vector<2x128xf32>
    %c0_5 = arith.constant 0 : index
    %c0_6 = arith.constant 0 : index
    %20 = vector.load %arg2[%c0_5, %c0_6] : memref<1x128xf32, #tpu.memory_space<vmem>>, vector<1x128xf32>
    %21 = vector.broadcast %20 : vector<1x128xf32> to vector<2x128xf32>
    %22 = arith.mulf %19, %21 : vector<2x128xf32>
    %c0_7 = arith.constant 0 : index
    %c0_8 = arith.constant 0 : index
    %23 = vector.load %arg3[%c0_7, %c0_8] : memref<1x128xf32, #tpu.memory_space<vmem>>, vector<1x128xf32>
    %24 = vector.broadcast %23 : vector<1x128xf32> to vector<2x128xf32>
    %25 = arith.addf %22, %24 : vector<2x128xf32>
    %26 = arith.truncf %25 : vector<2x128xf32> to vector<2x128xbf16>
    %c0_9 = arith.constant 0 : index
    %c0_10 = arith.constant 0 : index
    %27 = vector.load %arg4[%c0_9, %c0_10] : memref<128x3xbf16, #tpu.memory_space<vmem>>, vector<128x3xbf16>
    %cst_11 = arith.constant dense<0.000000e+00> : vector<2x3xf32>
    %28 = tpu.matmul %26, %27, %cst_11 {dimension_numbers = #tpu.dot_dimension_numbers<[1], [0], [0], [1], [0, 0, 1, 1], [], []>} : vector<2x128xbf16>, vector<128x3xbf16>, vector<2x3xf32> -> vector<2x3xf32>
    %c0_12 = arith.constant 0 : index
    %c0_13 = arith.constant 0 : index
    %29 = vector.load %arg5[%c0_12, %c0_13] : memref<1x3xf32, #tpu.memory_space<vmem>>, vector<1x3xf32>
    %30 = vector.broadcast %29 : vector<1x3xf32> to vector<2x3xf32>
    %31 = arith.addf %28, %30 : vector<2x3xf32>
    %c0_14 = arith.constant 0 : index
    %c0_15 = arith.constant 0 : index
    %32 = vector.load %arg6[%c0_14, %c0_15] : memref<2x3xf32, #tpu.memory_space<vmem>>, vector<2x3xf32>
    tpu.vector_store %arg6[%c0_14, %c0_15], %31 {strides = array<i32>} : memref<2x3xf32, #tpu.memory_space<vmem>>, vector<2x3xf32>,
    return
  }
  func.func @transform_0(%arg0: i32) -> (i32, i32) {
    %c0_i32 = arith.constant 0 : i32
    %c0_i32_0 = arith.constant 0 : i32
    %c0_i32_1 = arith.constant 0 : i32
    return %c0_i32, %c0_i32_0 : i32, i32
  }
  func.func @transform_1(%arg0: i32) -> (i32, i32) {
    %c0_i32 = arith.constant 0 : i32
    %c0_i32_0 = arith.constant 0 : i32
    %c0_i32_1 = arith.constant 0 : i32
    return %c0_i32, %c0_i32_0 : i32, i32
  }
  func.func @transform_2(%arg0: i32) -> (i32, i32) {
    %c0_i32 = arith.constant 0 : i32
    %c0_i32_0 = arith.constant 0 : i32
    %c0_i32_1 = arith.constant 0 : i32
    return %c0_i32, %c0_i32_0 : i32, i32
  }
  func.func @transform_3(%arg0: i32) -> (i32, i32) {
    %c0_i32 = arith.constant 0 : i32
    %c0_i32_0 = arith.constant 0 : i32
    %c0_i32_1 = arith.constant 0 : i32
    return %c0_i32, %c0_i32_0 : i32, i32
  }
  func.func @transform_4(%arg0: i32) -> (i32, i32) {
    %c0_i32 = arith.constant 0 : i32
    %c0_i32_0 = arith.constant 0 : i32
    %c0_i32_1 = arith.constant 0 : i32
    return %c0_i32, %c0_i32_0 : i32, i32
  }
  func.func @transform_5(%arg0: i32) -> (i32, i32) {
    %c0_i32 = arith.constant 0 : i32
    %c0_i32_0 = arith.constant 0 : i32
    %c0_i32_1 = arith.constant 0 : i32
    return %c0_i32, %c0_i32_0 : i32, i32
  }
}

module attributes {stable_mosaic.version = 11 : i64} {
  func.func @_block_kernel(%arg0: i32, %arg1: memref<1x72x128xbf16, #tpu.memory_space<vmem>>, %arg2: memref<1x128xf32, #tpu.memory_space<vmem>>, %arg3: memref<1x128xf32, #tpu.memory_space<vmem>>, %arg4: memref<128x384xbf16, #tpu.memory_space<vmem>>, %arg5: memref<1x384xf32, #tpu.memory_space<vmem>>, %arg6: memref<4x32x128xbf16, #tpu.memory_space<vmem>>, %arg7: memref<1x128xf32, #tpu.memory_space<vmem>>, %arg8: memref<1x128xf32, #tpu.memory_space<vmem>>, %arg9: memref<1x128xf32, #tpu.memory_space<vmem>>, %arg10: memref<128x512xbf16, #tpu.memory_space<vmem>>, %arg11: memref<1x512xf32, #tpu.memory_space<vmem>>, %arg12: memref<512x128xbf16, #tpu.memory_space<vmem>>, %arg13: memref<1x128xf32, #tpu.memory_space<vmem>>, %arg14: memref<1x72x128xbf16, #tpu.memory_space<vmem>>) attributes {dimension_semantics = [#tpu.dimension_semantics<parallel>], iteration_bounds = array<i64: 2>, scalar_prefetch = 0 : i64, scratch_operands = 0 : i64, tpu.core_type = #tpu.core_type<tc>, window_params = [{transform_indices = @transform_0, window_bounds = array<i64: 1, 72, 128>}, {pipeline_mode = #tpu.pipeline_mode<synchronous>, transform_indices = @transform_1, window_bounds = array<i64: 1, 128>}, {pipeline_mode = #tpu.pipeline_mode<synchronous>, transform_indices = @transform_2, window_bounds = array<i64: 1, 128>}, {pipeline_mode = #tpu.pipeline_mode<synchronous>, transform_indices = @transform_3, window_bounds = array<i64: 128, 384>}, {pipeline_mode = #tpu.pipeline_mode<synchronous>, transform_indices = @transform_4, window_bounds = array<i64: 1, 384>}, {pipeline_mode = #tpu.pipeline_mode<synchronous>, transform_indices = @transform_5, window_bounds = array<i64: 4, 32, 128>}, {pipeline_mode = #tpu.pipeline_mode<synchronous>, transform_indices = @transform_6, window_bounds = array<i64: 1, 128>}, {pipeline_mode = #tpu.pipeline_mode<synchronous>, transform_indices = @transform_7, window_bounds = array<i64: 1, 128>}, {pipeline_mode = #tpu.pipeline_mode<synchronous>, transform_indices = @transform_8, window_bounds = array<i64: 1, 128>}, {pipeline_mode = #tpu.pipeline_mode<synchronous>, transform_indices = @transform_9, window_bounds = array<i64: 128, 512>}, {pipeline_mode = #tpu.pipeline_mode<synchronous>, transform_indices = @transform_10, window_bounds = array<i64: 1, 512>}, {pipeline_mode = #tpu.pipeline_mode<synchronous>, transform_indices = @transform_11, window_bounds = array<i64: 512, 128>}, {pipeline_mode = #tpu.pipeline_mode<synchronous>, transform_indices = @transform_12, window_bounds = array<i64: 1, 128>}, {transform_indices = @transform_13, window_bounds = array<i64: 1, 72, 128>}]} {
    %c0 = arith.constant 0 : index
    %c0_0 = arith.constant 0 : index
    %c0_1 = arith.constant 0 : index
    %0 = vector.load %arg1[%c0, %c0_0, %c0_1] : memref<1x72x128xbf16, #tpu.memory_space<vmem>>, vector<1x72x128xbf16>
    %1 = vector.shape_cast %0 : vector<1x72x128xbf16> to vector<72x128xbf16>
    %2 = arith.extf %1 : vector<72x128xbf16> to vector<72x128xf32>
    %c0_2 = arith.constant 0 : index
    %c0_3 = arith.constant 0 : index
    %3 = vector.load %arg2[%c0_2, %c0_3] : memref<1x128xf32, #tpu.memory_space<vmem>>, vector<1x128xf32>
    %c0_4 = arith.constant 0 : index
    %c0_5 = arith.constant 0 : index
    %4 = vector.load %arg3[%c0_4, %c0_5] : memref<1x128xf32, #tpu.memory_space<vmem>>, vector<1x128xf32>
    %cst = arith.constant dense<0.000000e+00> : vector<72xf32>
    %5 = vector.multi_reduction <add>, %2, %cst [1] : vector<72x128xf32> to vector<72xf32>
    %6 = vector.shape_cast %5 : vector<72xf32> to vector<72x1xf32>
    %cst_6 = arith.constant 1.280000e+02 : f32
    %7 = vector.broadcast %cst_6 : f32 to vector<72x1xf32>
    %8 = arith.divf %6, %7 : vector<72x1xf32>
    %9 = vector.broadcast %8 : vector<72x1xf32> to vector<72x128xf32>
    %10 = arith.subf %2, %9 : vector<72x128xf32>
    %11 = arith.mulf %10, %10 : vector<72x128xf32>
    %cst_7 = arith.constant dense<0.000000e+00> : vector<72xf32>
    %12 = vector.multi_reduction <add>, %11, %cst_7 [1] : vector<72x128xf32> to vector<72xf32>
    %13 = vector.shape_cast %12 : vector<72xf32> to vector<72x1xf32>
    %cst_8 = arith.constant 1.280000e+02 : f32
    %14 = vector.broadcast %cst_8 : f32 to vector<72x1xf32>
    %15 = arith.divf %13, %14 : vector<72x1xf32>
    %16 = vector.broadcast %8 : vector<72x1xf32> to vector<72x128xf32>
    %17 = arith.subf %2, %16 : vector<72x128xf32>
    %cst_9 = arith.constant 9.99999997E-7 : f32
    %18 = vector.broadcast %cst_9 : f32 to vector<72x1xf32>
    %19 = arith.addf %15, %18 : vector<72x1xf32>
    %20 = math.rsqrt %19 : vector<72x1xf32>
    %21 = vector.broadcast %20 : vector<72x1xf32> to vector<72x128xf32>
    %22 = arith.mulf %17, %21 : vector<72x128xf32>
    %23 = vector.broadcast %3 : vector<1x128xf32> to vector<72x128xf32>
    %24 = arith.mulf %22, %23 : vector<72x128xf32>
    %25 = vector.broadcast %4 : vector<1x128xf32> to vector<72x128xf32>
    %26 = arith.addf %24, %25 : vector<72x128xf32>
    %27 = arith.truncf %26 : vector<72x128xf32> to vector<72x128xbf16>
    %c0_10 = arith.constant 0 : index
    %c0_11 = arith.constant 0 : index
    %28 = vector.load %arg4[%c0_10, %c0_11] : memref<128x384xbf16, #tpu.memory_space<vmem>>, vector<128x384xbf16>
    %cst_12 = arith.constant dense<0.000000e+00> : vector<72x384xf32>
    %29 = tpu.matmul %27, %28, %cst_12 {dimension_numbers = #tpu.dot_dimension_numbers<[1], [0], [0], [1], [0, 0, 1, 1], [], []>} : vector<72x128xbf16>, vector<128x384xbf16>, vector<72x384xf32> -> vector<72x384xf32>
    %c0_13 = arith.constant 0 : index
    %c0_14 = arith.constant 0 : index
    %30 = vector.load %arg5[%c0_13, %c0_14] : memref<1x384xf32, #tpu.memory_space<vmem>>, vector<1x384xf32>
    %31 = vector.broadcast %30 : vector<1x384xf32> to vector<72x384xf32>
    %32 = arith.addf %29, %31 : vector<72x384xf32>
    %33 = vector.extract_strided_slice %32 {offsets = [0, 0], sizes = [72, 128], strides = [1, 1]} : vector<72x384xf32> to vector<72x128xf32>
    %34 = arith.truncf %33 : vector<72x128xf32> to vector<72x128xbf16>
    %35 = vector.extract_strided_slice %32 {offsets = [0, 128], sizes = [72, 128], strides = [1, 1]} : vector<72x384xf32> to vector<72x128xf32>
    %36 = arith.truncf %35 : vector<72x128xf32> to vector<72x128xbf16>
    %37 = vector.extract_strided_slice %32 {offsets = [0, 256], sizes = [72, 128], strides = [1, 1]} : vector<72x384xf32> to vector<72x128xf32>
    %38 = arith.truncf %37 : vector<72x128xf32> to vector<72x128xbf16>
    %39 = tpu.iota {dimensions = array<i32: 1>} : vector<72x72xi32>
    %c65_i32 = arith.constant 65 : i32
    %40 = vector.broadcast %c65_i32 : i32 to vector<72x72xi32>
    %41 = arith.cmpi slt, %39, %40 : vector<72x72xi32>
    %cst_15 = arith.constant 0.000000e+00 : f32
    %42 = vector.broadcast %cst_15 : f32 to vector<72x128xf32>
    %43 = vector.extract_strided_slice %34 {offsets = [0, 0], sizes = [72, 32], strides = [1, 1]} : vector<72x128xbf16> to vector<72x32xbf16>
    %44 = vector.extract_strided_slice %36 {offsets = [0, 0], sizes = [72, 32], strides = [1, 1]} : vector<72x128xbf16> to vector<72x32xbf16>
    %cst_16 = arith.constant dense<0.000000e+00> : vector<72x72xf32>
    %45 = tpu.matmul %43, %44, %cst_16 {dimension_numbers = #tpu.dot_dimension_numbers<[1], [1], [0], [0], [0, 0, 1, 0], [], []>} : vector<72x32xbf16>, vector<72x32xbf16>, vector<72x72xf32> -> vector<72x72xf32>
    %cst_17 = arith.constant 0.176776692 : f32
    %46 = vector.broadcast %cst_17 : f32 to vector<72x72xf32>
    %47 = arith.mulf %45, %46 : vector<72x72xf32>
    %cst_18 = arith.constant -1.000000e+30 : f32
    %48 = vector.broadcast %cst_18 : f32 to vector<72x72xf32>
    %49 = arith.select %41, %47, %48 : vector<72x72xi1>, vector<72x72xf32>
    %cst_19 = arith.constant dense<0xFF800000> : vector<72xf32>
    %50 = vector.multi_reduction <maximumf>, %49, %cst_19 [1] : vector<72x72xf32> to vector<72xf32>
    %51 = vector.shape_cast %50 : vector<72xf32> to vector<72x1xf32>
    %52 = vector.broadcast %51 : vector<72x1xf32> to vector<72x72xf32>
    %53 = arith.subf %49, %52 : vector<72x72xf32>
    %54 = math.exp %53 : vector<72x72xf32>
    %cst_20 = arith.constant dense<0.000000e+00> : vector<72xf32>
    %55 = vector.multi_reduction <add>, %54, %cst_20 [1] : vector<72x72xf32> to vector<72xf32>
    %56 = vector.shape_cast %55 : vector<72xf32> to vector<72x1xf32>
    %57 = tpu.reciprocal %56 {approx = true} : vector<72x1xf32> -> vector<72x1xf32>
    %58 = vector.broadcast %57 : vector<72x1xf32> to vector<72x72xf32>
    %59 = arith.mulf %54, %58 : vector<72x72xf32>
    %60 = arith.truncf %59 : vector<72x72xf32> to vector<72x72xbf16>
    %61 = vector.extract_strided_slice %38 {offsets = [0, 0], sizes = [72, 32], strides = [1, 1]} : vector<72x128xbf16> to vector<72x32xbf16>
    %cst_21 = arith.constant dense<0.000000e+00> : vector<72x32xf32>
    %62 = tpu.matmul %60, %61, %cst_21 {dimension_numbers = #tpu.dot_dimension_numbers<[1], [0], [0], [1], [0, 0, 1, 1], [], []>} : vector<72x72xbf16>, vector<72x32xbf16>, vector<72x32xf32> -> vector<72x32xf32>
    %63 = arith.truncf %62 : vector<72x32xf32> to vector<72x32xbf16>
    %c0_22 = arith.constant 0 : index
    %c0_23 = arith.constant 0 : index
    %c0_24 = arith.constant 0 : index
    %64 = vector.load %arg6[%c0_22, %c0_23, %c0_24] : memref<4x32x128xbf16, #tpu.memory_space<vmem>>, vector<1x32x128xbf16>
    %65 = vector.shape_cast %64 : vector<1x32x128xbf16> to vector<32x128xbf16>
    %cst_25 = arith.constant dense<0.000000e+00> : vector<72x128xf32>
    %66 = tpu.matmul %63, %65, %cst_25 {dimension_numbers = #tpu.dot_dimension_numbers<[1], [0], [0], [1], [0, 0, 1, 1], [], []>} : vector<72x32xbf16>, vector<32x128xbf16>, vector<72x128xf32> -> vector<72x128xf32>
    %67 = arith.addf %42, %66 : vector<72x128xf32>
    %68 = vector.extract_strided_slice %34 {offsets = [0, 32], sizes = [72, 32], strides = [1, 1]} : vector<72x128xbf16> to vector<72x32xbf16>
    %69 = vector.extract_strided_slice %36 {offsets = [0, 32], sizes = [72, 32], strides = [1, 1]} : vector<72x128xbf16> to vector<72x32xbf16>
    %cst_26 = arith.constant dense<0.000000e+00> : vector<72x72xf32>
    %70 = tpu.matmul %68, %69, %cst_26 {dimension_numbers = #tpu.dot_dimension_numbers<[1], [1], [0], [0], [0, 0, 1, 0], [], []>} : vector<72x32xbf16>, vector<72x32xbf16>, vector<72x72xf32> -> vector<72x72xf32>
    %cst_27 = arith.constant 0.176776692 : f32
    %71 = vector.broadcast %cst_27 : f32 to vector<72x72xf32>
    %72 = arith.mulf %70, %71 : vector<72x72xf32>
    %cst_28 = arith.constant -1.000000e+30 : f32
    %73 = vector.broadcast %cst_28 : f32 to vector<72x72xf32>
    %74 = arith.select %41, %72, %73 : vector<72x72xi1>, vector<72x72xf32>
    %cst_29 = arith.constant dense<0xFF800000> : vector<72xf32>
    %75 = vector.multi_reduction <maximumf>, %74, %cst_29 [1] : vector<72x72xf32> to vector<72xf32>
    %76 = vector.shape_cast %75 : vector<72xf32> to vector<72x1xf32>
    %77 = vector.broadcast %76 : vector<72x1xf32> to vector<72x72xf32>
    %78 = arith.subf %74, %77 : vector<72x72xf32>
    %79 = math.exp %78 : vector<72x72xf32>
    %cst_30 = arith.constant dense<0.000000e+00> : vector<72xf32>
    %80 = vector.multi_reduction <add>, %79, %cst_30 [1] : vector<72x72xf32> to vector<72xf32>
    %81 = vector.shape_cast %80 : vector<72xf32> to vector<72x1xf32>
    %82 = tpu.reciprocal %81 {approx = true} : vector<72x1xf32> -> vector<72x1xf32>
    %83 = vector.broadcast %82 : vector<72x1xf32> to vector<72x72xf32>
    %84 = arith.mulf %79, %83 : vector<72x72xf32>
    %85 = arith.truncf %84 : vector<72x72xf32> to vector<72x72xbf16>
    %86 = vector.extract_strided_slice %38 {offsets = [0, 32], sizes = [72, 32], strides = [1, 1]} : vector<72x128xbf16> to vector<72x32xbf16>
    %cst_31 = arith.constant dense<0.000000e+00> : vector<72x32xf32>
    %87 = tpu.matmul %85, %86, %cst_31 {dimension_numbers = #tpu.dot_dimension_numbers<[1], [0], [0], [1], [0, 0, 1, 1], [], []>} : vector<72x72xbf16>, vector<72x32xbf16>, vector<72x32xf32> -> vector<72x32xf32>
    %88 = arith.truncf %87 : vector<72x32xf32> to vector<72x32xbf16>
    %c1 = arith.constant 1 : index
    %c0_32 = arith.constant 0 : index
    %c0_33 = arith.constant 0 : index
    %89 = vector.load %arg6[%c1, %c0_32, %c0_33] : memref<4x32x128xbf16, #tpu.memory_space<vmem>>, vector<1x32x128xbf16>
    %90 = vector.shape_cast %89 : vector<1x32x128xbf16> to vector<32x128xbf16>
    %cst_34 = arith.constant dense<0.000000e+00> : vector<72x128xf32>
    %91 = tpu.matmul %88, %90, %cst_34 {dimension_numbers = #tpu.dot_dimension_numbers<[1], [0], [0], [1], [0, 0, 1, 1], [], []>} : vector<72x32xbf16>, vector<32x128xbf16>, vector<72x128xf32> -> vector<72x128xf32>
    %92 = arith.addf %67, %91 : vector<72x128xf32>
    %93 = vector.extract_strided_slice %34 {offsets = [0, 64], sizes = [72, 32], strides = [1, 1]} : vector<72x128xbf16> to vector<72x32xbf16>
    %94 = vector.extract_strided_slice %36 {offsets = [0, 64], sizes = [72, 32], strides = [1, 1]} : vector<72x128xbf16> to vector<72x32xbf16>
    %cst_35 = arith.constant dense<0.000000e+00> : vector<72x72xf32>
    %95 = tpu.matmul %93, %94, %cst_35 {dimension_numbers = #tpu.dot_dimension_numbers<[1], [1], [0], [0], [0, 0, 1, 0], [], []>} : vector<72x32xbf16>, vector<72x32xbf16>, vector<72x72xf32> -> vector<72x72xf32>
    %cst_36 = arith.constant 0.176776692 : f32
    %96 = vector.broadcast %cst_36 : f32 to vector<72x72xf32>
    %97 = arith.mulf %95, %96 : vector<72x72xf32>
    %cst_37 = arith.constant -1.000000e+30 : f32
    %98 = vector.broadcast %cst_37 : f32 to vector<72x72xf32>
    %99 = arith.select %41, %97, %98 : vector<72x72xi1>, vector<72x72xf32>
    %cst_38 = arith.constant dense<0xFF800000> : vector<72xf32>
    %100 = vector.multi_reduction <maximumf>, %99, %cst_38 [1] : vector<72x72xf32> to vector<72xf32>
    %101 = vector.shape_cast %100 : vector<72xf32> to vector<72x1xf32>
    %102 = vector.broadcast %101 : vector<72x1xf32> to vector<72x72xf32>
    %103 = arith.subf %99, %102 : vector<72x72xf32>
    %104 = math.exp %103 : vector<72x72xf32>
    %cst_39 = arith.constant dense<0.000000e+00> : vector<72xf32>
    %105 = vector.multi_reduction <add>, %104, %cst_39 [1] : vector<72x72xf32> to vector<72xf32>
    %106 = vector.shape_cast %105 : vector<72xf32> to vector<72x1xf32>
    %107 = tpu.reciprocal %106 {approx = true} : vector<72x1xf32> -> vector<72x1xf32>
    %108 = vector.broadcast %107 : vector<72x1xf32> to vector<72x72xf32>
    %109 = arith.mulf %104, %108 : vector<72x72xf32>
    %110 = arith.truncf %109 : vector<72x72xf32> to vector<72x72xbf16>
    %111 = vector.extract_strided_slice %38 {offsets = [0, 64], sizes = [72, 32], strides = [1, 1]} : vector<72x128xbf16> to vector<72x32xbf16>
    %cst_40 = arith.constant dense<0.000000e+00> : vector<72x32xf32>
    %112 = tpu.matmul %110, %111, %cst_40 {dimension_numbers = #tpu.dot_dimension_numbers<[1], [0], [0], [1], [0, 0, 1, 1], [], []>} : vector<72x72xbf16>, vector<72x32xbf16>, vector<72x32xf32> -> vector<72x32xf32>
    %113 = arith.truncf %112 : vector<72x32xf32> to vector<72x32xbf16>
    %c2 = arith.constant 2 : index
    %c0_41 = arith.constant 0 : index
    %c0_42 = arith.constant 0 : index
    %114 = vector.load %arg6[%c2, %c0_41, %c0_42] : memref<4x32x128xbf16, #tpu.memory_space<vmem>>, vector<1x32x128xbf16>
    %115 = vector.shape_cast %114 : vector<1x32x128xbf16> to vector<32x128xbf16>
    %cst_43 = arith.constant dense<0.000000e+00> : vector<72x128xf32>
    %116 = tpu.matmul %113, %115, %cst_43 {dimension_numbers = #tpu.dot_dimension_numbers<[1], [0], [0], [1], [0, 0, 1, 1], [], []>} : vector<72x32xbf16>, vector<32x128xbf16>, vector<72x128xf32> -> vector<72x128xf32>
    %117 = arith.addf %92, %116 : vector<72x128xf32>
    %118 = vector.extract_strided_slice %34 {offsets = [0, 96], sizes = [72, 32], strides = [1, 1]} : vector<72x128xbf16> to vector<72x32xbf16>
    %119 = vector.extract_strided_slice %36 {offsets = [0, 96], sizes = [72, 32], strides = [1, 1]} : vector<72x128xbf16> to vector<72x32xbf16>
    %cst_44 = arith.constant dense<0.000000e+00> : vector<72x72xf32>
    %120 = tpu.matmul %118, %119, %cst_44 {dimension_numbers = #tpu.dot_dimension_numbers<[1], [1], [0], [0], [0, 0, 1, 0], [], []>} : vector<72x32xbf16>, vector<72x32xbf16>, vector<72x72xf32> -> vector<72x72xf32>
    %cst_45 = arith.constant 0.176776692 : f32
    %121 = vector.broadcast %cst_45 : f32 to vector<72x72xf32>
    %122 = arith.mulf %120, %121 : vector<72x72xf32>
    %cst_46 = arith.constant -1.000000e+30 : f32
    %123 = vector.broadcast %cst_46 : f32 to vector<72x72xf32>
    %124 = arith.select %41, %122, %123 : vector<72x72xi1>, vector<72x72xf32>
    %cst_47 = arith.constant dense<0xFF800000> : vector<72xf32>
    %125 = vector.multi_reduction <maximumf>, %124, %cst_47 [1] : vector<72x72xf32> to vector<72xf32>
    %126 = vector.shape_cast %125 : vector<72xf32> to vector<72x1xf32>
    %127 = vector.broadcast %126 : vector<72x1xf32> to vector<72x72xf32>
    %128 = arith.subf %124, %127 : vector<72x72xf32>
    %129 = math.exp %128 : vector<72x72xf32>
    %cst_48 = arith.constant dense<0.000000e+00> : vector<72xf32>
    %130 = vector.multi_reduction <add>, %129, %cst_48 [1] : vector<72x72xf32> to vector<72xf32>
    %131 = vector.shape_cast %130 : vector<72xf32> to vector<72x1xf32>
    %132 = tpu.reciprocal %131 {approx = true} : vector<72x1xf32> -> vector<72x1xf32>
    %133 = vector.broadcast %132 : vector<72x1xf32> to vector<72x72xf32>
    %134 = arith.mulf %129, %133 : vector<72x72xf32>
    %135 = arith.truncf %134 : vector<72x72xf32> to vector<72x72xbf16>
    %136 = vector.extract_strided_slice %38 {offsets = [0, 96], sizes = [72, 32], strides = [1, 1]} : vector<72x128xbf16> to vector<72x32xbf16>
    %cst_49 = arith.constant dense<0.000000e+00> : vector<72x32xf32>
    %137 = tpu.matmul %135, %136, %cst_49 {dimension_numbers = #tpu.dot_dimension_numbers<[1], [0], [0], [1], [0, 0, 1, 1], [], []>} : vector<72x72xbf16>, vector<72x32xbf16>, vector<72x32xf32> -> vector<72x32xf32>
    %138 = arith.truncf %137 : vector<72x32xf32> to vector<72x32xbf16>
    %c3 = arith.constant 3 : index
    %c0_50 = arith.constant 0 : index
    %c0_51 = arith.constant 0 : index
    %139 = vector.load %arg6[%c3, %c0_50, %c0_51] : memref<4x32x128xbf16, #tpu.memory_space<vmem>>, vector<1x32x128xbf16>
    %140 = vector.shape_cast %139 : vector<1x32x128xbf16> to vector<32x128xbf16>
    %cst_52 = arith.constant dense<0.000000e+00> : vector<72x128xf32>
    %141 = tpu.matmul %138, %140, %cst_52 {dimension_numbers = #tpu.dot_dimension_numbers<[1], [0], [0], [1], [0, 0, 1, 1], [], []>} : vector<72x32xbf16>, vector<32x128xbf16>, vector<72x128xf32> -> vector<72x128xf32>
    %142 = arith.addf %117, %141 : vector<72x128xf32>
    %143 = arith.addf %2, %142 : vector<72x128xf32>
    %c0_53 = arith.constant 0 : index
    %c0_54 = arith.constant 0 : index
    %144 = vector.load %arg7[%c0_53, %c0_54] : memref<1x128xf32, #tpu.memory_space<vmem>>, vector<1x128xf32>
    %145 = vector.broadcast %144 : vector<1x128xf32> to vector<72x128xf32>
    %146 = arith.addf %143, %145 : vector<72x128xf32>
    %c0_55 = arith.constant 0 : index
    %c0_56 = arith.constant 0 : index
    %147 = vector.load %arg8[%c0_55, %c0_56] : memref<1x128xf32, #tpu.memory_space<vmem>>, vector<1x128xf32>
    %c0_57 = arith.constant 0 : index
    %c0_58 = arith.constant 0 : index
    %148 = vector.load %arg9[%c0_57, %c0_58] : memref<1x128xf32, #tpu.memory_space<vmem>>, vector<1x128xf32>
    %cst_59 = arith.constant dense<0.000000e+00> : vector<72xf32>
    %149 = vector.multi_reduction <add>, %146, %cst_59 [1] : vector<72x128xf32> to vector<72xf32>
    %150 = vector.shape_cast %149 : vector<72xf32> to vector<72x1xf32>
    %cst_60 = arith.constant 1.280000e+02 : f32
    %151 = vector.broadcast %cst_60 : f32 to vector<72x1xf32>
    %152 = arith.divf %150, %151 : vector<72x1xf32>
    %153 = vector.broadcast %152 : vector<72x1xf32> to vector<72x128xf32>
    %154 = arith.subf %146, %153 : vector<72x128xf32>
    %155 = arith.mulf %154, %154 : vector<72x128xf32>
    %cst_61 = arith.constant dense<0.000000e+00> : vector<72xf32>
    %156 = vector.multi_reduction <add>, %155, %cst_61 [1] : vector<72x128xf32> to vector<72xf32>
    %157 = vector.shape_cast %156 : vector<72xf32> to vector<72x1xf32>
    %cst_62 = arith.constant 1.280000e+02 : f32
    %158 = vector.broadcast %cst_62 : f32 to vector<72x1xf32>
    %159 = arith.divf %157, %158 : vector<72x1xf32>
    %160 = vector.broadcast %152 : vector<72x1xf32> to vector<72x128xf32>
    %161 = arith.subf %146, %160 : vector<72x128xf32>
    %cst_63 = arith.constant 9.99999997E-7 : f32
    %162 = vector.broadcast %cst_63 : f32 to vector<72x1xf32>
    %163 = arith.addf %159, %162 : vector<72x1xf32>
    %164 = math.rsqrt %163 : vector<72x1xf32>
    %165 = vector.broadcast %164 : vector<72x1xf32> to vector<72x128xf32>
    %166 = arith.mulf %161, %165 : vector<72x128xf32>
    %167 = vector.broadcast %147 : vector<1x128xf32> to vector<72x128xf32>
    %168 = arith.mulf %166, %167 : vector<72x128xf32>
    %169 = vector.broadcast %148 : vector<1x128xf32> to vector<72x128xf32>
    %170 = arith.addf %168, %169 : vector<72x128xf32>
    %171 = arith.truncf %170 : vector<72x128xf32> to vector<72x128xbf16>
    %c0_64 = arith.constant 0 : index
    %c0_65 = arith.constant 0 : index
    %172 = vector.load %arg10[%c0_64, %c0_65] : memref<128x512xbf16, #tpu.memory_space<vmem>>, vector<128x512xbf16>
    %cst_66 = arith.constant dense<0.000000e+00> : vector<72x512xf32>
    %173 = tpu.matmul %171, %172, %cst_66 {dimension_numbers = #tpu.dot_dimension_numbers<[1], [0], [0], [1], [0, 0, 1, 1], [], []>} : vector<72x128xbf16>, vector<128x512xbf16>, vector<72x512xf32> -> vector<72x512xf32>
    %c0_67 = arith.constant 0 : index
    %c0_68 = arith.constant 0 : index
    %174 = vector.load %arg11[%c0_67, %c0_68] : memref<1x512xf32, #tpu.memory_space<vmem>>, vector<1x512xf32>
    %175 = vector.broadcast %174 : vector<1x512xf32> to vector<72x512xf32>
    %176 = arith.addf %173, %175 : vector<72x512xf32>
    %177 = arith.mulf %176, %176 : vector<72x512xf32>
    %178 = arith.mulf %176, %177 : vector<72x512xf32>
    %cst_69 = arith.constant 4.471500e-02 : f32
    %179 = vector.broadcast %cst_69 : f32 to vector<72x512xf32>
    %180 = arith.mulf %179, %178 : vector<72x512xf32>
    %181 = arith.addf %176, %180 : vector<72x512xf32>
    %cst_70 = arith.constant 0.797884583 : f32
    %182 = vector.broadcast %cst_70 : f32 to vector<72x512xf32>
    %183 = arith.mulf %182, %181 : vector<72x512xf32>
    %184 = math.tanh %183 : vector<72x512xf32>
    %cst_71 = arith.constant 1.000000e+00 : f32
    %185 = vector.broadcast %cst_71 : f32 to vector<72x512xf32>
    %186 = arith.addf %185, %184 : vector<72x512xf32>
    %cst_72 = arith.constant 5.000000e-01 : f32
    %187 = vector.broadcast %cst_72 : f32 to vector<72x512xf32>
    %188 = arith.mulf %187, %186 : vector<72x512xf32>
    %189 = arith.mulf %176, %188 : vector<72x512xf32>
    %190 = arith.truncf %189 : vector<72x512xf32> to vector<72x512xbf16>
    %c0_73 = arith.constant 0 : index
    %c0_74 = arith.constant 0 : index
    %191 = vector.load %arg12[%c0_73, %c0_74] : memref<512x128xbf16, #tpu.memory_space<vmem>>, vector<512x128xbf16>
    %cst_75 = arith.constant dense<0.000000e+00> : vector<72x128xf32>
    %192 = tpu.matmul %190, %191, %cst_75 {dimension_numbers = #tpu.dot_dimension_numbers<[1], [0], [0], [1], [0, 0, 1, 1], [], []>} : vector<72x512xbf16>, vector<512x128xbf16>, vector<72x128xf32> -> vector<72x128xf32>
    %193 = arith.addf %146, %192 : vector<72x128xf32>
    %c0_76 = arith.constant 0 : index
    %c0_77 = arith.constant 0 : index
    %194 = vector.load %arg13[%c0_76, %c0_77] : memref<1x128xf32, #tpu.memory_space<vmem>>, vector<1x128xf32>
    %195 = vector.broadcast %194 : vector<1x128xf32> to vector<72x128xf32>
    %196 = arith.addf %193, %195 : vector<72x128xf32>
    %197 = arith.truncf %196 : vector<72x128xf32> to vector<72x128xbf16>
    %c0_78 = arith.constant 0 : index
    %c0_79 = arith.constant 0 : index
    %c0_80 = arith.constant 0 : index
    %198 = vector.load %arg14[%c0_78, %c0_79, %c0_80] : memref<1x72x128xbf16, #tpu.memory_space<vmem>>, vector<1x72x128xbf16>
    %199 = vector.shape_cast %198 : vector<1x72x128xbf16> to vector<72x128xbf16>
    %200 = vector.shape_cast %197 : vector<72x128xbf16> to vector<1x72x128xbf16>
    tpu.vector_store %arg14[%c0_78, %c0_79, %c0_80], %200 {strides = array<i32>} : memref<1x72x128xbf16, #tpu.memory_space<vmem>>, vector<1x72x128xbf16>,
    return
  }
  func.func @transform_0(%arg0: i32) -> (i32, i32, i32) {
    %c0_i32 = arith.constant 0 : i32
    %c0_i32_0 = arith.constant 0 : i32
    %c0_i32_1 = arith.constant 0 : i32
    return %arg0, %c0_i32, %c0_i32_0 : i32, i32, i32
  }
  func.func @transform_1(%arg0: i32) -> (i32, i32) {
    %c0_i32 = arith.constant 0 : i32
    %c0_i32_0 = arith.constant 0 : i32
    %c0_i32_1 = arith.constant 0 : i32
    return %c0_i32, %c0_i32_0 : i32, i32
  }
  func.func @transform_2(%arg0: i32) -> (i32, i32) {
    %c0_i32 = arith.constant 0 : i32
    %c0_i32_0 = arith.constant 0 : i32
    %c0_i32_1 = arith.constant 0 : i32
    return %c0_i32, %c0_i32_0 : i32, i32
  }
  func.func @transform_3(%arg0: i32) -> (i32, i32) {
    %c0_i32 = arith.constant 0 : i32
    %c0_i32_0 = arith.constant 0 : i32
    %c0_i32_1 = arith.constant 0 : i32
    return %c0_i32, %c0_i32_0 : i32, i32
  }
  func.func @transform_4(%arg0: i32) -> (i32, i32) {
    %c0_i32 = arith.constant 0 : i32
    %c0_i32_0 = arith.constant 0 : i32
    %c0_i32_1 = arith.constant 0 : i32
    return %c0_i32, %c0_i32_0 : i32, i32
  }
  func.func @transform_5(%arg0: i32) -> (i32, i32, i32) {
    %c0_i32 = arith.constant 0 : i32
    %c0_i32_0 = arith.constant 0 : i32
    %c0_i32_1 = arith.constant 0 : i32
    %c0_i32_2 = arith.constant 0 : i32
    return %c0_i32, %c0_i32_0, %c0_i32_1 : i32, i32, i32
  }
  func.func @transform_6(%arg0: i32) -> (i32, i32) {
    %c0_i32 = arith.constant 0 : i32
    %c0_i32_0 = arith.constant 0 : i32
    %c0_i32_1 = arith.constant 0 : i32
    return %c0_i32, %c0_i32_0 : i32, i32
  }
  func.func @transform_7(%arg0: i32) -> (i32, i32) {
    %c0_i32 = arith.constant 0 : i32
    %c0_i32_0 = arith.constant 0 : i32
    %c0_i32_1 = arith.constant 0 : i32
    return %c0_i32, %c0_i32_0 : i32, i32
  }
  func.func @transform_8(%arg0: i32) -> (i32, i32) {
    %c0_i32 = arith.constant 0 : i32
    %c0_i32_0 = arith.constant 0 : i32
    %c0_i32_1 = arith.constant 0 : i32
    return %c0_i32, %c0_i32_0 : i32, i32
  }
  func.func @transform_9(%arg0: i32) -> (i32, i32) {
    %c0_i32 = arith.constant 0 : i32
    %c0_i32_0 = arith.constant 0 : i32
    %c0_i32_1 = arith.constant 0 : i32
    return %c0_i32, %c0_i32_0 : i32, i32
  }
  func.func @transform_10(%arg0: i32) -> (i32, i32) {
    %c0_i32 = arith.constant 0 : i32
    %c0_i32_0 = arith.constant 0 : i32
    %c0_i32_1 = arith.constant 0 : i32
    return %c0_i32, %c0_i32_0 : i32, i32
  }
  func.func @transform_11(%arg0: i32) -> (i32, i32) {
    %c0_i32 = arith.constant 0 : i32
    %c0_i32_0 = arith.constant 0 : i32
    %c0_i32_1 = arith.constant 0 : i32
    return %c0_i32, %c0_i32_0 : i32, i32
  }
  func.func @transform_12(%arg0: i32) -> (i32, i32) {
    %c0_i32 = arith.constant 0 : i32
    %c0_i32_0 = arith.constant 0 : i32
    %c0_i32_1 = arith.constant 0 : i32
    return %c0_i32, %c0_i32_0 : i32, i32
  }
  func.func @transform_13(%arg0: i32) -> (i32, i32, i32) {
    %c0_i32 = arith.constant 0 : i32
    %c0_i32_0 = arith.constant 0 : i32
    %c0_i32_1 = arith.constant 0 : i32
    return %arg0, %c0_i32, %c0_i32_0 : i32, i32, i32
  }
}

</mosaic_0001>

<llo_original>
// kernel: forward.6
$region0: #{forward.6}
  #allocation0 [shape = 'u32[]', space=smem, size = 0x4, offset = 0x4, fixed_abs, tag = 'smem constant byte address 0x4 - core index']
  #allocation1 [shape = 'u32[72,128]{1,0:T(1,128)}', space=vmem, size = 0x9000, scoped, tag = 'internal scratch']
  %s0 = inlined_call_operand.vmem [shape: bf16[512,27], index: 0, kind: input, shape index: {}]
  %s1 = inlined_call_operand.vmem [shape: bf16[27,16], index: 1, kind: input, shape index: {}]
  %s2 = inlined_call_operand.vmem [shape: f32[1,16], index: 2, kind: input, shape index: {}]
  %s3 = inlined_call_operand.vmem [shape: bf16[512,16], index: 3, kind: output, shape index: {}]
  %s4 = sld [smem:[#allocation0]]
  $region45: #{forward.6} parent=0
    _
  %s6 = ssub.s32 1, %s4
  %s7 = scalar_select 0, %s6, %s4
  loop: start=0, step=1, limit=4
  $region2: #{forward.6} parent=0 // loop_pre_header
    _
  $region3: #{forward.6} parent=0 // loop_header
    %s9 = sphi 0, %s13
    %p10 = scmp.ge.s32.totalorder %s9, 4
    %s16 = sphi 0, %s28
    %s17 = sphi 0, %s24
    %s18 = sphi 0, %s16
    %s19 = sphi 0, %s17
    %s20 = sphi 0, %s18
    %s21 = sphi 0, %s19
    %s31 = sphi 0, %s33
    %s34 = sphi 0, %s31
    %s35 = sphi 0, %s34
    %s51 = sphi 0, %s35
    %s57 = sphi 0, %s59
    %s60 = sphi 0, %s57
    %s61 = sphi 0, %s60
    %s77 = sphi 0, %s61
    %s83 = sphi 0, %s85
    %s86 = sphi 0, %s83
    %s87 = sphi 0, %s86
    %s103 = sphi 0, %s87
    %s111 = sphi 0, %s113
    %s114 = sphi 0, %s111
    %s115 = sphi 0, %s114
    %s131 = sphi 0, %s115
  $region4: #{forward.6} parent=0 // loop_header_branch
    %12 = sbr.rel (%p10) target = $region8
  $region5: #{forward.6} parent=0 // loop_body
    %s14 = ssub.s32 %s9, 1
    %s15 = ssub.s32 %s9, 2
    %s22 = sadd.s32 1, %s17
    %p23 = scmp.ge.s32.totalorder %s22, 1
    %s24 = scalar_select %p23, 0, %s22
    %s25 = sadd.s32 1, %s16
    %s26 = scalar_select %p23, %s25, %s16
    %p27 = scmp.ge.s32.totalorder %s26, 2
    %s28 = scalar_select %p27, 0, %s26
    %s29 = ssub.s32 %s16, %s28
    %p30 = scmp.eq.s32.totalorder %s29, 0
    %s32 = sadd.s32 %s31, 1
    %s33 = scalar_select %p30, %s31, %s32
    %p36 = pneg %p30
    %p37 = scmp.eq.s32.totalorder %s9, 1
    %p38 = por %p36, %p37
    %p39 = scmp.ne.s32.totalorder %s31, %s34
    %p40 = scmp.eq.s32.totalorder %s9, 0
    %p41 = por %p39, %p40
    %p42 = scmp.ne.s32.totalorder %s31, %s34
    %p43 = scmp.eq.s32.totalorder %s14, 1
    %p44 = por %p42, %p43
    %p45 = scmp.ne.s32.totalorder %s34, %s35
    %p46 = scmp.eq.s32.totalorder %s14, 0
    %p47 = por %p45, %p46
    %p48 = scmp.ne.s32.totalorder %s34, %s35
    %p49 = scmp.eq.s32.totalorder %s15, 1
    %p50 = por %p48, %p49
    %p52 = scmp.ne.s32.totalorder %s35, %s51
    %p53 = scmp.eq.s32.totalorder %s15, 0
    %p54 = por %p52, %p53
    %s55 = ssub.s32 %s17, %s24
    %p56 = scmp.eq.s32.totalorder %s55, 0
    %s58 = sadd.s32 %s57, 1
    %s59 = scalar_select %p56, %s57, %s58
    %p62 = pneg %p56
    %p63 = scmp.eq.s32.totalorder %s9, 1
    %p64 = por %p62, %p63
    %p65 = scmp.ne.s32.totalorder %s57, %s60
    %p66 = scmp.eq.s32.totalorder %s9, 0
    %p67 = por %p65, %p66
    %p68 = scmp.ne.s32.totalorder %s57, %s60
    %p69 = scmp.eq.s32.totalorder %s14, 1
    %p70 = por %p68, %p69
    %p71 = scmp.ne.s32.totalorder %s60, %s61
    %p72 = scmp.eq.s32.totalorder %s14, 0
    %p73 = por %p71, %p72
    %p74 = scmp.ne.s32.totalorder %s60, %s61
    %p75 = scmp.eq.s32.totalorder %s15, 1
    %p76 = por %p74, %p75
    %p78 = scmp.ne.s32.totalorder %s61, %s77
    %p79 = scmp.eq.s32.totalorder %s15, 0
    %p80 = por %p78, %p79
    %s81 = ssub.s32 %s17, %s24
    %p82 = scmp.eq.s32.totalorder %s81, 0
    %s84 = sadd.s32 %s83, 1
    %s85 = scalar_select %p82, %s83, %s84
    %p88 = pneg %p82
    %p89 = scmp.eq.s32.totalorder %s9, 1
    %p90 = por %p88, %p89
    %p91 = scmp.ne.s32.totalorder %s83, %s86
    %p92 = scmp.eq.s32.totalorder %s9, 0
    %p93 = por %p91, %p92
    %p94 = scmp.ne.s32.totalorder %s83, %s86
    %p95 = scmp.eq.s32.totalorder %s14, 1
    %p96 = por %p94, %p95
    %p97 = scmp.ne.s32.totalorder %s86, %s87
    %p98 = scmp.eq.s32.totalorder %s14, 0
    %p99 = por %p97, %p98
    %p100 = scmp.ne.s32.totalorder %s86, %s87
    %p101 = scmp.eq.s32.totalorder %s15, 1
    %p102 = por %p100, %p101
    %p104 = scmp.ne.s32.totalorder %s87, %s103
    %p105 = scmp.eq.s32.totalorder %s15, 0
    %p106 = por %p104, %p105
    %s107 = ssub.s32 %s16, %s28
    %s108 = ssub.s32 %s17, %s24
    %s109 = sor.u32 %s107, %s108
    %p110 = scmp.eq.s32.totalorder %s109, 0
    %s112 = sadd.s32 %s111, 1
    %s113 = scalar_select %p110, %s111, %s112
    %p116 = pneg %p110
    %p117 = scmp.eq.s32.totalorder %s9, 1
    %p118 = por %p116, %p117
    %p119 = scmp.ne.s32.totalorder %s111, %s114
    %p120 = scmp.eq.s32.totalorder %s9, 0
    %p121 = por %p119, %p120
    %p122 = scmp.ne.s32.totalorder %s111, %s114
    %p123 = scmp.eq.s32.totalorder %s14, 1
    %p124 = por %p122, %p123
    %p125 = scmp.ne.s32.totalorder %s114, %s115
    %p126 = scmp.eq.s32.totalorder %s14, 0
    %p127 = por %p125, %p126
    %p128 = scmp.ne.s32.totalorder %s114, %s115
    %p129 = scmp.eq.s32.totalorder %s15, 1
    %p130 = por %p128, %p129
    %p132 = scmp.ne.s32.totalorder %s115, %s131
    %p133 = scmp.eq.s32.totalorder %s15, 0
    %p134 = por %p132, %p133
    %p135 = scmp.le.s32.totalorder 1, %s9
    %p136 = scmp.lt.s32.totalorder %s9, 3
    %p137 = pnand %p135, %p136
    %p138 = pneg %p137
    // Predicated region
    $region9: #{forward.6} parent=5 // pred_check
      _
    $region10: #{forward.6} parent=5 // pred_check_branch
      %140 = sbr.rel (%p137) target = $region12
    $region11: #{forward.6} parent=5 // pred_region
      %s141 = ssub.s32 %s9, 1
      // Predicated region
      $region13: #{forward.6} parent=11 // pred_check
        %p142 = pneg %p73
      $region14: #{forward.6} parent=11 // pred_check_branch
        %144 = sbr.rel (%p142) target = $region16
      $region15: #{forward.6} parent=11 // pred_region
        %p145 = scmp.lt.s32.totalorder %s19, 0
        %s146 = scalar_select %p145, %s19, 0
        %s147 = smul.addr %s146, 4
        %s148 = scalar_lea.vmem %s1, %s147
      $region16: #{forward.6} parent=11 // pred_fallthru
        _
      // Predicated region
      $region17: #{forward.6} parent=11 // pred_check
        %p149 = pneg %p99
      $region18: #{forward.6} parent=11 // pred_check_branch
        %151 = sbr.rel (%p149) target = $region20
      $region19: #{forward.6} parent=11 // pred_region
        %p152 = scmp.lt.s32.totalorder %s19, 0
        %s153 = scalar_select %p152, %s19, 0
        %s154 = scalar_lea.vmem %s2, %s153
      $region20: #{forward.6} parent=11 // pred_fallthru
        _
    $region12: #{forward.6} parent=5 // pred_fallthru
      _
    %p155 = scmp.lt.s32.totalorder %s9, 2
    // Predicated region
    $region21: #{forward.6} parent=5 // pred_check
      %p156 = pneg %p155
    $region22: #{forward.6} parent=5 // pred_check_branch
      %158 = sbr.rel (%p156) target = $region24
    $region23: #{forward.6} parent=5 // pred_region
      // Predicated region
      $region25: #{forward.6} parent=23 // pred_check
        %p159 = pneg %p41
      $region26: #{forward.6} parent=23 // pred_check_branch
        %161 = sbr.rel (%p159) target = $region28
      $region27: #{forward.6} parent=23 // pred_region
        %s162 = smul.u32 32, %s16
        %p163 = scmp.lt.s32.totalorder %s162, 63
        %s164 = scalar_select %p163, %s162, 63
        %s165 = smul.addr %s164, 4
        %s166 = scalar_lea.vmem %s0, %s165
        %s167 = smul.u32 32, %s16
      $region28: #{forward.6} parent=23 // pred_fallthru
        _
    $region24: #{forward.6} parent=5 // pred_fallthru
      _
    %p168 = scmp.le.s32.totalorder 1, %s9
    %p169 = scmp.lt.s32.totalorder %s9, 3
    %p170 = pnand %p168, %p169
    %p171 = pneg %p170
    // Predicated region
    $region29: #{forward.6} parent=5 // pred_check
      _
    $region30: #{forward.6} parent=5 // pred_check_branch
      %173 = sbr.rel (%p170) target = $region32
    $region31: #{forward.6} parent=5 // pred_region
      %s174 = ssub.s32 %s9, 1
      %s175 = smul.u32 32, %s18
      %p176 = scmp.lt.s32.totalorder %s175, 63
      %s177 = scalar_select %p176, %s175, 63
      %s178 = smul.addr %s177, 4
      %s179 = scalar_lea.vmem %s0, %s178
      %p180 = pneg %p47
      %p181 = pneg %p44
      %p182 = scmp.lt.s32.totalorder %s19, 0
      %s183 = scalar_select %p182, %s19, 0
      %s184 = smul.addr %s183, 4
      %s185 = scalar_lea.vmem %s1, %s184
      %p186 = pneg %p73
      %p187 = pneg %p70
      %p188 = scmp.lt.s32.totalorder %s19, 0
      %s189 = scalar_select %p188, %s19, 0
      %s190 = scalar_lea.vmem %s2, %s189
      %p191 = pneg %p99
      %p192 = pneg %p96
      %p193 = pneg %p127
      %p194 = pneg %p124
      %s195 = smul.u32 32, %s18
      %p196 = scmp.lt.s32.totalorder %s195, 63
      %s197 = scalar_select %p196, %s195, 63
      %p198 = scmp.lt.s32.totalorder %s19, 0
      %s199 = scalar_select %p198, %s19, 0
      %s200 = sadd.s32 %s199, %s197
      %s201 = smul.addr %s200, 4
      %s202 = scalar_lea.vmem %s3, %s201
      %s203 = smul.u32 32, %s18
      %p204 = scmp.lt.s32.totalorder %s203, 63
      %s205 = scalar_select %p204, %s203, 63
      %s206 = smul.addr %s205, 4
      %s207 = scalar_lea.vmem %s0, %s206
      %s208 = smul.u32 32, %s18
      %p209 = scmp.lt.s32.totalorder %s19, 0
      %s210 = scalar_select %p209, %s19, 0
      %s211 = smul.addr %s210, 4
      %s212 = scalar_lea.vmem %s1, %s211
      %p213 = scmp.lt.s32.totalorder %s19, 0
      %s214 = scalar_select %p213, %s19, 0
      %s215 = scalar_lea.vmem %s2, %s214
      %s216 = smul.u32 32, %s18
      %p217 = scmp.lt.s32.totalorder %s216, 63
      %s218 = scalar_select %p217, %s216, 63
      %p219 = scmp.lt.s32.totalorder %s19, 0
      %s220 = scalar_select %p219, %s19, 0
      %s221 = sadd.s32 %s220, %s218
      %s222 = smul.addr %s221, 4
      %s223 = scalar_lea.vmem %s3, %s222
      %s224 = smul.u32 32, %s18
      %v226 = vld [vmem:[%s207] sm:$0xf]
      %v227 = vld [vmem:[%s207 + $0x4] sm:$0xf]
      %v228 = vld [vmem:[%s207 + $0x8] sm:$0xf]
      %v229 = vld [vmem:[%s207 + $0xc] sm:$0xf]
      %v230 = vld [vmem:[%s207 + $0x10] sm:$0xf]
      %v231 = vld [vmem:[%s207 + $0x14] sm:$0xf]
      %v232 = vld [vmem:[%s207 + $0x18] sm:$0xf]
      %v233 = vld [vmem:[%s207 + $0x1c] sm:$0xf]
      %v234 = vld [vmem:[%s207 + $0x20] sm:$0xf]
      %v235 = vld [vmem:[%s207 + $0x24] sm:$0xf]
      %v236 = vld [vmem:[%s207 + $0x28] sm:$0xf]
      %v237 = vld [vmem:[%s207 + $0x2c] sm:$0xf]
      %v238 = vld [vmem:[%s207 + $0x30] sm:$0xf]
      %v239 = vld [vmem:[%s207 + $0x34] sm:$0xf]
      %v240 = vld [vmem:[%s207 + $0x38] sm:$0xf]
      %v241 = vld [vmem:[%s207 + $0x3c] sm:$0xf]
      %v242 = vld [vmem:[%s207 + $0x40] sm:$0xf]
      %v243 = vld [vmem:[%s207 + $0x44] sm:$0xf]
      %v244 = vld [vmem:[%s207 + $0x48] sm:$0xf]
      %v245 = vld [vmem:[%s207 + $0x4c] sm:$0xf]
      %v246 = vld [vmem:[%s207 + $0x50] sm:$0xf]
      %v247 = vld [vmem:[%s207 + $0x54] sm:$0xf]
      %v248 = vld [vmem:[%s207 + $0x58] sm:$0xf]
      %v249 = vld [vmem:[%s207 + $0x5c] sm:$0xf]
      %v250 = vld [vmem:[%s207 + $0x60] sm:$0xf]
      %v251 = vld [vmem:[%s207 + $0x64] sm:$0xf]
      %v252 = vld [vmem:[%s207 + $0x68] sm:$0xf]
      %v253 = vld [vmem:[%s207 + $0x6c] sm:$0xf]
      %v254 = vld [vmem:[%s207 + $0x70] sm:$0xf]
      %v255 = vld [vmem:[%s207 + $0x74] sm:$0xf]
      %v256 = vld [vmem:[%s207 + $0x78] sm:$0xf]
      %v257 = vld [vmem:[%s207 + $0x7c] sm:$0xf]
      %v258 = vld [vmem:[%s212] sm:$0xf]
      %v259 = vld [vmem:[%s212 + $0x4] sm:$0xf]
      %v260 = vld [vmem:[%s212 + $0x8] sm:$0xf]
      %v261 = vld [vmem:[%s212 + $0xc] sm:$0x3]
      %v262 = vld [vmem:[%s215] sm:$0x1]
      %v264 = vperm.slane %v262, 0
      %v298 = vunpack.c.l.b16 %v226
      %v299 = vunpack.c.l.b16 %v227
      %v300 = vunpack.c.l.b16 %v228
      %v301 = vunpack.c.l.b16 %v229
      %v302 = vunpack.c.l.b16 %v230
      %v303 = vunpack.c.l.b16 %v231
      %v304 = vunpack.c.l.b16 %v232
      %v305 = vunpack.c.l.b16 %v233
      %v306 = vunpack.c.l.b16 %v234
      %v307 = vunpack.c.l.b16 %v235
      %v308 = vunpack.c.l.b16 %v236
      %v309 = vunpack.c.l.b16 %v237
      %v310 = vunpack.c.l.b16 %v238
      %v311 = vunpack.c.l.b16 %v239
      %v312 = vunpack.c.l.b16 %v240
      %v313 = vunpack.c.l.b16 %v241
      %v314 = vunpack.c.l.b16 %v242
      %v315 = vunpack.c.l.b16 %v243
      %v316 = vunpack.c.l.b16 %v244
      %v317 = vunpack.c.l.b16 %v245
      %v318 = vunpack.c.l.b16 %v246
      %v319 = vunpack.c.l.b16 %v247
      %v320 = vunpack.c.l.b16 %v248
      %v321 = vunpack.c.l.b16 %v249
      %v322 = vunpack.c.l.b16 %v250
      %v323 = vunpack.c.l.b16 %v251
      %v324 = vunpack.c.l.b16 %v252
      %v325 = vunpack.c.l.b16 %v253
      %v326 = vunpack.c.l.b16 %v254
      %v327 = vunpack.c.l.b16 %v255
      %v328 = vunpack.c.l.b16 %v256
      %v329 = vunpack.c.l.b16 %v257
      %v330 = vpack.c.b16 %v299, %v298
      %v331 = vpack.c.b16 %v301, %v300
      %v332 = vpack.c.b16 %v303, %v302
      %v333 = vpack.c.b16 %v305, %v304
      %v334 = vpack.c.b16 %v307, %v306
      %v335 = vpack.c.b16 %v309, %v308
      %v336 = vpack.c.b16 %v311, %v310
      %v337 = vpack.c.b16 %v313, %v312
      %v338 = vpack.c.b16 %v315, %v314
      %v339 = vpack.c.b16 %v317, %v316
      %v340 = vpack.c.b16 %v319, %v318
      %v341 = vpack.c.b16 %v321, %v320
      %v342 = vpack.c.b16 %v323, %v322
      %v343 = vpack.c.b16 %v325, %v324
      %v344 = vpack.c.b16 %v327, %v326
      %v345 = vpack.c.b16 %v329, %v328
      %v350 = vunpack.c.l.b16 %v258
      %v351 = vunpack.c.l.b16 %v259
      %v352 = vunpack.c.l.b16 %v260
      %v353 = vunpack.c.l.b16 %v261
      %v354 = vpack.c.b16 %v351, %v350
      %v355 = vpack.c.b16 %v353, %v352
      %vm357 = vcmask 220160
      %v359 = vsel %vm357, %v330, 0
      %v362 = vsel %vm357, %v331, 0
      %v365 = vsel %vm357, %v332, 0
      %v368 = vsel %vm357, %v333, 0
      %v371 = vsel %vm357, %v334, 0
      %v374 = vsel %vm357, %v335, 0
      %v377 = vsel %vm357, %v336, 0
      %v380 = vsel %vm357, %v337, 0
      %v383 = vsel %vm357, %v338, 0
      %v386 = vsel %vm357, %v339, 0
      %v389 = vsel %vm357, %v340, 0
      %v392 = vsel %vm357, %v341, 0
      %v395 = vsel %vm357, %v342, 0
      %v398 = vsel %vm357, %v343, 0
      %v401 = vsel %vm357, %v344, 0
      %v404 = vsel %vm357, %v345, 0
      %vm406 = vcmask 1044480
      %vm407 = vcmask 1045504
      %v408 = vsel %vm406, 4294967295, 65535
      %v409 = vsel %vm407, %v408, 0
      %v411 = vand.u32 %v355, %v409
      %413 = vmatpush.bf16.msra.mxu0 0
      %414 = vmatpush.bf16.msra.mxu0 0
      %415 = vmatpush.bf16.msra.mxu0 0
      %416 = vmatpush.bf16.msra.mxu0 0
      %417 = vmatpush.bf16.msra.mxu0 0
      %418 = vmatpush.bf16.msra.mxu0 0
      %419 = vmatpush.bf16.msra.mxu0 %v411
      %420 = vmatpush.bf16.msra.mxu0 %v354
      %421 = vmatmul.bf16.gmra.mxu0 %v359
      %v422 = vpop.f32.mrf.mxu0
      %v423 = vadd.f32 %v264, %v422
      %v424 = vpop.f32.mrf.mxu0
      %v425 = vadd.f32 %v264, %v424
      %426 = vmatmul.bf16.gmra.mxu0 %v362
      %v427 = vpop.f32.mrf.mxu0
      %v428 = vadd.f32 %v264, %v427
      %v429 = vpop.f32.mrf.mxu0
      %v430 = vadd.f32 %v264, %v429
      %431 = vmatmul.bf16.gmra.mxu0 %v365
      %v432 = vpop.f32.mrf.mxu0
      %v433 = vadd.f32 %v264, %v432
      %v434 = vpop.f32.mrf.mxu0
      %v435 = vadd.f32 %v264, %v434
      %436 = vmatmul.bf16.gmra.mxu0 %v368
      %v437 = vpop.f32.mrf.mxu0
      %v438 = vadd.f32 %v264, %v437
      %v439 = vpop.f32.mrf.mxu0
      %v440 = vadd.f32 %v264, %v439
      %441 = vmatmul.bf16.gmra.mxu0 %v371
      %v442 = vpop.f32.mrf.mxu0
      %v443 = vadd.f32 %v264, %v442
      %v444 = vpop.f32.mrf.mxu0
      %v445 = vadd.f32 %v264, %v444
      %446 = vmatmul.bf16.gmra.mxu0 %v374
      %v447 = vpop.f32.mrf.mxu0
      %v448 = vadd.f32 %v264, %v447
      %v449 = vpop.f32.mrf.mxu0
      %v450 = vadd.f32 %v264, %v449
      %451 = vmatmul.bf16.gmra.mxu0 %v377
      %v452 = vpop.f32.mrf.mxu0
      %v453 = vadd.f32 %v264, %v452
      %v454 = vpop.f32.mrf.mxu0
      %v455 = vadd.f32 %v264, %v454
      %456 = vmatmul.bf16.gmra.mxu0 %v380
      %v457 = vpop.f32.mrf.mxu0
      %v458 = vadd.f32 %v264, %v457
      %v459 = vpop.f32.mrf.mxu0
      %v460 = vadd.f32 %v264, %v459
      %461 = vmatmul.bf16.gmra.mxu0 %v383
      %v462 = vpop.f32.mrf.mxu0
      %v463 = vadd.f32 %v264, %v462
      %v464 = vpop.f32.mrf.mxu0
      %v465 = vadd.f32 %v264, %v464
      %466 = vmatmul.bf16.gmra.mxu0 %v386
      %v467 = vpop.f32.mrf.mxu0
      %v468 = vadd.f32 %v264, %v467
      %v469 = vpop.f32.mrf.mxu0
      %v470 = vadd.f32 %v264, %v469
      %471 = vmatmul.bf16.gmra.mxu0 %v389
      %v472 = vpop.f32.mrf.mxu0
      %v473 = vadd.f32 %v264, %v472
      %v474 = vpop.f32.mrf.mxu0
      %v475 = vadd.f32 %v264, %v474
      %476 = vmatmul.bf16.gmra.mxu0 %v392
      %v477 = vpop.f32.mrf.mxu0
      %v478 = vadd.f32 %v264, %v477
      %v479 = vpop.f32.mrf.mxu0
      %v480 = vadd.f32 %v264, %v479
      %481 = vmatmul.bf16.gmra.mxu0 %v395
      %v482 = vpop.f32.mrf.mxu0
      %v483 = vadd.f32 %v264, %v482
      %v484 = vpop.f32.mrf.mxu0
      %v485 = vadd.f32 %v264, %v484
      %486 = vmatmul.bf16.gmra.mxu0 %v398
      %v487 = vpop.f32.mrf.mxu0
      %v488 = vadd.f32 %v264, %v487
      %v489 = vpop.f32.mrf.mxu0
      %v490 = vadd.f32 %v264, %v489
      %491 = vmatmul.bf16.gmra.mxu0 %v401
      %v492 = vpop.f32.mrf.mxu0
      %v493 = vadd.f32 %v264, %v492
      %v494 = vpop.f32.mrf.mxu0
      %v495 = vadd.f32 %v264, %v494
      %496 = vmatmul.bf16.gmra.mxu0 %v404
      %v497 = vpop.f32.mrf.mxu0
      %v498 = vadd.f32 %v264, %v497
      %v499 = vpop.f32.mrf.mxu0
      %v500 = vadd.f32 %v264, %v499
      %501 = vdwg.mxu0
      %v502 = vmax.f32 %v423, 0.0
      %v503 = vmax.f32 %v425, 0.0
      %v504 = vmax.f32 %v428, 0.0
      %v505 = vmax.f32 %v430, 0.0
      %v506 = vmax.f32 %v433, 0.0
      %v507 = vmax.f32 %v435, 0.0
      %v508 = vmax.f32 %v438, 0.0
      %v509 = vmax.f32 %v440, 0.0
      %v510 = vmax.f32 %v443, 0.0
      %v511 = vmax.f32 %v445, 0.0
      %v512 = vmax.f32 %v448, 0.0
      %v513 = vmax.f32 %v450, 0.0
      %v514 = vmax.f32 %v453, 0.0
      %v515 = vmax.f32 %v455, 0.0
      %v516 = vmax.f32 %v458, 0.0
      %v517 = vmax.f32 %v460, 0.0
      %v518 = vmax.f32 %v463, 0.0
      %v519 = vmax.f32 %v465, 0.0
      %v520 = vmax.f32 %v468, 0.0
      %v521 = vmax.f32 %v470, 0.0
      %v522 = vmax.f32 %v473, 0.0
      %v523 = vmax.f32 %v475, 0.0
      %v524 = vmax.f32 %v478, 0.0
      %v525 = vmax.f32 %v480, 0.0
      %v526 = vmax.f32 %v483, 0.0
      %v527 = vmax.f32 %v485, 0.0
      %v528 = vmax.f32 %v488, 0.0
      %v529 = vmax.f32 %v490, 0.0
      %v530 = vmax.f32 %v493, 0.0
      %v531 = vmax.f32 %v495, 0.0
      %v532 = vmax.f32 %v498, 0.0
      %v533 = vmax.f32 %v500, 0.0
      %v534 = vpack.c.bf16 %v502, %v502
      %v535 = vpack.c.bf16 %v503, %v503
      %v536 = vpack.c.bf16 %v504, %v504
      %v537 = vpack.c.bf16 %v505, %v505
      %v538 = vpack.c.bf16 %v506, %v506
      %v539 = vpack.c.bf16 %v507, %v507
      %v540 = vpack.c.bf16 %v508, %v508
      %v541 = vpack.c.bf16 %v509, %v509
      %v542 = vpack.c.bf16 %v510, %v510
      %v543 = vpack.c.bf16 %v511, %v511
      %v544 = vpack.c.bf16 %v512, %v512
      %v545 = vpack.c.bf16 %v513, %v513
      %v546 = vpack.c.bf16 %v514, %v514
      %v547 = vpack.c.bf16 %v515, %v515
      %v548 = vpack.c.bf16 %v516, %v516
      %v549 = vpack.c.bf16 %v517, %v517
      %v550 = vpack.c.bf16 %v518, %v518
      %v551 = vpack.c.bf16 %v519, %v519
      %v552 = vpack.c.bf16 %v520, %v520
      %v553 = vpack.c.bf16 %v521, %v521
      %v554 = vpack.c.bf16 %v522, %v522
      %v555 = vpack.c.bf16 %v523, %v523
      %v556 = vpack.c.bf16 %v524, %v524
      %v557 = vpack.c.bf16 %v525, %v525
      %v558 = vpack.c.bf16 %v526, %v526
      %v559 = vpack.c.bf16 %v527, %v527
      %v560 = vpack.c.bf16 %v528, %v528
      %v561 = vpack.c.bf16 %v529, %v529
      %v562 = vpack.c.bf16 %v530, %v530
      %v563 = vpack.c.bf16 %v531, %v531
      %v564 = vpack.c.bf16 %v532, %v532
      %v565 = vpack.c.bf16 %v533, %v533
      %vm566 = vcmask 125952
      %567 = vst.msk [vmem:[%s223] sm:$0xf] %vm566, %v534
      %568 = vst.msk [vmem:[%s223 + $0x4] sm:$0xf] %vm566, %v535
      %569 = vst.msk [vmem:[%s223 + $0x8] sm:$0xf] %vm566, %v536
      %570 = vst.msk [vmem:[%s223 + $0xc] sm:$0xf] %vm566, %v537
      %571 = vst.msk [vmem:[%s223 + $0x10] sm:$0xf] %vm566, %v538
      %572 = vst.msk [vmem:[%s223 + $0x14] sm:$0xf] %vm566, %v539
      %573 = vst.msk [vmem:[%s223 + $0x18] sm:$0xf] %vm566, %v540
      %574 = vst.msk [vmem:[%s223 + $0x1c] sm:$0xf] %vm566, %v541
      %575 = vst.msk [vmem:[%s223 + $0x20] sm:$0xf] %vm566, %v542
      %576 = vst.msk [vmem:[%s223 + $0x24] sm:$0xf] %vm566, %v543
      %577 = vst.msk [vmem:[%s223 + $0x28] sm:$0xf] %vm566, %v544
      %578 = vst.msk [vmem:[%s223 + $0x2c] sm:$0xf] %vm566, %v545
      %579 = vst.msk [vmem:[%s223 + $0x30] sm:$0xf] %vm566, %v546
      %580 = vst.msk [vmem:[%s223 + $0x34] sm:$0xf] %vm566, %v547
      %581 = vst.msk [vmem:[%s223 + $0x38] sm:$0xf] %vm566, %v548
      %582 = vst.msk [vmem:[%s223 + $0x3c] sm:$0xf] %vm566, %v549
      %583 = vst.msk [vmem:[%s223 + $0x40] sm:$0xf] %vm566, %v550
      %584 = vst.msk [vmem:[%s223 + $0x44] sm:$0xf] %vm566, %v551
      %585 = vst.msk [vmem:[%s223 + $0x48] sm:$0xf] %vm566, %v552
      %586 = vst.msk [vmem:[%s223 + $0x4c] sm:$0xf] %vm566, %v553
      %587 = vst.msk [vmem:[%s223 + $0x50] sm:$0xf] %vm566, %v554
      %588 = vst.msk [vmem:[%s223 + $0x54] sm:$0xf] %vm566, %v555
      %589 = vst.msk [vmem:[%s223 + $0x58] sm:$0xf] %vm566, %v556
      %590 = vst.msk [vmem:[%s223 + $0x5c] sm:$0xf] %vm566, %v557
      %591 = vst.msk [vmem:[%s223 + $0x60] sm:$0xf] %vm566, %v558
      %592 = vst.msk [vmem:[%s223 + $0x64] sm:$0xf] %vm566, %v559
      %593 = vst.msk [vmem:[%s223 + $0x68] sm:$0xf] %vm566, %v560
      %594 = vst.msk [vmem:[%s223 + $0x6c] sm:$0xf] %vm566, %v561
      %595 = vst.msk [vmem:[%s223 + $0x70] sm:$0xf] %vm566, %v562
      %596 = vst.msk [vmem:[%s223 + $0x74] sm:$0xf] %vm566, %v563
      %597 = vst.msk [vmem:[%s223 + $0x78] sm:$0xf] %vm566, %v564
      %598 = vst.msk [vmem:[%s223 + $0x7c] sm:$0xf] %vm566, %v565
      %s599 = smul.u32 32, %s18
      %p600 = scmp.lt.s32.totalorder %s599, 63
      %s601 = scalar_select %p600, %s599, 63
      %p602 = scmp.lt.s32.totalorder %s19, 0
      %s603 = scalar_select %p602, %s19, 0
      %s604 = sadd.s32 %s603, %s601
      %s605 = smul.addr %s604, 4
      %s606 = scalar_lea.vmem %s3, %s605
      // Predicated region
      $region33: #{forward.6} parent=31 // pred_check
        %p607 = pneg %p124
      $region34: #{forward.6} parent=31 // pred_check_branch
        %609 = sbr.rel (%p607) target = $region36
      $region35: #{forward.6} parent=31 // pred_region
        %s610 = smul.u32 32, %s18
      $region36: #{forward.6} parent=31 // pred_fallthru
        _
    $region32: #{forward.6} parent=5 // pred_fallthru
      _
    %p611 = scmp.le.s32.totalorder 2, %s9
    // Predicated region
    $region37: #{forward.6} parent=5 // pred_check
      %p612 = pneg %p611
    $region38: #{forward.6} parent=5 // pred_check_branch
      %614 = sbr.rel (%p612) target = $region40
    $region39: #{forward.6} parent=5 // pred_region
      %s615 = ssub.s32 %s9, 2
      // Predicated region
      $region41: #{forward.6} parent=39 // pred_check
        %p616 = pneg %p130
      $region42: #{forward.6} parent=39 // pred_check_branch
        %618 = sbr.rel (%p616) target = $region44
      $region43: #{forward.6} parent=39 // pred_region
        %s619 = smul.u32 32, %s20
        %p620 = scmp.lt.s32.totalorder %s619, 63
        %s621 = scalar_select %p620, %s619, 63
        %p622 = scmp.lt.s32.totalorder %s21, 0
        %s623 = scalar_select %p622, %s21, 0
        %s624 = sadd.s32 %s623, %s621
        %s625 = smul.addr %s624, 4
        %s626 = scalar_lea.vmem %s3, %s625
      $region44: #{forward.6} parent=39 // pred_fallthru
        _
    $region40: #{forward.6} parent=5 // pred_fallthru
      _
  $region6: #{forward.6} parent=0 // loop_footer
    %s13 = sadd.s32 1, %s9
  $region7: #{forward.6} parent=0 // loop_footer_branch
    %8 = sbr.rel target = $region3
  $region8: #{forward.6} parent=0 // loop_exit
    _

// kernel: forward.7
$region0: #{forward.7}
  #allocation0 [shape = 'u32[]', space=smem, size = 0x4, offset = 0x4, fixed_abs, tag = 'smem constant byte address 0x4 - core index']
  #allocation1 [shape = 'u32[72,128]{1,0:T(1,128)}', space=vmem, size = 0x9000, scoped, tag = 'internal scratch']
  %s0 = inlined_call_operand.vmem [shape: bf16[128,144], index: 0, kind: input, shape index: {}]
  %s1 = inlined_call_operand.vmem [shape: bf16[144,32], index: 1, kind: input, shape index: {}]
  %s2 = inlined_call_operand.vmem [shape: f32[1,32], index: 2, kind: input, shape index: {}]
  %s3 = inlined_call_operand.vmem [shape: bf16[128,32], index: 3, kind: output, shape index: {}]
  %s4 = sld [smem:[#allocation0]]
  $region45: #{forward.7} parent=0
    _
  %s6 = ssub.s32 1, %s4
  %s7 = scalar_select 0, %s6, %s4
  loop: start=0, step=1, limit=4
  $region2: #{forward.7} parent=0 // loop_pre_header
    _
  $region3: #{forward.7} parent=0 // loop_header
    %s9 = sphi 0, %s13
    %p10 = scmp.ge.s32.totalorder %s9, 4
    %s16 = sphi 0, %s28
    %s17 = sphi 0, %s24
    %s18 = sphi 0, %s16
    %s19 = sphi 0, %s17
    %s20 = sphi 0, %s18
    %s21 = sphi 0, %s19
    %s31 = sphi 0, %s33
    %s34 = sphi 0, %s31
    %s35 = sphi 0, %s34
    %s51 = sphi 0, %s35
    %s57 = sphi 0, %s59
    %s60 = sphi 0, %s57
    %s61 = sphi 0, %s60
    %s77 = sphi 0, %s61
    %s83 = sphi 0, %s85
    %s86 = sphi 0, %s83
    %s87 = sphi 0, %s86
    %s103 = sphi 0, %s87
    %s111 = sphi 0, %s113
    %s114 = sphi 0, %s111
    %s115 = sphi 0, %s114
    %s131 = sphi 0, %s115
  $region4: #{forward.7} parent=0 // loop_header_branch
    %12 = sbr.rel (%p10) target = $region8
  $region5: #{forward.7} parent=0 // loop_body
    %s14 = ssub.s32 %s9, 1
    %s15 = ssub.s32 %s9, 2
    %s22 = sadd.s32 1, %s17
    %p23 = scmp.ge.s32.totalorder %s22, 1
    %s24 = scalar_select %p23, 0, %s22
    %s25 = sadd.s32 1, %s16
    %s26 = scalar_select %p23, %s25, %s16
    %p27 = scmp.ge.s32.totalorder %s26, 2
    %s28 = scalar_select %p27, 0, %s26
    %s29 = ssub.s32 %s16, %s28
    %p30 = scmp.eq.s32.totalorder %s29, 0
    %s32 = sadd.s32 %s31, 1
    %s33 = scalar_select %p30, %s31, %s32
    %p36 = pneg %p30
    %p37 = scmp.eq.s32.totalorder %s9, 1
    %p38 = por %p36, %p37
    %p39 = scmp.ne.s32.totalorder %s31, %s34
    %p40 = scmp.eq.s32.totalorder %s9, 0
    %p41 = por %p39, %p40
    %p42 = scmp.ne.s32.totalorder %s31, %s34
    %p43 = scmp.eq.s32.totalorder %s14, 1
    %p44 = por %p42, %p43
    %p45 = scmp.ne.s32.totalorder %s34, %s35
    %p46 = scmp.eq.s32.totalorder %s14, 0
    %p47 = por %p45, %p46
    %p48 = scmp.ne.s32.totalorder %s34, %s35
    %p49 = scmp.eq.s32.totalorder %s15, 1
    %p50 = por %p48, %p49
    %p52 = scmp.ne.s32.totalorder %s35, %s51
    %p53 = scmp.eq.s32.totalorder %s15, 0
    %p54 = por %p52, %p53
    %s55 = ssub.s32 %s17, %s24
    %p56 = scmp.eq.s32.totalorder %s55, 0
    %s58 = sadd.s32 %s57, 1
    %s59 = scalar_select %p56, %s57, %s58
    %p62 = pneg %p56
    %p63 = scmp.eq.s32.totalorder %s9, 1
    %p64 = por %p62, %p63
    %p65 = scmp.ne.s32.totalorder %s57, %s60
    %p66 = scmp.eq.s32.totalorder %s9, 0
    %p67 = por %p65, %p66
    %p68 = scmp.ne.s32.totalorder %s57, %s60
    %p69 = scmp.eq.s32.totalorder %s14, 1
    %p70 = por %p68, %p69
    %p71 = scmp.ne.s32.totalorder %s60, %s61
    %p72 = scmp.eq.s32.totalorder %s14, 0
    %p73 = por %p71, %p72
    %p74 = scmp.ne.s32.totalorder %s60, %s61
    %p75 = scmp.eq.s32.totalorder %s15, 1
    %p76 = por %p74, %p75
    %p78 = scmp.ne.s32.totalorder %s61, %s77
    %p79 = scmp.eq.s32.totalorder %s15, 0
    %p80 = por %p78, %p79
    %s81 = ssub.s32 %s17, %s24
    %p82 = scmp.eq.s32.totalorder %s81, 0
    %s84 = sadd.s32 %s83, 1
    %s85 = scalar_select %p82, %s83, %s84
    %p88 = pneg %p82
    %p89 = scmp.eq.s32.totalorder %s9, 1
    %p90 = por %p88, %p89
    %p91 = scmp.ne.s32.totalorder %s83, %s86
    %p92 = scmp.eq.s32.totalorder %s9, 0
    %p93 = por %p91, %p92
    %p94 = scmp.ne.s32.totalorder %s83, %s86
    %p95 = scmp.eq.s32.totalorder %s14, 1
    %p96 = por %p94, %p95
    %p97 = scmp.ne.s32.totalorder %s86, %s87
    %p98 = scmp.eq.s32.totalorder %s14, 0
    %p99 = por %p97, %p98
    %p100 = scmp.ne.s32.totalorder %s86, %s87
    %p101 = scmp.eq.s32.totalorder %s15, 1
    %p102 = por %p100, %p101
    %p104 = scmp.ne.s32.totalorder %s87, %s103
    %p105 = scmp.eq.s32.totalorder %s15, 0
    %p106 = por %p104, %p105
    %s107 = ssub.s32 %s16, %s28
    %s108 = ssub.s32 %s17, %s24
    %s109 = sor.u32 %s107, %s108
    %p110 = scmp.eq.s32.totalorder %s109, 0
    %s112 = sadd.s32 %s111, 1
    %s113 = scalar_select %p110, %s111, %s112
    %p116 = pneg %p110
    %p117 = scmp.eq.s32.totalorder %s9, 1
    %p118 = por %p116, %p117
    %p119 = scmp.ne.s32.totalorder %s111, %s114
    %p120 = scmp.eq.s32.totalorder %s9, 0
    %p121 = por %p119, %p120
    %p122 = scmp.ne.s32.totalorder %s111, %s114
    %p123 = scmp.eq.s32.totalorder %s14, 1
    %p124 = por %p122, %p123
    %p125 = scmp.ne.s32.totalorder %s114, %s115
    %p126 = scmp.eq.s32.totalorder %s14, 0
    %p127 = por %p125, %p126
    %p128 = scmp.ne.s32.totalorder %s114, %s115
    %p129 = scmp.eq.s32.totalorder %s15, 1
    %p130 = por %p128, %p129
    %p132 = scmp.ne.s32.totalorder %s115, %s131
    %p133 = scmp.eq.s32.totalorder %s15, 0
    %p134 = por %p132, %p133
    %p135 = scmp.le.s32.totalorder 1, %s9
    %p136 = scmp.lt.s32.totalorder %s9, 3
    %p137 = pnand %p135, %p136
    %p138 = pneg %p137
    // Predicated region
    $region9: #{forward.7} parent=5 // pred_check
      _
    $region10: #{forward.7} parent=5 // pred_check_branch
      %140 = sbr.rel (%p137) target = $region12
    $region11: #{forward.7} parent=5 // pred_region
      %s141 = ssub.s32 %s9, 1
      // Predicated region
      $region13: #{forward.7} parent=11 // pred_check
        %p142 = pneg %p73
      $region14: #{forward.7} parent=11 // pred_check_branch
        %144 = sbr.rel (%p142) target = $region16
      $region15: #{forward.7} parent=11 // pred_region
        %p145 = scmp.lt.s32.totalorder %s19, 0
        %s146 = scalar_select %p145, %s19, 0
        %s147 = smul.addr %s146, 4
        %s148 = scalar_lea.vmem %s1, %s147
      $region16: #{forward.7} parent=11 // pred_fallthru
        _
      // Predicated region
      $region17: #{forward.7} parent=11 // pred_check
        %p149 = pneg %p99
      $region18: #{forward.7} parent=11 // pred_check_branch
        %151 = sbr.rel (%p149) target = $region20
      $region19: #{forward.7} parent=11 // pred_region
        %p152 = scmp.lt.s32.totalorder %s19, 0
        %s153 = scalar_select %p152, %s19, 0
        %s154 = scalar_lea.vmem %s2, %s153
      $region20: #{forward.7} parent=11 // pred_fallthru
        _
    $region12: #{forward.7} parent=5 // pred_fallthru
      _
    %p155 = scmp.lt.s32.totalorder %s9, 2
    // Predicated region
    $region21: #{forward.7} parent=5 // pred_check
      %p156 = pneg %p155
    $region22: #{forward.7} parent=5 // pred_check_branch
      %158 = sbr.rel (%p156) target = $region24
    $region23: #{forward.7} parent=5 // pred_region
      // Predicated region
      $region25: #{forward.7} parent=23 // pred_check
        %p159 = pneg %p41
      $region26: #{forward.7} parent=23 // pred_check_branch
        %161 = sbr.rel (%p159) target = $region28
      $region27: #{forward.7} parent=23 // pred_region
        %s162 = smul.u32 8, %s16
        %p163 = scmp.lt.s32.totalorder %s162, 15
        %s164 = scalar_select %p163, %s162, 15
        %s165 = smul.addr %s164, 2
        %s166 = smul.addr %s165, 4
        %s167 = scalar_lea.vmem %s0, %s166
        %s168 = smul.u32 8, %s16
      $region28: #{forward.7} parent=23 // pred_fallthru
        _
    $region24: #{forward.7} parent=5 // pred_fallthru
      _
    %p169 = scmp.le.s32.totalorder 1, %s9
    %p170 = scmp.lt.s32.totalorder %s9, 3
    %p171 = pnand %p169, %p170
    %p172 = pneg %p171
    // Predicated region
    $region29: #{forward.7} parent=5 // pred_check
      _
    $region30: #{forward.7} parent=5 // pred_check_branch
      %174 = sbr.rel (%p171) target = $region32
    $region31: #{forward.7} parent=5 // pred_region
      %s175 = ssub.s32 %s9, 1
      %s176 = smul.u32 8, %s18
      %p177 = scmp.lt.s32.totalorder %s176, 15
      %s178 = scalar_select %p177, %s176, 15
      %s179 = smul.addr %s178, 2
      %s180 = smul.addr %s179, 4
      %s181 = scalar_lea.vmem %s0, %s180
      %p182 = pneg %p47
      %p183 = pneg %p44
      %p184 = scmp.lt.s32.totalorder %s19, 0
      %s185 = scalar_select %p184, %s19, 0
      %s186 = smul.addr %s185, 4
      %s187 = scalar_lea.vmem %s1, %s186
      %p188 = pneg %p73
      %p189 = pneg %p70
      %p190 = scmp.lt.s32.totalorder %s19, 0
      %s191 = scalar_select %p190, %s19, 0
      %s192 = scalar_lea.vmem %s2, %s191
      %p193 = pneg %p99
      %p194 = pneg %p96
      %p195 = pneg %p127
      %p196 = pneg %p124
      %s197 = smul.u32 8, %s18
      %p198 = scmp.lt.s32.totalorder %s197, 15
      %s199 = scalar_select %p198, %s197, 15
      %p200 = scmp.lt.s32.totalorder %s19, 0
      %s201 = scalar_select %p200, %s19, 0
      %s202 = sadd.s32 %s201, %s199
      %s203 = smul.addr %s202, 4
      %s204 = scalar_lea.vmem %s3, %s203
      %s205 = smul.u32 8, %s18
      %p206 = scmp.lt.s32.totalorder %s205, 15
      %s207 = scalar_select %p206, %s205, 15
      %s208 = smul.addr %s207, 2
      %s209 = smul.addr %s208, 4
      %s210 = scalar_lea.vmem %s0, %s209
      %s211 = smul.u32 8, %s18
      %p212 = scmp.lt.s32.totalorder %s19, 0
      %s213 = scalar_select %p212, %s19, 0
      %s214 = smul.addr %s213, 4
      %s215 = scalar_lea.vmem %s1, %s214
      %p216 = scmp.lt.s32.totalorder %s19, 0
      %s217 = scalar_select %p216, %s19, 0
      %s218 = scalar_lea.vmem %s2, %s217
      %s219 = smul.u32 8, %s18
      %p220 = scmp.lt.s32.totalorder %s219, 15
      %s221 = scalar_select %p220, %s219, 15
      %p222 = scmp.lt.s32.totalorder %s19, 0
      %s223 = scalar_select %p222, %s19, 0
      %s224 = sadd.s32 %s223, %s221
      %s225 = smul.addr %s224, 4
      %s226 = scalar_lea.vmem %s3, %s225
      %s227 = smul.u32 8, %s18
      %v229 = vld [vmem:[%s210] sm:$0xff]
      %v230 = vld [vmem:[%s210 + $0x8] sm:$0xff]
      %v231 = vld [vmem:[%s210 + $0x10] sm:$0xff]
      %v232 = vld [vmem:[%s210 + $0x18] sm:$0xff]
      %v233 = vld [vmem:[%s210 + $0x20] sm:$0xff]
      %v234 = vld [vmem:[%s210 + $0x28] sm:$0xff]
      %v235 = vld [vmem:[%s210 + $0x30] sm:$0xff]
      %v236 = vld [vmem:[%s210 + $0x38] sm:$0xff]
      %v237 = vld [vmem:[%s215] sm:$0xf]
      %v238 = vld [vmem:[%s215 + $0x4] sm:$0xf]
      %v239 = vld [vmem:[%s215 + $0x8] sm:$0xf]
      %v240 = vld [vmem:[%s215 + $0xc] sm:$0xf]
      %v241 = vld [vmem:[%s215 + $0x10] sm:$0xf]
      %v242 = vld [vmem:[%s215 + $0x14] sm:$0xf]
      %v243 = vld [vmem:[%s215 + $0x18] sm:$0xf]
      %v244 = vld [vmem:[%s215 + $0x1c] sm:$0xf]
      %v245 = vld [vmem:[%s215 + $0x20] sm:$0xf]
      %v246 = vld [vmem:[%s215 + $0x24] sm:$0xf]
      %v247 = vld [vmem:[%s215 + $0x28] sm:$0xf]
      %v248 = vld [vmem:[%s215 + $0x2c] sm:$0xf]
      %v249 = vld [vmem:[%s215 + $0x30] sm:$0xf]
      %v250 = vld [vmem:[%s215 + $0x34] sm:$0xf]
      %v251 = vld [vmem:[%s215 + $0x38] sm:$0xf]
      %v252 = vld [vmem:[%s215 + $0x3c] sm:$0xf]
      %v253 = vld [vmem:[%s215 + $0x40] sm:$0xf]
      %v254 = vld [vmem:[%s215 + $0x44] sm:$0xf]
      %v255 = vld [vmem:[%s218] sm:$0x1]
      %v257 = vperm.slane %v255, 0
      %v267 = vunpack.c.l.b16 %v229
      %v268 = vunpack.c.h.b16 %v229
      %v269 = vunpack.c.l.b16 %v230
      %v270 = vunpack.c.h.b16 %v230
      %v271 = vunpack.c.l.b16 %v231
      %v272 = vunpack.c.h.b16 %v231
      %v273 = vunpack.c.l.b16 %v232
      %v274 = vunpack.c.h.b16 %v232
      %v275 = vunpack.c.l.b16 %v233
      %v276 = vunpack.c.h.b16 %v233
      %v277 = vunpack.c.l.b16 %v234
      %v278 = vunpack.c.h.b16 %v234
      %v279 = vunpack.c.l.b16 %v235
      %v280 = vunpack.c.h.b16 %v235
      %v281 = vunpack.c.l.b16 %v236
      %v282 = vunpack.c.h.b16 %v236
      %v283 = vpack.c.b16 %v269, %v267
      %v284 = vpack.c.b16 %v270, %v268
      %v285 = vpack.c.b16 %v273, %v271
      %v286 = vpack.c.b16 %v274, %v272
      %v287 = vpack.c.b16 %v277, %v275
      %v288 = vpack.c.b16 %v278, %v276
      %v289 = vpack.c.b16 %v281, %v279
      %v290 = vpack.c.b16 %v282, %v280
      %v313 = vunpack.c.l.b16 %v237
      %v314 = vunpack.c.l.b16 %v238
      %v315 = vunpack.c.l.b16 %v239
      %v316 = vunpack.c.l.b16 %v240
      %v317 = vunpack.c.l.b16 %v241
      %v318 = vunpack.c.l.b16 %v242
      %v319 = vunpack.c.l.b16 %v243
      %v320 = vunpack.c.l.b16 %v244
      %v321 = vunpack.c.l.b16 %v245
      %v322 = vunpack.c.l.b16 %v246
      %v323 = vunpack.c.l.b16 %v247
      %v324 = vunpack.c.l.b16 %v248
      %v325 = vunpack.c.l.b16 %v249
      %v326 = vunpack.c.l.b16 %v250
      %v327 = vunpack.c.l.b16 %v251
      %v328 = vunpack.c.l.b16 %v252
      %v329 = vunpack.c.l.b16 %v253
      %v330 = vunpack.c.l.b16 %v254
      %v331 = vpack.c.b16 %v314, %v313
      %v332 = vpack.c.b16 %v316, %v315
      %v333 = vpack.c.b16 %v318, %v317
      %v334 = vpack.c.b16 %v320, %v319
      %v335 = vpack.c.b16 %v322, %v321
      %v336 = vpack.c.b16 %v324, %v323
      %v337 = vpack.c.b16 %v326, %v325
      %v338 = vpack.c.b16 %v328, %v327
      %v339 = vpack.c.b16 %v330, %v329
      %vm349 = vcmask 130048
      %v351 = vsel %vm349, %v284, 0
      %v354 = vsel %vm349, %v286, 0
      %v357 = vsel %vm349, %v288, 0
      %v360 = vsel %vm349, %v290, 0
      %362 = vmatpush.bf16.msra.mxu0 %v338
      %363 = vmatpush.bf16.msra.mxu0 %v337
      %364 = vmatpush.bf16.msra.mxu0 %v336
      %365 = vmatpush.bf16.msra.mxu0 %v335
      %366 = vmatpush.bf16.msra.mxu0 %v334
      %367 = vmatpush.bf16.msra.mxu0 %v333
      %368 = vmatpush.bf16.msra.mxu0 %v332
      %369 = vmatpush.bf16.msra.mxu0 %v331
      %370 = vmatmul.bf16.gmra.mxu0 %v283
      %v371 = vpop.f32.mrf.mxu0
      %v372 = vadd.f32 %v257, %v371
      %v373 = vpop.f32.mrf.mxu0
      %v374 = vadd.f32 %v257, %v373
      %375 = vmatmul.bf16.gmra.mxu0 %v285
      %v376 = vpop.f32.mrf.mxu0
      %v377 = vadd.f32 %v257, %v376
      %v378 = vpop.f32.mrf.mxu0
      %v379 = vadd.f32 %v257, %v378
      %380 = vmatmul.bf16.gmra.mxu0 %v287
      %v381 = vpop.f32.mrf.mxu0
      %v382 = vadd.f32 %v257, %v381
      %v383 = vpop.f32.mrf.mxu0
      %v384 = vadd.f32 %v257, %v383
      %385 = vmatmul.bf16.gmra.mxu0 %v289
      %v386 = vpop.f32.mrf.mxu0
      %v387 = vadd.f32 %v257, %v386
      %v388 = vpop.f32.mrf.mxu0
      %v389 = vadd.f32 %v257, %v388
      %390 = vdwg.mxu0
      %391 = vmatpush.bf16.msra.mxu0 0
      %392 = vmatpush.bf16.msra.mxu0 0
      %393 = vmatpush.bf16.msra.mxu0 0
      %394 = vmatpush.bf16.msra.mxu0 0
      %395 = vmatpush.bf16.msra.mxu0 0
      %396 = vmatpush.bf16.msra.mxu0 0
      %397 = vmatpush.bf16.msra.mxu0 0
      %398 = vmatpush.bf16.msra.mxu0 %v339
      %399 = vmatmul.bf16.gmra.mxu0 %v351
      %v400 = vpop.f32.mrf.mxu0
      %v401 = vadd.f32 %v372, %v400
      %v402 = vpop.f32.mrf.mxu0
      %v403 = vadd.f32 %v374, %v402
      %404 = vmatmul.bf16.gmra.mxu0 %v354
      %v405 = vpop.f32.mrf.mxu0
      %v406 = vadd.f32 %v377, %v405
      %v407 = vpop.f32.mrf.mxu0
      %v408 = vadd.f32 %v379, %v407
      %409 = vmatmul.bf16.gmra.mxu0 %v357
      %v410 = vpop.f32.mrf.mxu0
      %v411 = vadd.f32 %v382, %v410
      %v412 = vpop.f32.mrf.mxu0
      %v413 = vadd.f32 %v384, %v412
      %414 = vmatmul.bf16.gmra.mxu0 %v360
      %v415 = vpop.f32.mrf.mxu0
      %v416 = vadd.f32 %v387, %v415
      %v417 = vpop.f32.mrf.mxu0
      %v418 = vadd.f32 %v389, %v417
      %419 = vdwg.mxu0
      %v420 = vmax.f32 %v401, 0.0
      %v421 = vmax.f32 %v403, 0.0
      %v422 = vmax.f32 %v406, 0.0
      %v423 = vmax.f32 %v408, 0.0
      %v424 = vmax.f32 %v411, 0.0
      %v425 = vmax.f32 %v413, 0.0
      %v426 = vmax.f32 %v416, 0.0
      %v427 = vmax.f32 %v418, 0.0
      %v428 = vpack.c.bf16 %v420, %v420
      %v429 = vpack.c.bf16 %v421, %v421
      %v430 = vpack.c.bf16 %v422, %v422
      %v431 = vpack.c.bf16 %v423, %v423
      %v432 = vpack.c.bf16 %v424, %v424
      %v433 = vpack.c.bf16 %v425, %v425
      %v434 = vpack.c.bf16 %v426, %v426
      %v435 = vpack.c.bf16 %v427, %v427
      %vm436 = vcmask 257024
      %437 = vst.msk [vmem:[%s226] sm:$0xf] %vm436, %v428
      %438 = vst.msk [vmem:[%s226 + $0x4] sm:$0xf] %vm436, %v429
      %439 = vst.msk [vmem:[%s226 + $0x8] sm:$0xf] %vm436, %v430
      %440 = vst.msk [vmem:[%s226 + $0xc] sm:$0xf] %vm436, %v431
      %441 = vst.msk [vmem:[%s226 + $0x10] sm:$0xf] %vm436, %v432
      %442 = vst.msk [vmem:[%s226 + $0x14] sm:$0xf] %vm436, %v433
      %443 = vst.msk [vmem:[%s226 + $0x18] sm:$0xf] %vm436, %v434
      %444 = vst.msk [vmem:[%s226 + $0x1c] sm:$0xf] %vm436, %v435
      %s445 = smul.u32 8, %s18
      %p446 = scmp.lt.s32.totalorder %s445, 15
      %s447 = scalar_select %p446, %s445, 15
      %p448 = scmp.lt.s32.totalorder %s19, 0
      %s449 = scalar_select %p448, %s19, 0
      %s450 = sadd.s32 %s449, %s447
      %s451 = smul.addr %s450, 4
      %s452 = scalar_lea.vmem %s3, %s451
      // Predicated region
      $region33: #{forward.7} parent=31 // pred_check
        %p453 = pneg %p124
      $region34: #{forward.7} parent=31 // pred_check_branch
        %455 = sbr.rel (%p453) target = $region36
      $region35: #{forward.7} parent=31 // pred_region
        %s456 = smul.u32 8, %s18
      $region36: #{forward.7} parent=31 // pred_fallthru
        _
    $region32: #{forward.7} parent=5 // pred_fallthru
      _
    %p457 = scmp.le.s32.totalorder 2, %s9
    // Predicated region
    $region37: #{forward.7} parent=5 // pred_check
      %p458 = pneg %p457
    $region38: #{forward.7} parent=5 // pred_check_branch
      %460 = sbr.rel (%p458) target = $region40
    $region39: #{forward.7} parent=5 // pred_region
      %s461 = ssub.s32 %s9, 2
      // Predicated region
      $region41: #{forward.7} parent=39 // pred_check
        %p462 = pneg %p130
      $region42: #{forward.7} parent=39 // pred_check_branch
        %464 = sbr.rel (%p462) target = $region44
      $region43: #{forward.7} parent=39 // pred_region
        %s465 = smul.u32 8, %s20
        %p466 = scmp.lt.s32.totalorder %s465, 15
        %s467 = scalar_select %p466, %s465, 15
        %p468 = scmp.lt.s32.totalorder %s21, 0
        %s469 = scalar_select %p468, %s21, 0
        %s470 = sadd.s32 %s469, %s467
        %s471 = smul.addr %s470, 4
        %s472 = scalar_lea.vmem %s3, %s471
      $region44: #{forward.7} parent=39 // pred_fallthru
        _
    $region40: #{forward.7} parent=5 // pred_fallthru
      _
  $region6: #{forward.7} parent=0 // loop_footer
    %s13 = sadd.s32 1, %s9
  $region7: #{forward.7} parent=0 // loop_footer_branch
    %8 = sbr.rel target = $region3
  $region8: #{forward.7} parent=0 // loop_exit
    _

// kernel: forward.8
$region0: #{forward.8}
  #allocation0 [shape = 'u32[]', space=smem, size = 0x4, offset = 0x4, fixed_abs, tag = 'smem constant byte address 0x4 - core index']
  #allocation1 [shape = 'u32[72,128]{1,0:T(1,128)}', space=vmem, size = 0x9000, scoped, tag = 'internal scratch']
  %s0 = inlined_call_operand.vmem [shape: bf16[128,32], index: 0, kind: input, shape index: {}]
  %s1 = inlined_call_operand.vmem [shape: bf16[32,128], index: 1, kind: input, shape index: {}]
  %s2 = inlined_call_operand.vmem [shape: f32[1,128], index: 2, kind: input, shape index: {}]
  %s3 = inlined_call_operand.vmem [shape: bf16[128,128], index: 3, kind: output, shape index: {}]
  %s4 = sld [smem:[#allocation0]]
  $region45: #{forward.8} parent=0
    _
  %s6 = ssub.s32 1, %s4
  %s7 = scalar_select 0, %s6, %s4
  loop: start=0, step=1, limit=4
  $region2: #{forward.8} parent=0 // loop_pre_header
    _
  $region3: #{forward.8} parent=0 // loop_header
    %s9 = sphi 0, %s13
    %p10 = scmp.ge.s32.totalorder %s9, 4
    %s16 = sphi 0, %s28
    %s17 = sphi 0, %s24
    %s18 = sphi 0, %s16
    %s19 = sphi 0, %s17
    %s20 = sphi 0, %s18
    %s21 = sphi 0, %s19
    %s31 = sphi 0, %s33
    %s34 = sphi 0, %s31
    %s35 = sphi 0, %s34
    %s51 = sphi 0, %s35
    %s57 = sphi 0, %s59
    %s60 = sphi 0, %s57
    %s61 = sphi 0, %s60
    %s77 = sphi 0, %s61
    %s83 = sphi 0, %s85
    %s86 = sphi 0, %s83
    %s87 = sphi 0, %s86
    %s103 = sphi 0, %s87
    %s111 = sphi 0, %s113
    %s114 = sphi 0, %s111
    %s115 = sphi 0, %s114
    %s131 = sphi 0, %s115
  $region4: #{forward.8} parent=0 // loop_header_branch
    %12 = sbr.rel (%p10) target = $region8
  $region5: #{forward.8} parent=0 // loop_body
    %s14 = ssub.s32 %s9, 1
    %s15 = ssub.s32 %s9, 2
    %s22 = sadd.s32 1, %s17
    %p23 = scmp.ge.s32.totalorder %s22, 1
    %s24 = scalar_select %p23, 0, %s22
    %s25 = sadd.s32 1, %s16
    %s26 = scalar_select %p23, %s25, %s16
    %p27 = scmp.ge.s32.totalorder %s26, 2
    %s28 = scalar_select %p27, 0, %s26
    %s29 = ssub.s32 %s16, %s28
    %p30 = scmp.eq.s32.totalorder %s29, 0
    %s32 = sadd.s32 %s31, 1
    %s33 = scalar_select %p30, %s31, %s32
    %p36 = pneg %p30
    %p37 = scmp.eq.s32.totalorder %s9, 1
    %p38 = por %p36, %p37
    %p39 = scmp.ne.s32.totalorder %s31, %s34
    %p40 = scmp.eq.s32.totalorder %s9, 0
    %p41 = por %p39, %p40
    %p42 = scmp.ne.s32.totalorder %s31, %s34
    %p43 = scmp.eq.s32.totalorder %s14, 1
    %p44 = por %p42, %p43
    %p45 = scmp.ne.s32.totalorder %s34, %s35
    %p46 = scmp.eq.s32.totalorder %s14, 0
    %p47 = por %p45, %p46
    %p48 = scmp.ne.s32.totalorder %s34, %s35
    %p49 = scmp.eq.s32.totalorder %s15, 1
    %p50 = por %p48, %p49
    %p52 = scmp.ne.s32.totalorder %s35, %s51
    %p53 = scmp.eq.s32.totalorder %s15, 0
    %p54 = por %p52, %p53
    %s55 = ssub.s32 %s17, %s24
    %p56 = scmp.eq.s32.totalorder %s55, 0
    %s58 = sadd.s32 %s57, 1
    %s59 = scalar_select %p56, %s57, %s58
    %p62 = pneg %p56
    %p63 = scmp.eq.s32.totalorder %s9, 1
    %p64 = por %p62, %p63
    %p65 = scmp.ne.s32.totalorder %s57, %s60
    %p66 = scmp.eq.s32.totalorder %s9, 0
    %p67 = por %p65, %p66
    %p68 = scmp.ne.s32.totalorder %s57, %s60
    %p69 = scmp.eq.s32.totalorder %s14, 1
    %p70 = por %p68, %p69
    %p71 = scmp.ne.s32.totalorder %s60, %s61
    %p72 = scmp.eq.s32.totalorder %s14, 0
    %p73 = por %p71, %p72
    %p74 = scmp.ne.s32.totalorder %s60, %s61
    %p75 = scmp.eq.s32.totalorder %s15, 1
    %p76 = por %p74, %p75
    %p78 = scmp.ne.s32.totalorder %s61, %s77
    %p79 = scmp.eq.s32.totalorder %s15, 0
    %p80 = por %p78, %p79
    %s81 = ssub.s32 %s17, %s24
    %p82 = scmp.eq.s32.totalorder %s81, 0
    %s84 = sadd.s32 %s83, 1
    %s85 = scalar_select %p82, %s83, %s84
    %p88 = pneg %p82
    %p89 = scmp.eq.s32.totalorder %s9, 1
    %p90 = por %p88, %p89
    %p91 = scmp.ne.s32.totalorder %s83, %s86
    %p92 = scmp.eq.s32.totalorder %s9, 0
    %p93 = por %p91, %p92
    %p94 = scmp.ne.s32.totalorder %s83, %s86
    %p95 = scmp.eq.s32.totalorder %s14, 1
    %p96 = por %p94, %p95
    %p97 = scmp.ne.s32.totalorder %s86, %s87
    %p98 = scmp.eq.s32.totalorder %s14, 0
    %p99 = por %p97, %p98
    %p100 = scmp.ne.s32.totalorder %s86, %s87
    %p101 = scmp.eq.s32.totalorder %s15, 1
    %p102 = por %p100, %p101
    %p104 = scmp.ne.s32.totalorder %s87, %s103
    %p105 = scmp.eq.s32.totalorder %s15, 0
    %p106 = por %p104, %p105
    %s107 = ssub.s32 %s16, %s28
    %s108 = ssub.s32 %s17, %s24
    %s109 = sor.u32 %s107, %s108
    %p110 = scmp.eq.s32.totalorder %s109, 0
    %s112 = sadd.s32 %s111, 1
    %s113 = scalar_select %p110, %s111, %s112
    %p116 = pneg %p110
    %p117 = scmp.eq.s32.totalorder %s9, 1
    %p118 = por %p116, %p117
    %p119 = scmp.ne.s32.totalorder %s111, %s114
    %p120 = scmp.eq.s32.totalorder %s9, 0
    %p121 = por %p119, %p120
    %p122 = scmp.ne.s32.totalorder %s111, %s114
    %p123 = scmp.eq.s32.totalorder %s14, 1
    %p124 = por %p122, %p123
    %p125 = scmp.ne.s32.totalorder %s114, %s115
    %p126 = scmp.eq.s32.totalorder %s14, 0
    %p127 = por %p125, %p126
    %p128 = scmp.ne.s32.totalorder %s114, %s115
    %p129 = scmp.eq.s32.totalorder %s15, 1
    %p130 = por %p128, %p129
    %p132 = scmp.ne.s32.totalorder %s115, %s131
    %p133 = scmp.eq.s32.totalorder %s15, 0
    %p134 = por %p132, %p133
    %p135 = scmp.le.s32.totalorder 1, %s9
    %p136 = scmp.lt.s32.totalorder %s9, 3
    %p137 = pnand %p135, %p136
    %p138 = pneg %p137
    // Predicated region
    $region9: #{forward.8} parent=5 // pred_check
      _
    $region10: #{forward.8} parent=5 // pred_check_branch
      %140 = sbr.rel (%p137) target = $region12
    $region11: #{forward.8} parent=5 // pred_region
      %s141 = ssub.s32 %s9, 1
      // Predicated region
      $region13: #{forward.8} parent=11 // pred_check
        %p142 = pneg %p73
      $region14: #{forward.8} parent=11 // pred_check_branch
        %144 = sbr.rel (%p142) target = $region16
      $region15: #{forward.8} parent=11 // pred_region
        %p145 = scmp.lt.s32.totalorder %s19, 0
        %s146 = scalar_select %p145, %s19, 0
        %s147 = smul.addr %s146, 4
        %s148 = scalar_lea.vmem %s1, %s147
      $region16: #{forward.8} parent=11 // pred_fallthru
        _
      // Predicated region
      $region17: #{forward.8} parent=11 // pred_check
        %p149 = pneg %p99
      $region18: #{forward.8} parent=11 // pred_check_branch
        %151 = sbr.rel (%p149) target = $region20
      $region19: #{forward.8} parent=11 // pred_region
        %p152 = scmp.lt.s32.totalorder %s19, 0
        %s153 = scalar_select %p152, %s19, 0
        %s154 = scalar_lea.vmem %s2, %s153
      $region20: #{forward.8} parent=11 // pred_fallthru
        _
    $region12: #{forward.8} parent=5 // pred_fallthru
      _
    %p155 = scmp.lt.s32.totalorder %s9, 2
    // Predicated region
    $region21: #{forward.8} parent=5 // pred_check
      %p156 = pneg %p155
    $region22: #{forward.8} parent=5 // pred_check_branch
      %158 = sbr.rel (%p156) target = $region24
    $region23: #{forward.8} parent=5 // pred_region
      // Predicated region
      $region25: #{forward.8} parent=23 // pred_check
        %p159 = pneg %p41
      $region26: #{forward.8} parent=23 // pred_check_branch
        %161 = sbr.rel (%p159) target = $region28
      $region27: #{forward.8} parent=23 // pred_region
        %s162 = smul.u32 8, %s16
        %p163 = scmp.lt.s32.totalorder %s162, 15
        %s164 = scalar_select %p163, %s162, 15
        %s165 = smul.addr %s164, 4
        %s166 = scalar_lea.vmem %s0, %s165
        %s167 = smul.u32 8, %s16
      $region28: #{forward.8} parent=23 // pred_fallthru
        _
    $region24: #{forward.8} parent=5 // pred_fallthru
      _
    %p168 = scmp.le.s32.totalorder 1, %s9
    %p169 = scmp.lt.s32.totalorder %s9, 3
    %p170 = pnand %p168, %p169
    %p171 = pneg %p170
    // Predicated region
    $region29: #{forward.8} parent=5 // pred_check
      _
    $region30: #{forward.8} parent=5 // pred_check_branch
      %173 = sbr.rel (%p170) target = $region32
    $region31: #{forward.8} parent=5 // pred_region
      %s174 = ssub.s32 %s9, 1
      %s175 = smul.u32 8, %s18
      %p176 = scmp.lt.s32.totalorder %s175, 15
      %s177 = scalar_select %p176, %s175, 15
      %s178 = smul.addr %s177, 4
      %s179 = scalar_lea.vmem %s0, %s178
      %p180 = pneg %p47
      %p181 = pneg %p44
      %p182 = scmp.lt.s32.totalorder %s19, 0
      %s183 = scalar_select %p182, %s19, 0
      %s184 = smul.addr %s183, 4
      %s185 = scalar_lea.vmem %s1, %s184
      %p186 = pneg %p73
      %p187 = pneg %p70
      %p188 = scmp.lt.s32.totalorder %s19, 0
      %s189 = scalar_select %p188, %s19, 0
      %s190 = scalar_lea.vmem %s2, %s189
      %p191 = pneg %p99
      %p192 = pneg %p96
      %p193 = pneg %p127
      %p194 = pneg %p124
      %s195 = smul.u32 8, %s18
      %p196 = scmp.lt.s32.totalorder %s195, 15
      %s197 = scalar_select %p196, %s195, 15
      %p198 = scmp.lt.s32.totalorder %s19, 0
      %s199 = scalar_select %p198, %s19, 0
      %s200 = sadd.s32 %s199, %s197
      %s201 = smul.addr %s200, 4
      %s202 = scalar_lea.vmem %s3, %s201
      %s203 = smul.u32 8, %s18
      %p204 = scmp.lt.s32.totalorder %s203, 15
      %s205 = scalar_select %p204, %s203, 15
      %s206 = smul.addr %s205, 4
      %s207 = scalar_lea.vmem %s0, %s206
      %s208 = smul.u32 8, %s18
      %p209 = scmp.lt.s32.totalorder %s19, 0
      %s210 = scalar_select %p209, %s19, 0
      %s211 = smul.addr %s210, 4
      %s212 = scalar_lea.vmem %s1, %s211
      %p213 = scmp.lt.s32.totalorder %s19, 0
      %s214 = scalar_select %p213, %s19, 0
      %s215 = scalar_lea.vmem %s2, %s214
      %s216 = smul.u32 8, %s18
      %p217 = scmp.lt.s32.totalorder %s216, 15
      %s218 = scalar_select %p217, %s216, 15
      %p219 = scmp.lt.s32.totalorder %s19, 0
      %s220 = scalar_select %p219, %s19, 0
      %s221 = sadd.s32 %s220, %s218
      %s222 = smul.addr %s221, 4
      %s223 = scalar_lea.vmem %s3, %s222
      %s224 = smul.u32 8, %s18
      %v226 = vld [vmem:[%s207] sm:$0xf]
      %v227 = vld [vmem:[%s207 + $0x4] sm:$0xf]
      %v228 = vld [vmem:[%s207 + $0x8] sm:$0xf]
      %v229 = vld [vmem:[%s207 + $0xc] sm:$0xf]
      %v230 = vld [vmem:[%s207 + $0x10] sm:$0xf]
      %v231 = vld [vmem:[%s207 + $0x14] sm:$0xf]
      %v232 = vld [vmem:[%s207 + $0x18] sm:$0xf]
      %v233 = vld [vmem:[%s207 + $0x1c] sm:$0xf]
      %v234 = vld [vmem:[%s212] sm:$0xf]
      %v235 = vld [vmem:[%s212 + $0x4] sm:$0xf]
      %v236 = vld [vmem:[%s212 + $0x8] sm:$0xf]
      %v237 = vld [vmem:[%s212 + $0xc] sm:$0xf]
      %v238 = vld [vmem:[%s215] sm:$0x1]
      %v240 = vperm.slane %v238, 0
      %v250 = vunpack.c.l.b16 %v226
      %v251 = vunpack.c.l.b16 %v227
      %v252 = vunpack.c.l.b16 %v228
      %v253 = vunpack.c.l.b16 %v229
      %v254 = vunpack.c.l.b16 %v230
      %v255 = vunpack.c.l.b16 %v231
      %v256 = vunpack.c.l.b16 %v232
      %v257 = vunpack.c.l.b16 %v233
      %v258 = vpack.c.b16 %v251, %v250
      %v259 = vpack.c.b16 %v253, %v252
      %v260 = vpack.c.b16 %v255, %v254
      %v261 = vpack.c.b16 %v257, %v256
      %v266 = vunpack.c.l.b16 %v234
      %v267 = vunpack.c.l.b16 %v235
      %v268 = vunpack.c.l.b16 %v236
      %v269 = vunpack.c.l.b16 %v237
      %v270 = vpack.c.b16 %v267, %v266
      %v271 = vpack.c.b16 %v269, %v268
      %vm274 = vcmask 261120
      %v276 = vsel %vm274, %v258, 0
      %v279 = vsel %vm274, %v259, 0
      %v282 = vsel %vm274, %v260, 0
      %v285 = vsel %vm274, %v261, 0
      %287 = vmatpush.bf16.msra.mxu0 0
      %288 = vmatpush.bf16.msra.mxu0 0
      %289 = vmatpush.bf16.msra.mxu0 0
      %290 = vmatpush.bf16.msra.mxu0 0
      %291 = vmatpush.bf16.msra.mxu0 0
      %292 = vmatpush.bf16.msra.mxu0 0
      %293 = vmatpush.bf16.msra.mxu0 %v271
      %294 = vmatpush.bf16.msra.mxu0 %v270
      %295 = vmatmul.bf16.gmra.mxu0 %v276
      %v296 = vpop.f32.mrf.mxu0
      %v297 = vadd.f32 %v240, %v296
      %v298 = vpop.f32.mrf.mxu0
      %v299 = vadd.f32 %v240, %v298
      %300 = vmatmul.bf16.gmra.mxu0 %v279
      %v301 = vpop.f32.mrf.mxu0
      %v302 = vadd.f32 %v240, %v301
      %v303 = vpop.f32.mrf.mxu0
      %v304 = vadd.f32 %v240, %v303
      %305 = vmatmul.bf16.gmra.mxu0 %v282
      %v306 = vpop.f32.mrf.mxu0
      %v307 = vadd.f32 %v240, %v306
      %v308 = vpop.f32.mrf.mxu0
      %v309 = vadd.f32 %v240, %v308
      %310 = vmatmul.bf16.gmra.mxu0 %v285
      %v311 = vpop.f32.mrf.mxu0
      %v312 = vadd.f32 %v240, %v311
      %v313 = vpop.f32.mrf.mxu0
      %v314 = vadd.f32 %v240, %v313
      %315 = vdwg.mxu0
      %v316 = vpack.c.bf16 %v297, %v297
      %v317 = vpack.c.bf16 %v299, %v299
      %v318 = vpack.c.bf16 %v302, %v302
      %v319 = vpack.c.bf16 %v304, %v304
      %v320 = vpack.c.bf16 %v307, %v307
      %v321 = vpack.c.bf16 %v309, %v309
      %v322 = vpack.c.bf16 %v312, %v312
      %v323 = vpack.c.bf16 %v314, %v314
      %324 = vst [vmem:[%s223] sm:$0xf] %v316
      %325 = vst [vmem:[%s223 + $0x4] sm:$0xf] %v317
      %326 = vst [vmem:[%s223 + $0x8] sm:$0xf] %v318
      %327 = vst [vmem:[%s223 + $0xc] sm:$0xf] %v319
      %328 = vst [vmem:[%s223 + $0x10] sm:$0xf] %v320
      %329 = vst [vmem:[%s223 + $0x14] sm:$0xf] %v321
      %330 = vst [vmem:[%s223 + $0x18] sm:$0xf] %v322
      %331 = vst [vmem:[%s223 + $0x1c] sm:$0xf] %v323
      %s332 = smul.u32 8, %s18
      %p333 = scmp.lt.s32.totalorder %s332, 15
      %s334 = scalar_select %p333, %s332, 15
      %p335 = scmp.lt.s32.totalorder %s19, 0
      %s336 = scalar_select %p335, %s19, 0
      %s337 = sadd.s32 %s336, %s334
      %s338 = smul.addr %s337, 4
      %s339 = scalar_lea.vmem %s3, %s338
      // Predicated region
      $region33: #{forward.8} parent=31 // pred_check
        %p340 = pneg %p124
      $region34: #{forward.8} parent=31 // pred_check_branch
        %342 = sbr.rel (%p340) target = $region36
      $region35: #{forward.8} parent=31 // pred_region
        %s343 = smul.u32 8, %s18
      $region36: #{forward.8} parent=31 // pred_fallthru
        _
    $region32: #{forward.8} parent=5 // pred_fallthru
      _
    %p344 = scmp.le.s32.totalorder 2, %s9
    // Predicated region
    $region37: #{forward.8} parent=5 // pred_check
      %p345 = pneg %p344
    $region38: #{forward.8} parent=5 // pred_check_branch
      %347 = sbr.rel (%p345) target = $region40
    $region39: #{forward.8} parent=5 // pred_region
      %s348 = ssub.s32 %s9, 2
      // Predicated region
      $region41: #{forward.8} parent=39 // pred_check
        %p349 = pneg %p130
      $region42: #{forward.8} parent=39 // pred_check_branch
        %351 = sbr.rel (%p349) target = $region44
      $region43: #{forward.8} parent=39 // pred_region
        %s352 = smul.u32 8, %s20
        %p353 = scmp.lt.s32.totalorder %s352, 15
        %s354 = scalar_select %p353, %s352, 15
        %p355 = scmp.lt.s32.totalorder %s21, 0
        %s356 = scalar_select %p355, %s21, 0
        %s357 = sadd.s32 %s356, %s354
        %s358 = smul.addr %s357, 4
        %s359 = scalar_lea.vmem %s3, %s358
      $region44: #{forward.8} parent=39 // pred_fallthru
        _
    $region40: #{forward.8} parent=5 // pred_fallthru
      _
  $region6: #{forward.8} parent=0 // loop_footer
    %s13 = sadd.s32 1, %s9
  $region7: #{forward.8} parent=0 // loop_footer_branch
    %8 = sbr.rel target = $region3
  $region8: #{forward.8} parent=0 // loop_exit
    _

// kernel: forward.11
$region0: #{forward.11}
  #allocation0 [shape = 'u32[]', space=smem, size = 0x4, offset = 0x4, fixed_abs, tag = 'smem constant byte address 0x4 - core index']
  #allocation1 [shape = 'u32[72,128]{1,0:T(1,128)}', space=vmem, size = 0x9000, scoped, tag = 'internal scratch']
  %s0 = inlined_call_operand.vmem [shape: bf16[2,128], index: 0, kind: input, shape index: {}]
  %s1 = inlined_call_operand.vmem [shape: f32[1,128], index: 1, kind: input, shape index: {}]
  %s2 = inlined_call_operand.vmem [shape: f32[1,128], index: 2, kind: input, shape index: {}]
  %s3 = inlined_call_operand.vmem [shape: bf16[128,3], index: 3, kind: input, shape index: {}]
  %s4 = inlined_call_operand.vmem [shape: f32[1,3], index: 4, kind: input, shape index: {}]
  %s5 = inlined_call_operand.hbm [shape: f32[2,3], index: 5, kind: output, shape index: {}]
  %s6 = sld [smem:[#allocation0]]
  $region30: #{forward.11} parent=0
    _
  %s8 = ssub.s32 1, %s6
  %s9 = scalar_select 0, %s8, %s6
  $region1: #{forward.11} parent=0
    #allocation2 [shape = 'u8[1024]{0}', space=vmem, size = 0x400, scoped, tag = 'output window, operand 0, single buffered']
    #allocation3 [shape = 's32[1]{0}', space=sflag, size = 0x4, scoped, tag = 'scoped memory for forward.11']
    %10 = vsyncpa [#allocation3], 0
    // Predicated region
    $region2: #{forward.11} parent=1 // pred_check
      _
    $region3: #{forward.11} parent=1 // pred_check_branch
      %12 = sbr.rel (0) target = $region5
    $region4: #{forward.11} parent=1 // pred_region
      _
    $region5: #{forward.11} parent=1 // pred_fallthru
      _
    // Predicated region
    $region6: #{forward.11} parent=1 // pred_check
      _
    $region7: #{forward.11} parent=1 // pred_check_branch
      %14 = sbr.rel (0) target = $region9
    $region8: #{forward.11} parent=1 // pred_region
      _
    $region9: #{forward.11} parent=1 // pred_fallthru
      _
    // Predicated region
    $region10: #{forward.11} parent=1 // pred_check
      _
    $region11: #{forward.11} parent=1 // pred_check_branch
      %16 = sbr.rel (0) target = $region13
    $region12: #{forward.11} parent=1 // pred_region
      _
    $region13: #{forward.11} parent=1 // pred_fallthru
      _
    // Predicated region
    $region14: #{forward.11} parent=1 // pred_check
      _
    $region15: #{forward.11} parent=1 // pred_check_branch
      %18 = sbr.rel (0) target = $region17
    $region16: #{forward.11} parent=1 // pred_region
      _
    $region17: #{forward.11} parent=1 // pred_fallthru
      _
    // Predicated region
    $region18: #{forward.11} parent=1 // pred_check
      _
    $region19: #{forward.11} parent=1 // pred_check_branch
      %20 = sbr.rel (0) target = $region21
    $region20: #{forward.11} parent=1 // pred_region
      _
    $region21: #{forward.11} parent=1 // pred_fallthru
      _
    %v21 = vld [vmem:[%s0] sm:$0x1]
    %v22 = vunpack.c.l.bf16 %v21
    %vm23 = vcmask 1041408
    %v24 = vsel %vm23, %v22, 0.0
    %25 = vadd.xlane.f32.xlu0 %v24
    %v26 = vpop.xlane.xlu0 %25
    %v27 = vrcp.pop 128.0
    %v28 = vmul.f32 128.0, %v27
    %v29 = vsub.f32 1.0, %v28
    %v30 = vmul.f32 %v27, %v29
    %v31 = vadd.f32 %v27, %v30
    %vm32 = vweird.f32 %v27
    %v33 = vsel %vm32, %v27, %v31
    %v34 = vmul.f32 %v26, %v33
    %v35 = vsub.f32 %v22, %v34
    %v36 = vmul.f32 %v35, %v35
    %v37 = vsel %vm23, %v36, 0.0
    %38 = vadd.xlane.f32.xlu0 %v37
    %v39 = vpop.xlane.xlu0 %38
    %v40 = vmul.f32 %v39, %v33
    %v41 = vadd.f32 %v40, 1e-06
    %v42 = vrsqrt.pop %v41
    %v43 = vmul.f32 %v42, %v41
    %v44 = vmul.f32 %v43, %v42
    %v45 = vmul.f32 0.5, %v44
    %v46 = vsub.f32 1.5, %v45
    %v47 = vmul.f32 %v42, %v46
    %vm48 = vweird.f32 %v41
    %vm49 = vweird.f32 %v42
    %vm50 = vmor %vm48, %vm49
    %v51 = vsel %vm50, %v42, %v47
    %v52 = vmul.f32 %v35, %v51
    %v53 = vld [vmem:[%s1] sm:$0x1]
    %v55 = vperm.slane %v53, 0
    %v57 = vmul.f32 %v52, %v55
    %v58 = vld [vmem:[%s2] sm:$0x1]
    %v60 = vperm.slane %v58, 0
    %v62 = vadd.f32 %v57, %v60
    %v63 = vpack.c.bf16 %v62, %v62
    %v64 = vld [vmem:[%s3] sm:$0xf]
    %v65 = vld [vmem:[%s3 + $0x4] sm:$0xf]
    %v66 = vld [vmem:[%s3 + $0x8] sm:$0xf]
    %v67 = vld [vmem:[%s3 + $0xc] sm:$0xf]
    %v68 = vld [vmem:[%s3 + $0x10] sm:$0xf]
    %v69 = vld [vmem:[%s3 + $0x14] sm:$0xf]
    %v70 = vld [vmem:[%s3 + $0x18] sm:$0xf]
    %v71 = vld [vmem:[%s3 + $0x1c] sm:$0xf]
    %v72 = vld [vmem:[%s3 + $0x20] sm:$0xf]
    %v73 = vld [vmem:[%s3 + $0x24] sm:$0xf]
    %v74 = vld [vmem:[%s3 + $0x28] sm:$0xf]
    %v75 = vld [vmem:[%s3 + $0x2c] sm:$0xf]
    %v76 = vld [vmem:[%s3 + $0x30] sm:$0xf]
    %v77 = vld [vmem:[%s3 + $0x34] sm:$0xf]
    %v78 = vld [vmem:[%s3 + $0x38] sm:$0xf]
    %v79 = vld [vmem:[%s3 + $0x3c] sm:$0xf]
    %v80 = vld [vmem:[%s4] sm:$0x1]
    %v82 = vperm.slane %v80, 0
    %v100 = vunpack.c.l.b16 %v64
    %v101 = vunpack.c.l.b16 %v65
    %v102 = vunpack.c.l.b16 %v66
    %v103 = vunpack.c.l.b16 %v67
    %v104 = vunpack.c.l.b16 %v68
    %v105 = vunpack.c.l.b16 %v69
    %v106 = vunpack.c.l.b16 %v70
    %v107 = vunpack.c.l.b16 %v71
    %v108 = vunpack.c.l.b16 %v72
    %v109 = vunpack.c.l.b16 %v73
    %v110 = vunpack.c.l.b16 %v74
    %v111 = vunpack.c.l.b16 %v75
    %v112 = vunpack.c.l.b16 %v76
    %v113 = vunpack.c.l.b16 %v77
    %v114 = vunpack.c.l.b16 %v78
    %v115 = vunpack.c.l.b16 %v79
    %v116 = vpack.c.b16 %v101, %v100
    %v117 = vpack.c.b16 %v103, %v102
    %v118 = vpack.c.b16 %v105, %v104
    %v119 = vpack.c.b16 %v107, %v106
    %v120 = vpack.c.b16 %v109, %v108
    %v121 = vpack.c.b16 %v111, %v110
    %v122 = vpack.c.b16 %v113, %v112
    %v123 = vpack.c.b16 %v115, %v114
    %132 = vmatpush.bf16.msra.mxu0 %v123
    %133 = vmatpush.bf16.msra.mxu0 %v122
    %134 = vmatpush.bf16.msra.mxu0 %v121
    %135 = vmatpush.bf16.msra.mxu0 %v120
    %136 = vmatpush.bf16.msra.mxu0 %v119
    %137 = vmatpush.bf16.msra.mxu0 %v118
    %138 = vmatpush.bf16.msra.mxu0 %v117
    %139 = vmatpush.bf16.msra.mxu0 %v116
    %140 = vmatmul.bf16.gmra.mxu0 %v63
    %v141 = vpop.f32.mrf.mxu0
    %v142 = vadd.f32 %v82, %v141
    %v143 = vpop.f32.mrf.mxu0
    %144 = vdwg.mxu0
    %vm145 = vcmask 17408
    %146 = vst.msk [vmem:[#allocation2] sm:$0x3] %vm145, %v142
    // Predicated region
    $region22: #{forward.11} parent=1 // pred_check
      _
    $region23: #{forward.11} parent=1 // pred_check_branch
      %148 = sbr.rel (0) target = $region25
    $region24: #{forward.11} parent=1 // pred_region
      %150 = vsyncadd [#allocation3], 0
      %s152 = sshll.u32 [#allocation2], 4
      %s153 = int_to_ptr.vmem [resolvable:$true] %s152
      %s154 = sshll.u32 %s5, 4
      %s155 = int_to_ptr.hbm [resolvable:$true] %s154
      %157 = dma.vmem_to_hbm [thread:$0]  %s153, 32, %s155, [#allocation3]
    $region25: #{forward.11} parent=1 // pred_fallthru
      _
    // Predicated region
    $region26: #{forward.11} parent=1 // pred_check
      _
    $region27: #{forward.11} parent=1 // pred_check_branch
      %159 = sbr.rel (0) target = $region29
    $region28: #{forward.11} parent=1 // pred_region
      %161 = dma.done [#allocation3], 32
    $region29: #{forward.11} parent=1 // pred_fallthru
      _
    %162 = vsyncpa [#allocation3], 1

// kernel: forward.9
$region0: #{forward.9}
  #allocation0 [shape = 'u32[]', space=smem, size = 0x4, offset = 0x4, fixed_abs, tag = 'smem constant byte address 0x4 - core index']
  #allocation1 [shape = 'u32[72,128]{1,0:T(1,128)}', space=vmem, size = 0x9000, scoped, tag = 'internal scratch']
  %s0 = inlined_call_operand.vmem [shape: bf16[2,72,128], index: 0, kind: input, shape index: {}]
  %s1 = inlined_call_operand.vmem [shape: f32[1,128], index: 1, kind: input, shape index: {}]
  %s2 = inlined_call_operand.vmem [shape: f32[1,128], index: 2, kind: input, shape index: {}]
  %s3 = inlined_call_operand.vmem [shape: bf16[128,384], index: 3, kind: input, shape index: {}]
  %s4 = inlined_call_operand.vmem [shape: f32[1,384], index: 4, kind: input, shape index: {}]
  %s5 = inlined_call_operand.vmem [shape: bf16[4,32,128], index: 5, kind: input, shape index: {}]
  %s6 = inlined_call_operand.vmem [shape: f32[1,128], index: 6, kind: input, shape index: {}]
  %s7 = inlined_call_operand.vmem [shape: f32[1,128], index: 7, kind: input, shape index: {}]
  %s8 = inlined_call_operand.vmem [shape: f32[1,128], index: 8, kind: input, shape index: {}]
  %s9 = inlined_call_operand.vmem [shape: bf16[128,512], index: 9, kind: input, shape index: {}]
  %s10 = inlined_call_operand.vmem [shape: f32[1,512], index: 10, kind: input, shape index: {}]
  %s11 = inlined_call_operand.vmem [shape: bf16[512,128], index: 11, kind: input, shape index: {}]
  %s12 = inlined_call_operand.vmem [shape: f32[1,128], index: 12, kind: input, shape index: {}]
  %s13 = inlined_call_operand.vmem [shape: bf16[2,72,128], index: 13, kind: output, shape index: {}]
  %s14 = sld [smem:[#allocation0]]
  $region85: #{forward.9} parent=0
    _
  %s16 = ssub.s32 1, %s14
  %s17 = scalar_select 0, %s16, %s14
  loop: start=0, step=1, limit=4
  $region2: #{forward.9} parent=0 // loop_pre_header
    _
  $region3: #{forward.9} parent=0 // loop_header
    %s19 = sphi 0, %s23
    %p20 = scmp.ge.s32.totalorder %s19, 4
    %s29 = sphi 0, %s31
    %s32 = sphi 0, %s29
    %s33 = sphi 0, %s32
    %s49 = sphi 0, %s33
    %s53 = sphi 0, %s53
    %s55 = sphi 0, %s53
    %s56 = sphi 0, %s55
    %s70 = sphi 0, %s56
    %s74 = sphi 0, %s74
    %s76 = sphi 0, %s74
    %s77 = sphi 0, %s76
    %s91 = sphi 0, %s77
    %s95 = sphi 0, %s95
    %s97 = sphi 0, %s95
    %s98 = sphi 0, %s97
    %s112 = sphi 0, %s98
    %s116 = sphi 0, %s116
    %s118 = sphi 0, %s116
    %s119 = sphi 0, %s118
    %s133 = sphi 0, %s119
    %s137 = sphi 0, %s137
    %s139 = sphi 0, %s137
    %s140 = sphi 0, %s139
    %s154 = sphi 0, %s140
    %s158 = sphi 0, %s158
    %s160 = sphi 0, %s158
    %s161 = sphi 0, %s160
    %s175 = sphi 0, %s161
    %s179 = sphi 0, %s179
    %s181 = sphi 0, %s179
    %s182 = sphi 0, %s181
    %s196 = sphi 0, %s182
    %s200 = sphi 0, %s200
    %s202 = sphi 0, %s200
    %s203 = sphi 0, %s202
    %s217 = sphi 0, %s203
    %s221 = sphi 0, %s221
    %s223 = sphi 0, %s221
    %s224 = sphi 0, %s223
    %s238 = sphi 0, %s224
    %s242 = sphi 0, %s242
    %s244 = sphi 0, %s242
    %s245 = sphi 0, %s244
    %s259 = sphi 0, %s245
    %s263 = sphi 0, %s263
    %s265 = sphi 0, %s263
    %s266 = sphi 0, %s265
    %s280 = sphi 0, %s266
    %s284 = sphi 0, %s284
    %s286 = sphi 0, %s284
    %s287 = sphi 0, %s286
    %s301 = sphi 0, %s287
    %s307 = sphi 0, %s309
    %s310 = sphi 0, %s307
    %s311 = sphi 0, %s310
    %s327 = sphi 0, %s311
  $region4: #{forward.9} parent=0 // loop_header_branch
    %22 = sbr.rel (%p20) target = $region8
  $region5: #{forward.9} parent=0 // loop_body
    %s24 = ssub.s32 %s19, 1
    %s25 = ssub.s32 %s19, 2
    %s26 = sadd.s32 %s19, 1
    %s27 = ssub.s32 %s19, %s26
    %p28 = scmp.eq.s32.totalorder %s27, 0
    %s30 = sadd.s32 %s29, 1
    %s31 = scalar_select %p28, %s29, %s30
    %p34 = pneg %p28
    %p35 = scmp.eq.s32.totalorder %s19, 1
    %p36 = por %p34, %p35
    %p37 = scmp.ne.s32.totalorder %s29, %s32
    %p38 = scmp.eq.s32.totalorder %s19, 0
    %p39 = por %p37, %p38
    %p40 = scmp.ne.s32.totalorder %s29, %s32
    %p41 = scmp.eq.s32.totalorder %s24, 1
    %p42 = por %p40, %p41
    %p43 = scmp.ne.s32.totalorder %s32, %s33
    %p44 = scmp.eq.s32.totalorder %s24, 0
    %p45 = por %p43, %p44
    %p46 = scmp.ne.s32.totalorder %s32, %s33
    %p47 = scmp.eq.s32.totalorder %s25, 1
    %p48 = por %p46, %p47
    %p50 = scmp.ne.s32.totalorder %s33, %s49
    %p51 = scmp.eq.s32.totalorder %s25, 0
    %p52 = por %p50, %p51
    %s54 = sadd.s32 %s53, 1
    %p57 = scmp.eq.s32.totalorder %s19, 1
    %p58 = scmp.ne.s32.totalorder %s53, %s55
    %p59 = scmp.eq.s32.totalorder %s19, 0
    %p60 = por %p58, %p59
    %p61 = scmp.ne.s32.totalorder %s53, %s55
    %p62 = scmp.eq.s32.totalorder %s24, 1
    %p63 = por %p61, %p62
    %p64 = scmp.ne.s32.totalorder %s55, %s56
    %p65 = scmp.eq.s32.totalorder %s24, 0
    %p66 = por %p64, %p65
    %p67 = scmp.ne.s32.totalorder %s55, %s56
    %p68 = scmp.eq.s32.totalorder %s25, 1
    %p69 = por %p67, %p68
    %p71 = scmp.ne.s32.totalorder %s56, %s70
    %p72 = scmp.eq.s32.totalorder %s25, 0
    %p73 = por %p71, %p72
    %s75 = sadd.s32 %s74, 1
    %p78 = scmp.eq.s32.totalorder %s19, 1
    %p79 = scmp.ne.s32.totalorder %s74, %s76
    %p80 = scmp.eq.s32.totalorder %s19, 0
    %p81 = por %p79, %p80
    %p82 = scmp.ne.s32.totalorder %s74, %s76
    %p83 = scmp.eq.s32.totalorder %s24, 1
    %p84 = por %p82, %p83
    %p85 = scmp.ne.s32.totalorder %s76, %s77
    %p86 = scmp.eq.s32.totalorder %s24, 0
    %p87 = por %p85, %p86
    %p88 = scmp.ne.s32.totalorder %s76, %s77
    %p89 = scmp.eq.s32.totalorder %s25, 1
    %p90 = por %p88, %p89
    %p92 = scmp.ne.s32.totalorder %s77, %s91
    %p93 = scmp.eq.s32.totalorder %s25, 0
    %p94 = por %p92, %p93
    %s96 = sadd.s32 %s95, 1
    %p99 = scmp.eq.s32.totalorder %s19, 1
    %p100 = scmp.ne.s32.totalorder %s95, %s97
    %p101 = scmp.eq.s32.totalorder %s19, 0
    %p102 = por %p100, %p101
    %p103 = scmp.ne.s32.totalorder %s95, %s97
    %p104 = scmp.eq.s32.totalorder %s24, 1
    %p105 = por %p103, %p104
    %p106 = scmp.ne.s32.totalorder %s97, %s98
    %p107 = scmp.eq.s32.totalorder %s24, 0
    %p108 = por %p106, %p107
    %p109 = scmp.ne.s32.totalorder %s97, %s98
    %p110 = scmp.eq.s32.totalorder %s25, 1
    %p111 = por %p109, %p110
    %p113 = scmp.ne.s32.totalorder %s98, %s112
    %p114 = scmp.eq.s32.totalorder %s25, 0
    %p115 = por %p113, %p114
    %s117 = sadd.s32 %s116, 1
    %p120 = scmp.eq.s32.totalorder %s19, 1
    %p121 = scmp.ne.s32.totalorder %s116, %s118
    %p122 = scmp.eq.s32.totalorder %s19, 0
    %p123 = por %p121, %p122
    %p124 = scmp.ne.s32.totalorder %s116, %s118
    %p125 = scmp.eq.s32.totalorder %s24, 1
    %p126 = por %p124, %p125
    %p127 = scmp.ne.s32.totalorder %s118, %s119
    %p128 = scmp.eq.s32.totalorder %s24, 0
    %p129 = por %p127, %p128
    %p130 = scmp.ne.s32.totalorder %s118, %s119
    %p131 = scmp.eq.s32.totalorder %s25, 1
    %p132 = por %p130, %p131
    %p134 = scmp.ne.s32.totalorder %s119, %s133
    %p135 = scmp.eq.s32.totalorder %s25, 0
    %p136 = por %p134, %p135
    %s138 = sadd.s32 %s137, 1
    %p141 = scmp.eq.s32.totalorder %s19, 1
    %p142 = scmp.ne.s32.totalorder %s137, %s139
    %p143 = scmp.eq.s32.totalorder %s19, 0
    %p144 = por %p142, %p143
    %p145 = scmp.ne.s32.totalorder %s137, %s139
    %p146 = scmp.eq.s32.totalorder %s24, 1
    %p147 = por %p145, %p146
    %p148 = scmp.ne.s32.totalorder %s139, %s140
    %p149 = scmp.eq.s32.totalorder %s24, 0
    %p150 = por %p148, %p149
    %p151 = scmp.ne.s32.totalorder %s139, %s140
    %p152 = scmp.eq.s32.totalorder %s25, 1
    %p153 = por %p151, %p152
    %p155 = scmp.ne.s32.totalorder %s140, %s154
    %p156 = scmp.eq.s32.totalorder %s25, 0
    %p157 = por %p155, %p156
    %s159 = sadd.s32 %s158, 1
    %p162 = scmp.eq.s32.totalorder %s19, 1
    %p163 = scmp.ne.s32.totalorder %s158, %s160
    %p164 = scmp.eq.s32.totalorder %s19, 0
    %p165 = por %p163, %p164
    %p166 = scmp.ne.s32.totalorder %s158, %s160
    %p167 = scmp.eq.s32.totalorder %s24, 1
    %p168 = por %p166, %p167
    %p169 = scmp.ne.s32.totalorder %s160, %s161
    %p170 = scmp.eq.s32.totalorder %s24, 0
    %p171 = por %p169, %p170
    %p172 = scmp.ne.s32.totalorder %s160, %s161
    %p173 = scmp.eq.s32.totalorder %s25, 1
    %p174 = por %p172, %p173
    %p176 = scmp.ne.s32.totalorder %s161, %s175
    %p177 = scmp.eq.s32.totalorder %s25, 0
    %p178 = por %p176, %p177
    %s180 = sadd.s32 %s179, 1
    %p183 = scmp.eq.s32.totalorder %s19, 1
    %p184 = scmp.ne.s32.totalorder %s179, %s181
    %p185 = scmp.eq.s32.totalorder %s19, 0
    %p186 = por %p184, %p185
    %p187 = scmp.ne.s32.totalorder %s179, %s181
    %p188 = scmp.eq.s32.totalorder %s24, 1
    %p189 = por %p187, %p188
    %p190 = scmp.ne.s32.totalorder %s181, %s182
    %p191 = scmp.eq.s32.totalorder %s24, 0
    %p192 = por %p190, %p191
    %p193 = scmp.ne.s32.totalorder %s181, %s182
    %p194 = scmp.eq.s32.totalorder %s25, 1
    %p195 = por %p193, %p194
    %p197 = scmp.ne.s32.totalorder %s182, %s196
    %p198 = scmp.eq.s32.totalorder %s25, 0
    %p199 = por %p197, %p198
    %s201 = sadd.s32 %s200, 1
    %p204 = scmp.eq.s32.totalorder %s19, 1
    %p205 = scmp.ne.s32.totalorder %s200, %s202
    %p206 = scmp.eq.s32.totalorder %s19, 0
    %p207 = por %p205, %p206
    %p208 = scmp.ne.s32.totalorder %s200, %s202
    %p209 = scmp.eq.s32.totalorder %s24, 1
    %p210 = por %p208, %p209
    %p211 = scmp.ne.s32.totalorder %s202, %s203
    %p212 = scmp.eq.s32.totalorder %s24, 0
    %p213 = por %p211, %p212
    %p214 = scmp.ne.s32.totalorder %s202, %s203
    %p215 = scmp.eq.s32.totalorder %s25, 1
    %p216 = por %p214, %p215
    %p218 = scmp.ne.s32.totalorder %s203, %s217
    %p219 = scmp.eq.s32.totalorder %s25, 0
    %p220 = por %p218, %p219
    %s222 = sadd.s32 %s221, 1
    %p225 = scmp.eq.s32.totalorder %s19, 1
    %p226 = scmp.ne.s32.totalorder %s221, %s223
    %p227 = scmp.eq.s32.totalorder %s19, 0
    %p228 = por %p226, %p227
    %p229 = scmp.ne.s32.totalorder %s221, %s223
    %p230 = scmp.eq.s32.totalorder %s24, 1
    %p231 = por %p229, %p230
    %p232 = scmp.ne.s32.totalorder %s223, %s224
    %p233 = scmp.eq.s32.totalorder %s24, 0
    %p234 = por %p232, %p233
    %p235 = scmp.ne.s32.totalorder %s223, %s224
    %p236 = scmp.eq.s32.totalorder %s25, 1
    %p237 = por %p235, %p236
    %p239 = scmp.ne.s32.totalorder %s224, %s238
    %p240 = scmp.eq.s32.totalorder %s25, 0
    %p241 = por %p239, %p240
    %s243 = sadd.s32 %s242, 1
    %p246 = scmp.eq.s32.totalorder %s19, 1
    %p247 = scmp.ne.s32.totalorder %s242, %s244
    %p248 = scmp.eq.s32.totalorder %s19, 0
    %p249 = por %p247, %p248
    %p250 = scmp.ne.s32.totalorder %s242, %s244
    %p251 = scmp.eq.s32.totalorder %s24, 1
    %p252 = por %p250, %p251
    %p253 = scmp.ne.s32.totalorder %s244, %s245
    %p254 = scmp.eq.s32.totalorder %s24, 0
    %p255 = por %p253, %p254
    %p256 = scmp.ne.s32.totalorder %s244, %s245
    %p257 = scmp.eq.s32.totalorder %s25, 1
    %p258 = por %p256, %p257
    %p260 = scmp.ne.s32.totalorder %s245, %s259
    %p261 = scmp.eq.s32.totalorder %s25, 0
    %p262 = por %p260, %p261
    %s264 = sadd.s32 %s263, 1
    %p267 = scmp.eq.s32.totalorder %s19, 1
    %p268 = scmp.ne.s32.totalorder %s263, %s265
    %p269 = scmp.eq.s32.totalorder %s19, 0
    %p270 = por %p268, %p269
    %p271 = scmp.ne.s32.totalorder %s263, %s265
    %p272 = scmp.eq.s32.totalorder %s24, 1
    %p273 = por %p271, %p272
    %p274 = scmp.ne.s32.totalorder %s265, %s266
    %p275 = scmp.eq.s32.totalorder %s24, 0
    %p276 = por %p274, %p275
    %p277 = scmp.ne.s32.totalorder %s265, %s266
    %p278 = scmp.eq.s32.totalorder %s25, 1
    %p279 = por %p277, %p278
    %p281 = scmp.ne.s32.totalorder %s266, %s280
    %p282 = scmp.eq.s32.totalorder %s25, 0
    %p283 = por %p281, %p282
    %s285 = sadd.s32 %s284, 1
    %p288 = scmp.eq.s32.totalorder %s19, 1
    %p289 = scmp.ne.s32.totalorder %s284, %s286
    %p290 = scmp.eq.s32.totalorder %s19, 0
    %p291 = por %p289, %p290
    %p292 = scmp.ne.s32.totalorder %s284, %s286
    %p293 = scmp.eq.s32.totalorder %s24, 1
    %p294 = por %p292, %p293
    %p295 = scmp.ne.s32.totalorder %s286, %s287
    %p296 = scmp.eq.s32.totalorder %s24, 0
    %p297 = por %p295, %p296
    %p298 = scmp.ne.s32.totalorder %s286, %s287
    %p299 = scmp.eq.s32.totalorder %s25, 1
    %p300 = por %p298, %p299
    %p302 = scmp.ne.s32.totalorder %s287, %s301
    %p303 = scmp.eq.s32.totalorder %s25, 0
    %p304 = por %p302, %p303
    %s305 = ssub.s32 %s19, %s26
    %p306 = scmp.eq.s32.totalorder %s305, 0
    %s308 = sadd.s32 %s307, 1
    %s309 = scalar_select %p306, %s307, %s308
    %p312 = pneg %p306
    %p313 = scmp.eq.s32.totalorder %s19, 1
    %p314 = por %p312, %p313
    %p315 = scmp.ne.s32.totalorder %s307, %s310
    %p316 = scmp.eq.s32.totalorder %s19, 0
    %p317 = por %p315, %p316
    %p318 = scmp.ne.s32.totalorder %s307, %s310
    %p319 = scmp.eq.s32.totalorder %s24, 1
    %p320 = por %p318, %p319
    %p321 = scmp.ne.s32.totalorder %s310, %s311
    %p322 = scmp.eq.s32.totalorder %s24, 0
    %p323 = por %p321, %p322
    %p324 = scmp.ne.s32.totalorder %s310, %s311
    %p325 = scmp.eq.s32.totalorder %s25, 1
    %p326 = por %p324, %p325
    %p328 = scmp.ne.s32.totalorder %s311, %s327
    %p329 = scmp.eq.s32.totalorder %s25, 0
    %p330 = por %p328, %p329
    %p331 = scmp.le.s32.totalorder 1, %s19
    %p332 = scmp.lt.s32.totalorder %s19, 3
    %p333 = pnand %p331, %p332
    %p334 = pneg %p333
    // Predicated region
    $region9: #{forward.9} parent=5 // pred_check
      _
    $region10: #{forward.9} parent=5 // pred_check_branch
      %336 = sbr.rel (%p333) target = $region12
    $region11: #{forward.9} parent=5 // pred_region
      %s337 = ssub.s32 %s19, 1
      // Predicated region
      $region13: #{forward.9} parent=11 // pred_check
        %p338 = pneg %p66
      $region14: #{forward.9} parent=11 // pred_check_branch
        %340 = sbr.rel (%p338) target = $region16
      $region15: #{forward.9} parent=11 // pred_region
        _
      $region16: #{forward.9} parent=11 // pred_fallthru
        _
      // Predicated region
      $region17: #{forward.9} parent=11 // pred_check
        %p341 = pneg %p87
      $region18: #{forward.9} parent=11 // pred_check_branch
        %343 = sbr.rel (%p341) target = $region20
      $region19: #{forward.9} parent=11 // pred_region
        _
      $region20: #{forward.9} parent=11 // pred_fallthru
        _
      // Predicated region
      $region21: #{forward.9} parent=11 // pred_check
        %p344 = pneg %p108
      $region22: #{forward.9} parent=11 // pred_check_branch
        %346 = sbr.rel (%p344) target = $region24
      $region23: #{forward.9} parent=11 // pred_region
        _
      $region24: #{forward.9} parent=11 // pred_fallthru
        _
      // Predicated region
      $region25: #{forward.9} parent=11 // pred_check
        %p347 = pneg %p129
      $region26: #{forward.9} parent=11 // pred_check_branch
        %349 = sbr.rel (%p347) target = $region28
      $region27: #{forward.9} parent=11 // pred_region
        _
      $region28: #{forward.9} parent=11 // pred_fallthru
        _
      // Predicated region
      $region29: #{forward.9} parent=11 // pred_check
        %p350 = pneg %p150
      $region30: #{forward.9} parent=11 // pred_check_branch
        %352 = sbr.rel (%p350) target = $region32
      $region31: #{forward.9} parent=11 // pred_region
        _
      $region32: #{forward.9} parent=11 // pred_fallthru
        _
      // Predicated region
      $region33: #{forward.9} parent=11 // pred_check
        %p353 = pneg %p171
      $region34: #{forward.9} parent=11 // pred_check_branch
        %355 = sbr.rel (%p353) target = $region36
      $region35: #{forward.9} parent=11 // pred_region
        _
      $region36: #{forward.9} parent=11 // pred_fallthru
        _
      // Predicated region
      $region37: #{forward.9} parent=11 // pred_check
        %p356 = pneg %p192
      $region38: #{forward.9} parent=11 // pred_check_branch
        %358 = sbr.rel (%p356) target = $region40
      $region39: #{forward.9} parent=11 // pred_region
        _
      $region40: #{forward.9} parent=11 // pred_fallthru
        _
      // Predicated region
      $region41: #{forward.9} parent=11 // pred_check
        %p359 = pneg %p213
      $region42: #{forward.9} parent=11 // pred_check_branch
        %361 = sbr.rel (%p359) target = $region44
      $region43: #{forward.9} parent=11 // pred_region
        _
      $region44: #{forward.9} parent=11 // pred_fallthru
        _
      // Predicated region
      $region45: #{forward.9} parent=11 // pred_check
        %p362 = pneg %p234
      $region46: #{forward.9} parent=11 // pred_check_branch
        %364 = sbr.rel (%p362) target = $region48
      $region47: #{forward.9} parent=11 // pred_region
        _
      $region48: #{forward.9} parent=11 // pred_fallthru
        _
      // Predicated region
      $region49: #{forward.9} parent=11 // pred_check
        %p365 = pneg %p255
      $region50: #{forward.9} parent=11 // pred_check_branch
        %367 = sbr.rel (%p365) target = $region52
      $region51: #{forward.9} parent=11 // pred_region
        _
      $region52: #{forward.9} parent=11 // pred_fallthru
        _
      // Predicated region
      $region53: #{forward.9} parent=11 // pred_check
        %p368 = pneg %p276
      $region54: #{forward.9} parent=11 // pred_check_branch
        %370 = sbr.rel (%p368) target = $region56
      $region55: #{forward.9} parent=11 // pred_region
        _
      $region56: #{forward.9} parent=11 // pred_fallthru
        _
      // Predicated region
      $region57: #{forward.9} parent=11 // pred_check
        %p371 = pneg %p297
      $region58: #{forward.9} parent=11 // pred_check_branch
        %373 = sbr.rel (%p371) target = $region60
      $region59: #{forward.9} parent=11 // pred_region
        _
      $region60: #{forward.9} parent=11 // pred_fallthru
        _
    $region12: #{forward.9} parent=5 // pred_fallthru
      _
    %p374 = scmp.lt.s32.totalorder %s19, 2
    // Predicated region
    $region61: #{forward.9} parent=5 // pred_check
      %p375 = pneg %p374
    $region62: #{forward.9} parent=5 // pred_check_branch
      %377 = sbr.rel (%p375) target = $region64
    $region63: #{forward.9} parent=5 // pred_region
      // Predicated region
      $region65: #{forward.9} parent=63 // pred_check
        %p378 = pneg %p39
      $region66: #{forward.9} parent=63 // pred_check_branch
        %380 = sbr.rel (%p378) target = $region68
      $region67: #{forward.9} parent=63 // pred_region
        %p381 = scmp.lt.s32.totalorder %s19, 1
        %s382 = scalar_select %p381, %s19, 1
        %s383 = smul.addr %s382, 9
        %s384 = smul.addr %s383, 4
        %s385 = scalar_lea.vmem %s0, %s384
      $region68: #{forward.9} parent=63 // pred_fallthru
        _
    $region64: #{forward.9} parent=5 // pred_fallthru
      _
    %p386 = scmp.le.s32.totalorder 1, %s19
    %p387 = scmp.lt.s32.totalorder %s19, 3
    %p388 = pnand %p386, %p387
    %p389 = pneg %p388
    // Predicated region
    $region69: #{forward.9} parent=5 // pred_check
      _
    $region70: #{forward.9} parent=5 // pred_check_branch
      %391 = sbr.rel (%p388) target = $region72
    $region71: #{forward.9} parent=5 // pred_region
      %s392 = ssub.s32 %s19, 1
      %p393 = scmp.lt.s32.totalorder %s24, 1
      %s394 = scalar_select %p393, %s24, 1
      %s395 = smul.addr %s394, 9
      %s396 = smul.addr %s395, 4
      %s397 = scalar_lea.vmem %s0, %s396
      %p398 = pneg %p45
      %p399 = pneg %p42
      %p400 = pneg %p66
      %p401 = pneg %p63
      %p402 = pneg %p87
      %p403 = pneg %p84
      %p404 = pneg %p108
      %p405 = pneg %p105
      %p406 = pneg %p129
      %p407 = pneg %p126
      %p408 = pneg %p150
      %p409 = pneg %p147
      %p410 = pneg %p171
      %p411 = pneg %p168
      %p412 = pneg %p192
      %p413 = pneg %p189
      %p414 = pneg %p213
      %p415 = pneg %p210
      %p416 = pneg %p234
      %p417 = pneg %p231
      %p418 = pneg %p255
      %p419 = pneg %p252
      %p420 = pneg %p276
      %p421 = pneg %p273
      %p422 = pneg %p297
      %p423 = pneg %p294
      %p424 = pneg %p323
      %p425 = pneg %p320
      %p426 = scmp.lt.s32.totalorder %s24, 1
      %s427 = scalar_select %p426, %s24, 1
      %s428 = smul.addr %s427, 9
      %s429 = smul.addr %s428, 4
      %s430 = scalar_lea.vmem %s13, %s429
      %p431 = scmp.lt.s32.totalorder %s24, 1
      %s432 = scalar_select %p431, %s24, 1
      %s433 = smul.addr %s432, 9
      %s434 = smul.addr %s433, 4
      %s435 = scalar_lea.vmem %s0, %s434
      %p436 = scmp.lt.s32.totalorder %s24, 1
      %s437 = scalar_select %p436, %s24, 1
      %s438 = smul.addr %s437, 9
      %s439 = smul.addr %s438, 4
      %s440 = scalar_lea.vmem %s13, %s439
      %v442 = vld [vmem:[%s435] sm:$0xf]
      %v443 = vld [vmem:[%s435 + $0x4] sm:$0xf]
      %v444 = vld [vmem:[%s435 + $0x8] sm:$0xf]
      %v445 = vld [vmem:[%s435 + $0xc] sm:$0xf]
      %v446 = vld [vmem:[%s435 + $0x10] sm:$0xf]
      %v447 = vld [vmem:[%s435 + $0x14] sm:$0xf]
      %v448 = vld [vmem:[%s435 + $0x18] sm:$0xf]
      %v449 = vld [vmem:[%s435 + $0x1c] sm:$0xf]
      %v450 = vld [vmem:[%s435 + $0x20] sm:$0xf]
      %v451 = vunpack.c.l.bf16 %v442
      %v452 = vunpack.c.l.bf16 %v443
      %v453 = vunpack.c.l.bf16 %v444
      %v454 = vunpack.c.l.bf16 %v445
      %v455 = vunpack.c.l.bf16 %v446
      %v456 = vunpack.c.l.bf16 %v447
      %v457 = vunpack.c.l.bf16 %v448
      %v458 = vunpack.c.l.bf16 %v449
      %v459 = vunpack.c.l.bf16 %v450
      %v460 = vld [vmem:[%s1] sm:$0x1]
      %v461 = vld [vmem:[%s2] sm:$0x1]
      %462 = vadd.xlane.f32.xlu0 %v451
      %v463 = vpop.xlane.xlu0 %462
      %464 = vadd.xlane.f32.xlu0 %v452
      %v465 = vpop.xlane.xlu0 %464
      %466 = vadd.xlane.f32.xlu0 %v453
      %v467 = vpop.xlane.xlu0 %466
      %468 = vadd.xlane.f32.xlu0 %v454
      %v469 = vpop.xlane.xlu0 %468
      %470 = vadd.xlane.f32.xlu0 %v455
      %v471 = vpop.xlane.xlu0 %470
      %472 = vadd.xlane.f32.xlu0 %v456
      %v473 = vpop.xlane.xlu0 %472
      %474 = vadd.xlane.f32.xlu0 %v457
      %v475 = vpop.xlane.xlu0 %474
      %476 = vadd.xlane.f32.xlu0 %v458
      %v477 = vpop.xlane.xlu0 %476
      %478 = vadd.xlane.f32.xlu0 %v459
      %v479 = vpop.xlane.xlu0 %478
      %v480 = vrcp.pop 128.0
      %v481 = vmul.f32 128.0, %v480
      %v482 = vsub.f32 1.0, %v481
      %v483 = vmul.f32 %v480, %v482
      %v484 = vadd.f32 %v480, %v483
      %vm485 = vweird.f32 %v480
      %v486 = vsel %vm485, %v480, %v484
      %v487 = vmul.f32 %v463, %v486
      %v488 = vmul.f32 %v465, %v486
      %v489 = vmul.f32 %v467, %v486
      %v490 = vmul.f32 %v469, %v486
      %v491 = vmul.f32 %v471, %v486
      %v492 = vmul.f32 %v473, %v486
      %v493 = vmul.f32 %v475, %v486
      %v494 = vmul.f32 %v477, %v486
      %v495 = vmul.f32 %v479, %v486
      %v496 = vsub.f32 %v451, %v487
      %v497 = vsub.f32 %v452, %v488
      %v498 = vsub.f32 %v453, %v489
      %v499 = vsub.f32 %v454, %v490
      %v500 = vsub.f32 %v455, %v491
      %v501 = vsub.f32 %v456, %v492
      %v502 = vsub.f32 %v457, %v493
      %v503 = vsub.f32 %v458, %v494
      %v504 = vsub.f32 %v459, %v495
      %v505 = vmul.f32 %v496, %v496
      %v506 = vmul.f32 %v497, %v497
      %v507 = vmul.f32 %v498, %v498
      %v508 = vmul.f32 %v499, %v499
      %v509 = vmul.f32 %v500, %v500
      %v510 = vmul.f32 %v501, %v501
      %v511 = vmul.f32 %v502, %v502
      %v512 = vmul.f32 %v503, %v503
      %v513 = vmul.f32 %v504, %v504
      %514 = vadd.xlane.f32.xlu0 %v505
      %v515 = vpop.xlane.xlu0 %514
      %516 = vadd.xlane.f32.xlu0 %v506
      %v517 = vpop.xlane.xlu0 %516
      %518 = vadd.xlane.f32.xlu0 %v507
      %v519 = vpop.xlane.xlu0 %518
      %520 = vadd.xlane.f32.xlu0 %v508
      %v521 = vpop.xlane.xlu0 %520
      %522 = vadd.xlane.f32.xlu0 %v509
      %v523 = vpop.xlane.xlu0 %522
      %524 = vadd.xlane.f32.xlu0 %v510
      %v525 = vpop.xlane.xlu0 %524
      %526 = vadd.xlane.f32.xlu0 %v511
      %v527 = vpop.xlane.xlu0 %526
      %528 = vadd.xlane.f32.xlu0 %v512
      %v529 = vpop.xlane.xlu0 %528
      %530 = vadd.xlane.f32.xlu0 %v513
      %v531 = vpop.xlane.xlu0 %530
      %v532 = vmul.f32 %v515, %v486
      %v533 = vmul.f32 %v517, %v486
      %v534 = vmul.f32 %v519, %v486
      %v535 = vmul.f32 %v521, %v486
      %v536 = vmul.f32 %v523, %v486
      %v537 = vmul.f32 %v525, %v486
      %v538 = vmul.f32 %v527, %v486
      %v539 = vmul.f32 %v529, %v486
      %v540 = vmul.f32 %v531, %v486
      %v541 = vadd.f32 %v532, 1e-06
      %v542 = vadd.f32 %v533, 1e-06
      %v543 = vadd.f32 %v534, 1e-06
      %v544 = vadd.f32 %v535, 1e-06
      %v545 = vadd.f32 %v536, 1e-06
      %v546 = vadd.f32 %v537, 1e-06
      %v547 = vadd.f32 %v538, 1e-06
      %v548 = vadd.f32 %v539, 1e-06
      %v549 = vadd.f32 %v540, 1e-06
      %v550 = vrsqrt.pop %v541
      %v551 = vmul.f32 %v550, %v541
      %v552 = vmul.f32 %v551, %v550
      %v553 = vmul.f32 0.5, %v552
      %v554 = vsub.f32 1.5, %v553
      %v555 = vmul.f32 %v550, %v554
      %vm556 = vweird.f32 %v541
      %vm557 = vweird.f32 %v550
      %vm558 = vmor %vm556, %vm557
      %v559 = vsel %vm558, %v550, %v555
      %v560 = vrsqrt.pop %v542
      %v561 = vmul.f32 %v560, %v542
      %v562 = vmul.f32 %v561, %v560
      %v563 = vmul.f32 0.5, %v562
      %v564 = vsub.f32 1.5, %v563
      %v565 = vmul.f32 %v560, %v564
      %vm566 = vweird.f32 %v542
      %vm567 = vweird.f32 %v560
      %vm568 = vmor %vm566, %vm567
      %v569 = vsel %vm568, %v560, %v565
      %v570 = vrsqrt.pop %v543
      %v571 = vmul.f32 %v570, %v543
      %v572 = vmul.f32 %v571, %v570
      %v573 = vmul.f32 0.5, %v572
      %v574 = vsub.f32 1.5, %v573
      %v575 = vmul.f32 %v570, %v574
      %vm576 = vweird.f32 %v543
      %vm577 = vweird.f32 %v570
      %vm578 = vmor %vm576, %vm577
      %v579 = vsel %vm578, %v570, %v575
      %v580 = vrsqrt.pop %v544
      %v581 = vmul.f32 %v580, %v544
      %v582 = vmul.f32 %v581, %v580
      %v583 = vmul.f32 0.5, %v582
      %v584 = vsub.f32 1.5, %v583
      %v585 = vmul.f32 %v580, %v584
      %vm586 = vweird.f32 %v544
      %vm587 = vweird.f32 %v580
      %vm588 = vmor %vm586, %vm587
      %v589 = vsel %vm588, %v580, %v585
      %v590 = vrsqrt.pop %v545
      %v591 = vmul.f32 %v590, %v545
      %v592 = vmul.f32 %v591, %v590
      %v593 = vmul.f32 0.5, %v592
      %v594 = vsub.f32 1.5, %v593
      %v595 = vmul.f32 %v590, %v594
      %vm596 = vweird.f32 %v545
      %vm597 = vweird.f32 %v590
      %vm598 = vmor %vm596, %vm597
      %v599 = vsel %vm598, %v590, %v595
      %v600 = vrsqrt.pop %v546
      %v601 = vmul.f32 %v600, %v546
      %v602 = vmul.f32 %v601, %v600
      %v603 = vmul.f32 0.5, %v602
      %v604 = vsub.f32 1.5, %v603
      %v605 = vmul.f32 %v600, %v604
      %vm606 = vweird.f32 %v546
      %vm607 = vweird.f32 %v600
      %vm608 = vmor %vm606, %vm607
      %v609 = vsel %vm608, %v600, %v605
      %v610 = vrsqrt.pop %v547
      %v611 = vmul.f32 %v610, %v547
      %v612 = vmul.f32 %v611, %v610
      %v613 = vmul.f32 0.5, %v612
      %v614 = vsub.f32 1.5, %v613
      %v615 = vmul.f32 %v610, %v614
      %vm616 = vweird.f32 %v547
      %vm617 = vweird.f32 %v610
      %vm618 = vmor %vm616, %vm617
      %v619 = vsel %vm618, %v610, %v615
      %v620 = vrsqrt.pop %v548
      %v621 = vmul.f32 %v620, %v548
      %v622 = vmul.f32 %v621, %v620
      %v623 = vmul.f32 0.5, %v622
      %v624 = vsub.f32 1.5, %v623
      %v625 = vmul.f32 %v620, %v624
      %vm626 = vweird.f32 %v548
      %vm627 = vweird.f32 %v620
      %vm628 = vmor %vm626, %vm627
      %v629 = vsel %vm628, %v620, %v625
      %v630 = vrsqrt.pop %v549
      %v631 = vmul.f32 %v630, %v549
      %v632 = vmul.f32 %v631, %v630
      %v633 = vmul.f32 0.5, %v632
      %v634 = vsub.f32 1.5, %v633
      %v635 = vmul.f32 %v630, %v634
      %vm636 = vweird.f32 %v549
      %vm637 = vweird.f32 %v630
      %vm638 = vmor %vm636, %vm637
      %v639 = vsel %vm638, %v630, %v635
      %v640 = vmul.f32 %v496, %v559
      %v641 = vmul.f32 %v497, %v569
      %v642 = vmul.f32 %v498, %v579
      %v643 = vmul.f32 %v499, %v589
      %v644 = vmul.f32 %v500, %v599
      %v645 = vmul.f32 %v501, %v609
      %v646 = vmul.f32 %v502, %v619
      %v647 = vmul.f32 %v503, %v629
      %v648 = vmul.f32 %v504, %v639
      %v650 = vperm.slane %v460, 0
      %v652 = vmul.f32 %v640, %v650
      %v653 = vmul.f32 %v641, %v650
      %v654 = vmul.f32 %v642, %v650
      %v655 = vmul.f32 %v643, %v650
      %v656 = vmul.f32 %v644, %v650
      %v657 = vmul.f32 %v645, %v650
      %v658 = vmul.f32 %v646, %v650
      %v659 = vmul.f32 %v647, %v650
      %v660 = vmul.f32 %v648, %v650
      %v662 = vperm.slane %v461, 0
      %v664 = vadd.f32 %v652, %v662
      %v665 = vadd.f32 %v653, %v662
      %v666 = vadd.f32 %v654, %v662
      %v667 = vadd.f32 %v655, %v662
      %v668 = vadd.f32 %v656, %v662
      %v669 = vadd.f32 %v657, %v662
      %v670 = vadd.f32 %v658, %v662
      %v671 = vadd.f32 %v659, %v662
      %v672 = vadd.f32 %v660, %v662
      %v673 = vpack.c.bf16 %v665, %v664
      %v674 = vpack.c.bf16 %v667, %v666
      %v675 = vpack.c.bf16 %v669, %v668
      %v676 = vpack.c.bf16 %v671, %v670
      %v677 = vpack.c.bf16 %v672, %v672
      %v678 = vld [vmem:[%s3] sm:$0xff]
      %v679 = vld [vmem:[%s3 + $0x8] sm:$0xf]
      %v680 = vld [vmem:[%s3 + $0xc] sm:$0xff]
      %v681 = vld [vmem:[%s3 + $0x14] sm:$0xf]
      %v682 = vld [vmem:[%s3 + $0x18] sm:$0xff]
      %v683 = vld [vmem:[%s3 + $0x20] sm:$0xf]
      %v684 = vld [vmem:[%s3 + $0x24] sm:$0xff]
      %v685 = vld [vmem:[%s3 + $0x2c] sm:$0xf]
      %v686 = vld [vmem:[%s3 + $0x30] sm:$0xff]
      %v687 = vld [vmem:[%s3 + $0x38] sm:$0xf]
      %v688 = vld [vmem:[%s3 + $0x3c] sm:$0xff]
      %v689 = vld [vmem:[%s3 + $0x44] sm:$0xf]
      %v690 = vld [vmem:[%s3 + $0x48] sm:$0xff]
      %v691 = vld [vmem:[%s3 + $0x50] sm:$0xf]
      %v692 = vld [vmem:[%s3 + $0x54] sm:$0xff]
      %v693 = vld [vmem:[%s3 + $0x5c] sm:$0xf]
      %v694 = vld [vmem:[%s3 + $0x60] sm:$0xff]
      %v695 = vld [vmem:[%s3 + $0x68] sm:$0xf]
      %v696 = vld [vmem:[%s3 + $0x6c] sm:$0xff]
      %v697 = vld [vmem:[%s3 + $0x74] sm:$0xf]
      %v698 = vld [vmem:[%s3 + $0x78] sm:$0xff]
      %v699 = vld [vmem:[%s3 + $0x80] sm:$0xf]
      %v700 = vld [vmem:[%s3 + $0x84] sm:$0xff]
      %v701 = vld [vmem:[%s3 + $0x8c] sm:$0xf]
      %v702 = vld [vmem:[%s3 + $0x90] sm:$0xff]
      %v703 = vld [vmem:[%s3 + $0x98] sm:$0xf]
      %v704 = vld [vmem:[%s3 + $0x9c] sm:$0xff]
      %v705 = vld [vmem:[%s3 + $0xa4] sm:$0xf]
      %v706 = vld [vmem:[%s3 + $0xa8] sm:$0xff]
      %v707 = vld [vmem:[%s3 + $0xb0] sm:$0xf]
      %v708 = vld [vmem:[%s3 + $0xb4] sm:$0xff]
      %v709 = vld [vmem:[%s3 + $0xbc] sm:$0xf]
      %v710 = vld [vmem:[%s4] sm:$0x7]
      %v712 = vperm.slane %v710, 0
      %v713 = vperm.slane %v710, 1
      %v714 = vperm.slane %v710, 2
      %v750 = vunpack.c.l.b16 %v678
      %v751 = vunpack.c.h.b16 %v678
      %v752 = vunpack.c.l.b16 %v679
      %v753 = vunpack.c.l.b16 %v680
      %v754 = vunpack.c.h.b16 %v680
      %v755 = vunpack.c.l.b16 %v681
      %v756 = vunpack.c.l.b16 %v682
      %v757 = vunpack.c.h.b16 %v682
      %v758 = vunpack.c.l.b16 %v683
      %v759 = vunpack.c.l.b16 %v684
      %v760 = vunpack.c.h.b16 %v684
      %v761 = vunpack.c.l.b16 %v685
      %v762 = vunpack.c.l.b16 %v686
      %v763 = vunpack.c.h.b16 %v686
      %v764 = vunpack.c.l.b16 %v687
      %v765 = vunpack.c.l.b16 %v688
      %v766 = vunpack.c.h.b16 %v688
      %v767 = vunpack.c.l.b16 %v689
      %v768 = vunpack.c.l.b16 %v690
      %v769 = vunpack.c.h.b16 %v690
      %v770 = vunpack.c.l.b16 %v691
      %v771 = vunpack.c.l.b16 %v692
      %v772 = vunpack.c.h.b16 %v692
      %v773 = vunpack.c.l.b16 %v693
      %v774 = vunpack.c.l.b16 %v694
      %v775 = vunpack.c.h.b16 %v694
      %v776 = vunpack.c.l.b16 %v695
      %v777 = vunpack.c.l.b16 %v696
      %v778 = vunpack.c.h.b16 %v696
      %v779 = vunpack.c.l.b16 %v697
      %v780 = vunpack.c.l.b16 %v698
      %v781 = vunpack.c.h.b16 %v698
      %v782 = vunpack.c.l.b16 %v699
      %v783 = vunpack.c.l.b16 %v700
      %v784 = vunpack.c.h.b16 %v700
      %v785 = vunpack.c.l.b16 %v701
      %v786 = vunpack.c.l.b16 %v702
      %v787 = vunpack.c.h.b16 %v702
      %v788 = vunpack.c.l.b16 %v703
      %v789 = vunpack.c.l.b16 %v704
      %v790 = vunpack.c.h.b16 %v704
      %v791 = vunpack.c.l.b16 %v705
      %v792 = vunpack.c.l.b16 %v706
      %v793 = vunpack.c.h.b16 %v706
      %v794 = vunpack.c.l.b16 %v707
      %v795 = vunpack.c.l.b16 %v708
      %v796 = vunpack.c.h.b16 %v708
      %v797 = vunpack.c.l.b16 %v709
      %v798 = vpack.c.b16 %v753, %v750
      %v799 = vpack.c.b16 %v754, %v751
      %v800 = vpack.c.b16 %v755, %v752
      %v801 = vpack.c.b16 %v759, %v756
      %v802 = vpack.c.b16 %v760, %v757
      %v803 = vpack.c.b16 %v761, %v758
      %v804 = vpack.c.b16 %v765, %v762
      %v805 = vpack.c.b16 %v766, %v763
      %v806 = vpack.c.b16 %v767, %v764
      %v807 = vpack.c.b16 %v771, %v768
      %v808 = vpack.c.b16 %v772, %v769
      %v809 = vpack.c.b16 %v773, %v770
      %v810 = vpack.c.b16 %v777, %v774
      %v811 = vpack.c.b16 %v778, %v775
      %v812 = vpack.c.b16 %v779, %v776
      %v813 = vpack.c.b16 %v783, %v780
      %v814 = vpack.c.b16 %v784, %v781
      %v815 = vpack.c.b16 %v785, %v782
      %v816 = vpack.c.b16 %v789, %v786
      %v817 = vpack.c.b16 %v790, %v787
      %v818 = vpack.c.b16 %v791, %v788
      %v819 = vpack.c.b16 %v795, %v792
      %v820 = vpack.c.b16 %v796, %v793
      %v821 = vpack.c.b16 %v797, %v794
      %846 = vmatpush.bf16.msra.mxu0 %v819
      %847 = vmatpush.bf16.msra.mxu0 %v816
      %848 = vmatpush.bf16.msra.mxu0 %v813
      %849 = vmatpush.bf16.msra.mxu0 %v810
      %850 = vmatpush.bf16.msra.mxu0 %v807
      %851 = vmatpush.bf16.msra.mxu0 %v804
      %852 = vmatpush.bf16.msra.mxu0 %v801
      %853 = vmatpush.bf16.msra.mxu0 %v798
      %854 = vmatmul.bf16.gmra.mxu0 %v673
      %v855 = vpop.f32.mrf.mxu0
      %v856 = vadd.f32 %v712, %v855
      %v857 = vpop.f32.mrf.mxu0
      %v858 = vadd.f32 %v712, %v857
      %859 = vmatmul.bf16.gmra.mxu0 %v674
      %v860 = vpop.f32.mrf.mxu0
      %v861 = vadd.f32 %v712, %v860
      %v862 = vpop.f32.mrf.mxu0
      %v863 = vadd.f32 %v712, %v862
      %864 = vmatmul.bf16.gmra.mxu0 %v675
      %v865 = vpop.f32.mrf.mxu0
      %v866 = vadd.f32 %v712, %v865
      %v867 = vpop.f32.mrf.mxu0
      %v868 = vadd.f32 %v712, %v867
      %869 = vmatmul.bf16.gmra.mxu0 %v676
      %v870 = vpop.f32.mrf.mxu0
      %v871 = vadd.f32 %v712, %v870
      %v872 = vpop.f32.mrf.mxu0
      %v873 = vadd.f32 %v712, %v872
      %874 = vmatmul.bf16.gmra.mxu0 %v677
      %v875 = vpop.f32.mrf.mxu0
      %v876 = vadd.f32 %v712, %v875
      %v877 = vpop.f32.mrf.mxu0
      %878 = vdwg.mxu0
      %879 = vmatpush.bf16.msra.mxu0 %v820
      %880 = vmatpush.bf16.msra.mxu0 %v817
      %881 = vmatpush.bf16.msra.mxu0 %v814
      %882 = vmatpush.bf16.msra.mxu0 %v811
      %883 = vmatpush.bf16.msra.mxu0 %v808
      %884 = vmatpush.bf16.msra.mxu0 %v805
      %885 = vmatpush.bf16.msra.mxu0 %v802
      %886 = vmatpush.bf16.msra.mxu0 %v799
      %887 = vmatmul.bf16.gmra.mxu0 %v673
      %v888 = vpop.f32.mrf.mxu0
      %v889 = vadd.f32 %v713, %v888
      %v890 = vpop.f32.mrf.mxu0
      %v891 = vadd.f32 %v713, %v890
      %892 = vmatmul.bf16.gmra.mxu0 %v674
      %v893 = vpop.f32.mrf.mxu0
      %v894 = vadd.f32 %v713, %v893
      %v895 = vpop.f32.mrf.mxu0
      %v896 = vadd.f32 %v713, %v895
      %897 = vmatmul.bf16.gmra.mxu0 %v675
      %v898 = vpop.f32.mrf.mxu0
      %v899 = vadd.f32 %v713, %v898
      %v900 = vpop.f32.mrf.mxu0
      %v901 = vadd.f32 %v713, %v900
      %902 = vmatmul.bf16.gmra.mxu0 %v676
      %v903 = vpop.f32.mrf.mxu0
      %v904 = vadd.f32 %v713, %v903
      %v905 = vpop.f32.mrf.mxu0
      %v906 = vadd.f32 %v713, %v905
      %907 = vmatmul.bf16.gmra.mxu0 %v677
      %v908 = vpop.f32.mrf.mxu0
      %v909 = vadd.f32 %v713, %v908
      %v910 = vpop.f32.mrf.mxu0
      %911 = vdwg.mxu0
      %912 = vmatpush.bf16.msra.mxu0 %v821
      %913 = vmatpush.bf16.msra.mxu0 %v818
      %914 = vmatpush.bf16.msra.mxu0 %v815
      %915 = vmatpush.bf16.msra.mxu0 %v812
      %916 = vmatpush.bf16.msra.mxu0 %v809
      %917 = vmatpush.bf16.msra.mxu0 %v806
      %918 = vmatpush.bf16.msra.mxu0 %v803
      %919 = vmatpush.bf16.msra.mxu0 %v800
      %920 = vmatmul.bf16.gmra.mxu0 %v673
      %v921 = vpop.f32.mrf.mxu0
      %v922 = vadd.f32 %v714, %v921
      %v923 = vpop.f32.mrf.mxu0
      %v924 = vadd.f32 %v714, %v923
      %925 = vmatmul.bf16.gmra.mxu0 %v674
      %v926 = vpop.f32.mrf.mxu0
      %v927 = vadd.f32 %v714, %v926
      %v928 = vpop.f32.mrf.mxu0
      %v929 = vadd.f32 %v714, %v928
      %930 = vmatmul.bf16.gmra.mxu0 %v675
      %v931 = vpop.f32.mrf.mxu0
      %v932 = vadd.f32 %v714, %v931
      %v933 = vpop.f32.mrf.mxu0
      %v934 = vadd.f32 %v714, %v933
      %935 = vmatmul.bf16.gmra.mxu0 %v676
      %v936 = vpop.f32.mrf.mxu0
      %v937 = vadd.f32 %v714, %v936
      %v938 = vpop.f32.mrf.mxu0
      %v939 = vadd.f32 %v714, %v938
      %940 = vmatmul.bf16.gmra.mxu0 %v677
      %v941 = vpop.f32.mrf.mxu0
      %v942 = vadd.f32 %v714, %v941
      %v943 = vpop.f32.mrf.mxu0
      %944 = vdwg.mxu0
      %v945 = vpack.c.bf16 %v856, %v856
      %v946 = vpack.c.bf16 %v858, %v858
      %v947 = vpack.c.bf16 %v861, %v861
      %v948 = vpack.c.bf16 %v863, %v863
      %v949 = vpack.c.bf16 %v866, %v866
      %v950 = vpack.c.bf16 %v868, %v868
      %v951 = vpack.c.bf16 %v871, %v871
      %v952 = vpack.c.bf16 %v873, %v873
      %v953 = vpack.c.bf16 %v876, %v876
      %v954 = vpack.c.bf16 %v889, %v889
      %v955 = vpack.c.bf16 %v891, %v891
      %v956 = vpack.c.bf16 %v894, %v894
      %v957 = vpack.c.bf16 %v896, %v896
      %v958 = vpack.c.bf16 %v899, %v899
      %v959 = vpack.c.bf16 %v901, %v901
      %v960 = vpack.c.bf16 %v904, %v904
      %v961 = vpack.c.bf16 %v906, %v906
      %v962 = vpack.c.bf16 %v909, %v909
      %v963 = vpack.c.bf16 %v922, %v922
      %v964 = vpack.c.bf16 %v924, %v924
      %v965 = vpack.c.bf16 %v927, %v927
      %v966 = vpack.c.bf16 %v929, %v929
      %v967 = vpack.c.bf16 %v932, %v932
      %v968 = vpack.c.bf16 %v934, %v934
      %v969 = vpack.c.bf16 %v937, %v937
      %v970 = vpack.c.bf16 %v939, %v939
      %v971 = vpack.c.bf16 %v942, %v942
      %v972 = vlaneseq
      %v973 = vand.u32 %v972, 127
      %vm974 = vcmp.lt.s32.totalorder %v973, 65
      %v984 = vunpack.c.l.b16 %v945
      %v985 = vunpack.c.l.b16 %v946
      %v986 = vunpack.c.l.b16 %v947
      %v987 = vunpack.c.l.b16 %v948
      %v988 = vunpack.c.l.b16 %v949
      %v989 = vunpack.c.l.b16 %v950
      %v990 = vunpack.c.l.b16 %v951
      %v991 = vunpack.c.l.b16 %v952
      %v992 = vunpack.c.l.b16 %v953
      %v993 = vpack.c.b16 %v985, %v984
      %v994 = vpack.c.b16 %v987, %v986
      %v995 = vpack.c.b16 %v989, %v988
      %v996 = vpack.c.b16 %v991, %v990
      %v997 = vpack.c.b16 %v992, %v992
      %v1007 = vunpack.c.l.b16 %v954
      %v1008 = vunpack.c.l.b16 %v955
      %v1009 = vunpack.c.l.b16 %v956
      %v1010 = vunpack.c.l.b16 %v957
      %v1011 = vunpack.c.l.b16 %v958
      %v1012 = vunpack.c.l.b16 %v959
      %v1013 = vunpack.c.l.b16 %v960
      %v1014 = vunpack.c.l.b16 %v961
      %v1015 = vunpack.c.l.b16 %v962
      %v1016 = vpack.c.b16 %v1008, %v1007
      %v1017 = vpack.c.b16 %v1010, %v1009
      %v1018 = vpack.c.b16 %v1012, %v1011
      %v1019 = vpack.c.b16 %v1014, %v1013
      %v1020 = vpack.c.b16 %v1015, %v1015
      %vm1021 = vcmask 261120
      %v1023 = vsel %vm1021, %v993, 0
      %v1026 = vsel %vm1021, %v994, 0
      %v1029 = vsel %vm1021, %v995, 0
      %v1032 = vsel %vm1021, %v996, 0
      %v1035 = vsel %vm1021, %v997, 0
      %v1038 = vsel %vm1021, %v1016, 0
      %v1041 = vsel %vm1021, %v1017, 0
      %v1044 = vsel %vm1021, %v1018, 0
      %v1047 = vsel %vm1021, %v1019, 0
      %v1050 = vsel %vm1021, %v1020, 0
      %1052 = vmatpush.bf16.xpose.msra.mxu0 0
      %1053 = vmatpush.bf16.xpose.msra.mxu0 0
      %1054 = vmatpush.bf16.xpose.msra.mxu0 0
      %1055 = vmatpush.bf16.xpose.msra.mxu0 %v1050
      %1056 = vmatpush.bf16.xpose.msra.mxu0 %v1047
      %1057 = vmatpush.bf16.xpose.msra.mxu0 %v1044
      %1058 = vmatpush.bf16.xpose.msra.mxu0 %v1041
      %1059 = vmatpush.bf16.xpose.msra.mxu0 %v1038
      %1060 = vmatmul.bf16.gmra.mxu0 %v1023
      %v1061 = vpop.f32.mrf.mxu0
      %v1062 = vadd.f32 0.0, %v1061
      %v1063 = vpop.f32.mrf.mxu0
      %v1064 = vadd.f32 0.0, %v1063
      %1065 = vmatmul.bf16.gmra.mxu0 %v1026
      %v1066 = vpop.f32.mrf.mxu0
      %v1067 = vadd.f32 0.0, %v1066
      %v1068 = vpop.f32.mrf.mxu0
      %v1069 = vadd.f32 0.0, %v1068
      %1070 = vmatmul.bf16.gmra.mxu0 %v1029
      %v1071 = vpop.f32.mrf.mxu0
      %v1072 = vadd.f32 0.0, %v1071
      %v1073 = vpop.f32.mrf.mxu0
      %v1074 = vadd.f32 0.0, %v1073
      %1075 = vmatmul.bf16.gmra.mxu0 %v1032
      %v1076 = vpop.f32.mrf.mxu0
      %v1077 = vadd.f32 0.0, %v1076
      %v1078 = vpop.f32.mrf.mxu0
      %v1079 = vadd.f32 0.0, %v1078
      %1080 = vmatmul.bf16.gmra.mxu0 %v1035
      %v1081 = vpop.f32.mrf.mxu0
      %v1082 = vadd.f32 0.0, %v1081
      %v1083 = vpop.f32.mrf.mxu0
      %1084 = vdwg.mxu0
      %v1085 = vmul.f32 %v1062, 0.17677669
      %v1086 = vmul.f32 %v1064, 0.17677669
      %v1087 = vmul.f32 %v1067, 0.17677669
      %v1088 = vmul.f32 %v1069, 0.17677669
      %v1089 = vmul.f32 %v1072, 0.17677669
      %v1090 = vmul.f32 %v1074, 0.17677669
      %v1091 = vmul.f32 %v1077, 0.17677669
      %v1092 = vmul.f32 %v1079, 0.17677669
      %v1093 = vmul.f32 %v1082, 0.17677669
      %v1094 = vsel %vm974, %v1085, -1e+30
      %v1095 = vsel %vm974, %v1086, -1e+30
      %v1096 = vsel %vm974, %v1087, -1e+30
      %v1097 = vsel %vm974, %v1088, -1e+30
      %v1098 = vsel %vm974, %v1089, -1e+30
      %v1099 = vsel %vm974, %v1090, -1e+30
      %v1100 = vsel %vm974, %v1091, -1e+30
      %v1101 = vsel %vm974, %v1092, -1e+30
      %v1102 = vsel %vm974, %v1093, -1e+30
      %vm1103 = vcmask 588800
      %v1104 = vsel %vm1103, %v1094, -inf
      %1105 = vmax.xlane.f32.xlu0 %v1104
      %v1106 = vpop.xlane.xlu0 %1105
      %v1107 = vsel %vm1103, %v1095, -inf
      %1108 = vmax.xlane.f32.xlu0 %v1107
      %v1109 = vpop.xlane.xlu0 %1108
      %v1110 = vsel %vm1103, %v1096, -inf
      %1111 = vmax.xlane.f32.xlu0 %v1110
      %v1112 = vpop.xlane.xlu0 %1111
      %v1113 = vsel %vm1103, %v1097, -inf
      %1114 = vmax.xlane.f32.xlu0 %v1113
      %v1115 = vpop.xlane.xlu0 %1114
      %v1116 = vsel %vm1103, %v1098, -inf
      %1117 = vmax.xlane.f32.xlu0 %v1116
      %v1118 = vpop.xlane.xlu0 %1117
      %v1119 = vsel %vm1103, %v1099, -inf
      %1120 = vmax.xlane.f32.xlu0 %v1119
      %v1121 = vpop.xlane.xlu0 %1120
      %v1122 = vsel %vm1103, %v1100, -inf
      %1123 = vmax.xlane.f32.xlu0 %v1122
      %v1124 = vpop.xlane.xlu0 %1123
      %v1125 = vsel %vm1103, %v1101, -inf
      %1126 = vmax.xlane.f32.xlu0 %v1125
      %v1127 = vpop.xlane.xlu0 %1126
      %v1128 = vsel %vm1103, %v1102, -inf
      %1129 = vmax.xlane.f32.xlu0 %v1128
      %v1130 = vpop.xlane.xlu0 %1129
      %v1131 = vsub.f32 %v1094, %v1106
      %v1132 = vsub.f32 %v1095, %v1109
      %v1133 = vsub.f32 %v1096, %v1112
      %v1134 = vsub.f32 %v1097, %v1115
      %v1135 = vsub.f32 %v1098, %v1118
      %v1136 = vsub.f32 %v1099, %v1121
      %v1137 = vsub.f32 %v1100, %v1124
      %v1138 = vsub.f32 %v1101, %v1127
      %v1139 = vsub.f32 %v1102, %v1130
      %v1140 = vmul.f32 %v1131, 1.442695
      %v1141 = vpow.pop %v1140
      %v1142 = vmul.f32 %v1132, 1.442695
      %v1143 = vpow.pop %v1142
      %v1144 = vmul.f32 %v1133, 1.442695
      %v1145 = vpow.pop %v1144
      %v1146 = vmul.f32 %v1134, 1.442695
      %v1147 = vpow.pop %v1146
      %v1148 = vmul.f32 %v1135, 1.442695
      %v1149 = vpow.pop %v1148
      %v1150 = vmul.f32 %v1136, 1.442695
      %v1151 = vpow.pop %v1150
      %v1152 = vmul.f32 %v1137, 1.442695
      %v1153 = vpow.pop %v1152
      %v1154 = vmul.f32 %v1138, 1.442695
      %v1155 = vpow.pop %v1154
      %v1156 = vmul.f32 %v1139, 1.442695
      %v1157 = vpow.pop %v1156
      %v1158 = vsel %vm1103, %v1141, 0.0
      %1159 = vadd.xlane.f32.xlu0 %v1158
      %v1160 = vpop.xlane.xlu0 %1159
      %v1161 = vsel %vm1103, %v1143, 0.0
      %1162 = vadd.xlane.f32.xlu0 %v1161
      %v1163 = vpop.xlane.xlu0 %1162
      %v1164 = vsel %vm1103, %v1145, 0.0
      %1165 = vadd.xlane.f32.xlu0 %v1164
      %v1166 = vpop.xlane.xlu0 %1165
      %v1167 = vsel %vm1103, %v1147, 0.0
      %1168 = vadd.xlane.f32.xlu0 %v1167
      %v1169 = vpop.xlane.xlu0 %1168
      %v1170 = vsel %vm1103, %v1149, 0.0
      %1171 = vadd.xlane.f32.xlu0 %v1170
      %v1172 = vpop.xlane.xlu0 %1171
      %v1173 = vsel %vm1103, %v1151, 0.0
      %1174 = vadd.xlane.f32.xlu0 %v1173
      %v1175 = vpop.xlane.xlu0 %1174
      %v1176 = vsel %vm1103, %v1153, 0.0
      %1177 = vadd.xlane.f32.xlu0 %v1176
      %v1178 = vpop.xlane.xlu0 %1177
      %v1179 = vsel %vm1103, %v1155, 0.0
      %1180 = vadd.xlane.f32.xlu0 %v1179
      %v1181 = vpop.xlane.xlu0 %1180
      %v1182 = vsel %vm1103, %v1157, 0.0
      %1183 = vadd.xlane.f32.xlu0 %v1182
      %v1184 = vpop.xlane.xlu0 %1183
      %v1185 = vrcp.pop %v1160
      %v1186 = vrcp.pop %v1163
      %v1187 = vrcp.pop %v1166
      %v1188 = vrcp.pop %v1169
      %v1189 = vrcp.pop %v1172
      %v1190 = vrcp.pop %v1175
      %v1191 = vrcp.pop %v1178
      %v1192 = vrcp.pop %v1181
      %v1193 = vrcp.pop %v1184
      %v1194 = vmul.f32 %v1141, %v1185
      %v1195 = vmul.f32 %v1143, %v1186
      %v1196 = vmul.f32 %v1145, %v1187
      %v1197 = vmul.f32 %v1147, %v1188
      %v1198 = vmul.f32 %v1149, %v1189
      %v1199 = vmul.f32 %v1151, %v1190
      %v1200 = vmul.f32 %v1153, %v1191
      %v1201 = vmul.f32 %v1155, %v1192
      %v1202 = vmul.f32 %v1157, %v1193
      %v1203 = vpack.c.bf16 %v1195, %v1194
      %v1204 = vpack.c.bf16 %v1197, %v1196
      %v1205 = vpack.c.bf16 %v1199, %v1198
      %v1206 = vpack.c.bf16 %v1201, %v1200
      %v1207 = vpack.c.bf16 %v1202, %v1202
      %v1217 = vunpack.c.l.b16 %v963
      %v1218 = vunpack.c.l.b16 %v964
      %v1219 = vunpack.c.l.b16 %v965
      %v1220 = vunpack.c.l.b16 %v966
      %v1221 = vunpack.c.l.b16 %v967
      %v1222 = vunpack.c.l.b16 %v968
      %v1223 = vunpack.c.l.b16 %v969
      %v1224 = vunpack.c.l.b16 %v970
      %v1225 = vunpack.c.l.b16 %v971
      %v1226 = vpack.c.b16 %v1218, %v1217
      %v1227 = vpack.c.b16 %v1220, %v1219
      %v1228 = vpack.c.b16 %v1222, %v1221
      %v1229 = vpack.c.b16 %v1224, %v1223
      %v1230 = vpack.c.b16 %v1225, %v1225
      %v1236 = vsel %vm1103, %v1203, 0
      %v1239 = vsel %vm1103, %v1204, 0
      %v1242 = vsel %vm1103, %v1205, 0
      %v1245 = vsel %vm1103, %v1206, 0
      %v1248 = vsel %vm1103, %v1207, 0
      %vm1250 = vcmask 1043456
      %v1252 = vsel %vm1250, %v1230, 0
      %1254 = vmatpush.bf16.msra.mxu0 0
      %1255 = vmatpush.bf16.msra.mxu0 0
      %1256 = vmatpush.bf16.msra.mxu0 0
      %1257 = vmatpush.bf16.msra.mxu0 %v1252
      %1258 = vmatpush.bf16.msra.mxu0 %v1229
      %1259 = vmatpush.bf16.msra.mxu0 %v1228
      %1260 = vmatpush.bf16.msra.mxu0 %v1227
      %1261 = vmatpush.bf16.msra.mxu0 %v1226
      %1262 = vmatmul.bf16.gmra.mxu0 %v1236
      %v1263 = vpop.f32.mrf.mxu0
      %v1264 = vadd.f32 0.0, %v1263
      %v1265 = vpop.f32.mrf.mxu0
      %v1266 = vadd.f32 0.0, %v1265
      %1267 = vmatmul.bf16.gmra.mxu0 %v1239
      %v1268 = vpop.f32.mrf.mxu0
      %v1269 = vadd.f32 0.0, %v1268
      %v1270 = vpop.f32.mrf.mxu0
      %v1271 = vadd.f32 0.0, %v1270
      %1272 = vmatmul.bf16.gmra.mxu0 %v1242
      %v1273 = vpop.f32.mrf.mxu0
      %v1274 = vadd.f32 0.0, %v1273
      %v1275 = vpop.f32.mrf.mxu0
      %v1276 = vadd.f32 0.0, %v1275
      %1277 = vmatmul.bf16.gmra.mxu0 %v1245
      %v1278 = vpop.f32.mrf.mxu0
      %v1279 = vadd.f32 0.0, %v1278
      %v1280 = vpop.f32.mrf.mxu0
      %v1281 = vadd.f32 0.0, %v1280
      %1282 = vmatmul.bf16.gmra.mxu0 %v1248
      %v1283 = vpop.f32.mrf.mxu0
      %v1284 = vadd.f32 0.0, %v1283
      %v1285 = vpop.f32.mrf.mxu0
      %1286 = vdwg.mxu0
      %v1287 = vpack.c.bf16 %v1266, %v1264
      %v1288 = vpack.c.bf16 %v1271, %v1269
      %v1289 = vpack.c.bf16 %v1276, %v1274
      %v1290 = vpack.c.bf16 %v1281, %v1279
      %v1291 = vpack.c.bf16 %v1284, %v1284
      %v1292 = vld [vmem:[%s5] sm:$0xf]
      %v1293 = vld [vmem:[%s5 + $0x4] sm:$0xf]
      %v1294 = vld [vmem:[%s5 + $0x8] sm:$0xf]
      %v1295 = vld [vmem:[%s5 + $0xc] sm:$0xf]
      %1296 = vrot.lane.b32.xlu0 %v993, 96
      %v1297 = vpop.permute.xlu0 %1296
      %1298 = vrot.lane.b32.xlu0 %v994, 96
      %v1299 = vpop.permute.xlu0 %1298
      %1300 = vrot.lane.b32.xlu0 %v995, 96
      %v1301 = vpop.permute.xlu0 %1300
      %1302 = vrot.lane.b32.xlu0 %v996, 96
      %v1303 = vpop.permute.xlu0 %1302
      %1304 = vrot.lane.b32.xlu0 %v997, 96
      %v1305 = vpop.permute.xlu0 %1304
      %1306 = vrot.lane.b32.xlu0 %v1016, 96
      %v1307 = vpop.permute.xlu0 %1306
      %1308 = vrot.lane.b32.xlu0 %v1017, 96
      %v1309 = vpop.permute.xlu0 %1308
      %1310 = vrot.lane.b32.xlu0 %v1018, 96
      %v1311 = vpop.permute.xlu0 %1310
      %1312 = vrot.lane.b32.xlu0 %v1019, 96
      %v1313 = vpop.permute.xlu0 %1312
      %1314 = vrot.lane.b32.xlu0 %v1020, 96
      %v1315 = vpop.permute.xlu0 %1314
      %v1317 = vsel %vm1021, %v1297, 0
      %v1320 = vsel %vm1021, %v1299, 0
      %v1323 = vsel %vm1021, %v1301, 0
      %v1326 = vsel %vm1021, %v1303, 0
      %v1329 = vsel %vm1021, %v1305, 0
      %v1332 = vsel %vm1021, %v1307, 0
      %v1335 = vsel %vm1021, %v1309, 0
      %v1338 = vsel %vm1021, %v1311, 0
      %v1341 = vsel %vm1021, %v1313, 0
      %v1344 = vsel %vm1021, %v1315, 0
      %1346 = vmatpush.bf16.xpose.msra.mxu0 0
      %1347 = vmatpush.bf16.xpose.msra.mxu0 0
      %1348 = vmatpush.bf16.xpose.msra.mxu0 0
      %1349 = vmatpush.bf16.xpose.msra.mxu0 %v1344
      %1350 = vmatpush.bf16.xpose.msra.mxu0 %v1341
      %1351 = vmatpush.bf16.xpose.msra.mxu0 %v1338
      %1352 = vmatpush.bf16.xpose.msra.mxu0 %v1335
      %1353 = vmatpush.bf16.xpose.msra.mxu0 %v1332
      %1354 = vmatmul.bf16.gmra.mxu0 %v1317
      %v1355 = vpop.f32.mrf.mxu0
      %v1356 = vadd.f32 0.0, %v1355
      %v1357 = vpop.f32.mrf.mxu0
      %v1358 = vadd.f32 0.0, %v1357
      %1359 = vmatmul.bf16.gmra.mxu0 %v1320
      %v1360 = vpop.f32.mrf.mxu0
      %v1361 = vadd.f32 0.0, %v1360
      %v1362 = vpop.f32.mrf.mxu0
      %v1363 = vadd.f32 0.0, %v1362
      %1364 = vmatmul.bf16.gmra.mxu0 %v1323
      %v1365 = vpop.f32.mrf.mxu0
      %v1366 = vadd.f32 0.0, %v1365
      %v1367 = vpop.f32.mrf.mxu0
      %v1368 = vadd.f32 0.0, %v1367
      %1369 = vmatmul.bf16.gmra.mxu0 %v1326
      %v1370 = vpop.f32.mrf.mxu0
      %v1371 = vadd.f32 0.0, %v1370
      %v1372 = vpop.f32.mrf.mxu0
      %v1373 = vadd.f32 0.0, %v1372
      %1374 = vmatmul.bf16.gmra.mxu0 %v1329
      %v1375 = vpop.f32.mrf.mxu0
      %v1376 = vadd.f32 0.0, %v1375
      %v1377 = vpop.f32.mrf.mxu0
      %1378 = vdwg.mxu0
      %v1379 = vmul.f32 %v1356, 0.17677669
      %v1380 = vmul.f32 %v1358, 0.17677669
      %v1381 = vmul.f32 %v1361, 0.17677669
      %v1382 = vmul.f32 %v1363, 0.17677669
      %v1383 = vmul.f32 %v1366, 0.17677669
      %v1384 = vmul.f32 %v1368, 0.17677669
      %v1385 = vmul.f32 %v1371, 0.17677669
      %v1386 = vmul.f32 %v1373, 0.17677669
      %v1387 = vmul.f32 %v1376, 0.17677669
      %v1388 = vsel %vm974, %v1379, -1e+30
      %v1389 = vsel %vm974, %v1380, -1e+30
      %v1390 = vsel %vm974, %v1381, -1e+30
      %v1391 = vsel %vm974, %v1382, -1e+30
      %v1392 = vsel %vm974, %v1383, -1e+30
      %v1393 = vsel %vm974, %v1384, -1e+30
      %v1394 = vsel %vm974, %v1385, -1e+30
      %v1395 = vsel %vm974, %v1386, -1e+30
      %v1396 = vsel %vm974, %v1387, -1e+30
      %v1397 = vsel %vm1103, %v1388, -inf
      %1398 = vmax.xlane.f32.xlu0 %v1397
      %v1399 = vpop.xlane.xlu0 %1398
      %v1400 = vsel %vm1103, %v1389, -inf
      %1401 = vmax.xlane.f32.xlu0 %v1400
      %v1402 = vpop.xlane.xlu0 %1401
      %v1403 = vsel %vm1103, %v1390, -inf
      %1404 = vmax.xlane.f32.xlu0 %v1403
      %v1405 = vpop.xlane.xlu0 %1404
      %v1406 = vsel %vm1103, %v1391, -inf
      %1407 = vmax.xlane.f32.xlu0 %v1406
      %v1408 = vpop.xlane.xlu0 %1407
      %v1409 = vsel %vm1103, %v1392, -inf
      %1410 = vmax.xlane.f32.xlu0 %v1409
      %v1411 = vpop.xlane.xlu0 %1410
      %v1412 = vsel %vm1103, %v1393, -inf
      %1413 = vmax.xlane.f32.xlu0 %v1412
      %v1414 = vpop.xlane.xlu0 %1413
      %v1415 = vsel %vm1103, %v1394, -inf
      %1416 = vmax.xlane.f32.xlu0 %v1415
      %v1417 = vpop.xlane.xlu0 %1416
      %v1418 = vsel %vm1103, %v1395, -inf
      %1419 = vmax.xlane.f32.xlu0 %v1418
      %v1420 = vpop.xlane.xlu0 %1419
      %v1421 = vsel %vm1103, %v1396, -inf
      %1422 = vmax.xlane.f32.xlu0 %v1421
      %v1423 = vpop.xlane.xlu0 %1422
      %v1424 = vsub.f32 %v1388, %v1399
      %v1425 = vsub.f32 %v1389, %v1402
      %v1426 = vsub.f32 %v1390, %v1405
      %v1427 = vsub.f32 %v1391, %v1408
      %v1428 = vsub.f32 %v1392, %v1411
      %v1429 = vsub.f32 %v1393, %v1414
      %v1430 = vsub.f32 %v1394, %v1417
      %v1431 = vsub.f32 %v1395, %v1420
      %v1432 = vsub.f32 %v1396, %v1423
      %v1433 = vmul.f32 %v1424, 1.442695
      %v1434 = vpow.pop %v1433
      %v1435 = vmul.f32 %v1425, 1.442695
      %v1436 = vpow.pop %v1435
      %v1437 = vmul.f32 %v1426, 1.442695
      %v1438 = vpow.pop %v1437
      %v1439 = vmul.f32 %v1427, 1.442695
      %v1440 = vpow.pop %v1439
      %v1441 = vmul.f32 %v1428, 1.442695
      %v1442 = vpow.pop %v1441
      %v1443 = vmul.f32 %v1429, 1.442695
      %v1444 = vpow.pop %v1443
      %v1445 = vmul.f32 %v1430, 1.442695
      %v1446 = vpow.pop %v1445
      %v1447 = vmul.f32 %v1431, 1.442695
      %v1448 = vpow.pop %v1447
      %v1449 = vmul.f32 %v1432, 1.442695
      %v1450 = vpow.pop %v1449
      %v1451 = vsel %vm1103, %v1434, 0.0
      %1452 = vadd.xlane.f32.xlu0 %v1451
      %v1453 = vpop.xlane.xlu0 %1452
      %v1454 = vsel %vm1103, %v1436, 0.0
      %1455 = vadd.xlane.f32.xlu0 %v1454
      %v1456 = vpop.xlane.xlu0 %1455
      %v1457 = vsel %vm1103, %v1438, 0.0
      %1458 = vadd.xlane.f32.xlu0 %v1457
      %v1459 = vpop.xlane.xlu0 %1458
      %v1460 = vsel %vm1103, %v1440, 0.0
      %1461 = vadd.xlane.f32.xlu0 %v1460
      %v1462 = vpop.xlane.xlu0 %1461
      %v1463 = vsel %vm1103, %v1442, 0.0
      %1464 = vadd.xlane.f32.xlu0 %v1463
      %v1465 = vpop.xlane.xlu0 %1464
      %v1466 = vsel %vm1103, %v1444, 0.0
      %1467 = vadd.xlane.f32.xlu0 %v1466
      %v1468 = vpop.xlane.xlu0 %1467
      %v1469 = vsel %vm1103, %v1446, 0.0
      %1470 = vadd.xlane.f32.xlu0 %v1469
      %v1471 = vpop.xlane.xlu0 %1470
      %v1472 = vsel %vm1103, %v1448, 0.0
      %1473 = vadd.xlane.f32.xlu0 %v1472
      %v1474 = vpop.xlane.xlu0 %1473
      %v1475 = vsel %vm1103, %v1450, 0.0
      %1476 = vadd.xlane.f32.xlu0 %v1475
      %v1477 = vpop.xlane.xlu0 %1476
      %v1478 = vrcp.pop %v1453
      %v1479 = vrcp.pop %v1456
      %v1480 = vrcp.pop %v1459
      %v1481 = vrcp.pop %v1462
      %v1482 = vrcp.pop %v1465
      %v1483 = vrcp.pop %v1468
      %v1484 = vrcp.pop %v1471
      %v1485 = vrcp.pop %v1474
      %v1486 = vrcp.pop %v1477
      %v1487 = vmul.f32 %v1434, %v1478
      %v1488 = vmul.f32 %v1436, %v1479
      %v1489 = vmul.f32 %v1438, %v1480
      %v1490 = vmul.f32 %v1440, %v1481
      %v1491 = vmul.f32 %v1442, %v1482
      %v1492 = vmul.f32 %v1444, %v1483
      %v1493 = vmul.f32 %v1446, %v1484
      %v1494 = vmul.f32 %v1448, %v1485
      %v1495 = vmul.f32 %v1450, %v1486
      %v1496 = vpack.c.bf16 %v1488, %v1487
      %v1497 = vpack.c.bf16 %v1490, %v1489
      %v1498 = vpack.c.bf16 %v1492, %v1491
      %v1499 = vpack.c.bf16 %v1494, %v1493
      %v1500 = vpack.c.bf16 %v1495, %v1495
      %1501 = vrot.lane.b32.xlu0 %v1226, 96
      %v1502 = vpop.permute.xlu0 %1501
      %1503 = vrot.lane.b32.xlu0 %v1227, 96
      %v1504 = vpop.permute.xlu0 %1503
      %1505 = vrot.lane.b32.xlu0 %v1228, 96
      %v1506 = vpop.permute.xlu0 %1505
      %1507 = vrot.lane.b32.xlu0 %v1229, 96
      %v1508 = vpop.permute.xlu0 %1507
      %1509 = vrot.lane.b32.xlu0 %v1230, 96
      %v1510 = vpop.permute.xlu0 %1509
      %v1516 = vsel %vm1103, %v1496, 0
      %v1519 = vsel %vm1103, %v1497, 0
      %v1522 = vsel %vm1103, %v1498, 0
      %v1525 = vsel %vm1103, %v1499, 0
      %v1528 = vsel %vm1103, %v1500, 0
      %v1531 = vsel %vm1250, %v1510, 0
      %1533 = vmatpush.bf16.msra.mxu0 0
      %1534 = vmatpush.bf16.msra.mxu0 0
      %1535 = vmatpush.bf16.msra.mxu0 0
      %1536 = vmatpush.bf16.msra.mxu0 %v1531
      %1537 = vmatpush.bf16.msra.mxu0 %v1508
      %1538 = vmatpush.bf16.msra.mxu0 %v1506
      %1539 = vmatpush.bf16.msra.mxu0 %v1504
      %1540 = vmatpush.bf16.msra.mxu0 %v1502
      %1541 = vmatmul.bf16.gmra.mxu0 %v1516
      %v1542 = vpop.f32.mrf.mxu0
      %v1543 = vadd.f32 0.0, %v1542
      %v1544 = vpop.f32.mrf.mxu0
      %v1545 = vadd.f32 0.0, %v1544
      %1546 = vmatmul.bf16.gmra.mxu0 %v1519
      %v1547 = vpop.f32.mrf.mxu0
      %v1548 = vadd.f32 0.0, %v1547
      %v1549 = vpop.f32.mrf.mxu0
      %v1550 = vadd.f32 0.0, %v1549
      %1551 = vmatmul.bf16.gmra.mxu0 %v1522
      %v1552 = vpop.f32.mrf.mxu0
      %v1553 = vadd.f32 0.0, %v1552
      %v1554 = vpop.f32.mrf.mxu0
      %v1555 = vadd.f32 0.0, %v1554
      %1556 = vmatmul.bf16.gmra.mxu0 %v1525
      %v1557 = vpop.f32.mrf.mxu0
      %v1558 = vadd.f32 0.0, %v1557
      %v1559 = vpop.f32.mrf.mxu0
      %v1560 = vadd.f32 0.0, %v1559
      %1561 = vmatmul.bf16.gmra.mxu0 %v1528
      %v1562 = vpop.f32.mrf.mxu0
      %v1563 = vadd.f32 0.0, %v1562
      %v1564 = vpop.f32.mrf.mxu0
      %1565 = vdwg.mxu0
      %v1566 = vpack.c.bf16 %v1545, %v1543
      %v1567 = vpack.c.bf16 %v1550, %v1548
      %v1568 = vpack.c.bf16 %v1555, %v1553
      %v1569 = vpack.c.bf16 %v1560, %v1558
      %v1570 = vpack.c.bf16 %v1563, %v1563
      %s1571 = scalar_lea.vmem %s5, 16
      %v1572 = vld [vmem:[%s1571] sm:$0xf]
      %v1573 = vld [vmem:[%s1571 + $0x4] sm:$0xf]
      %v1574 = vld [vmem:[%s1571 + $0x8] sm:$0xf]
      %v1575 = vld [vmem:[%s1571 + $0xc] sm:$0xf]
      %v1580 = vunpack.c.l.b16 %v1572
      %v1581 = vunpack.c.l.b16 %v1573
      %v1582 = vunpack.c.l.b16 %v1574
      %v1583 = vunpack.c.l.b16 %v1575
      %v1584 = vpack.c.b16 %v1581, %v1580
      %v1585 = vpack.c.b16 %v1583, %v1582
      %v1589 = vsel %vm1021, %v1566, 0
      %v1592 = vsel %vm1021, %v1567, 0
      %v1595 = vsel %vm1021, %v1568, 0
      %v1598 = vsel %vm1021, %v1569, 0
      %v1601 = vsel %vm1021, %v1570, 0
      %1603 = vmatpush.bf16.msra.mxu0 0
      %1604 = vmatpush.bf16.msra.mxu0 0
      %1605 = vmatpush.bf16.msra.mxu0 0
      %1606 = vmatpush.bf16.msra.mxu0 0
      %1607 = vmatpush.bf16.msra.mxu0 0
      %1608 = vmatpush.bf16.msra.mxu0 0
      %1609 = vmatpush.bf16.msra.mxu0 %v1585
      %1610 = vmatpush.bf16.msra.mxu0 %v1584
      %1611 = vmatmul.bf16.gmra.mxu0 %v1589
      %v1612 = vpop.f32.mrf.mxu0
      %v1613 = vadd.f32 0.0, %v1612
      %v1614 = vpop.f32.mrf.mxu0
      %v1615 = vadd.f32 0.0, %v1614
      %1616 = vmatmul.bf16.gmra.mxu0 %v1592
      %v1617 = vpop.f32.mrf.mxu0
      %v1618 = vadd.f32 0.0, %v1617
      %v1619 = vpop.f32.mrf.mxu0
      %v1620 = vadd.f32 0.0, %v1619
      %1621 = vmatmul.bf16.gmra.mxu0 %v1595
      %v1622 = vpop.f32.mrf.mxu0
      %v1623 = vadd.f32 0.0, %v1622
      %v1624 = vpop.f32.mrf.mxu0
      %v1625 = vadd.f32 0.0, %v1624
      %1626 = vmatmul.bf16.gmra.mxu0 %v1598
      %v1627 = vpop.f32.mrf.mxu0
      %v1628 = vadd.f32 0.0, %v1627
      %v1629 = vpop.f32.mrf.mxu0
      %v1630 = vadd.f32 0.0, %v1629
      %1631 = vmatmul.bf16.gmra.mxu0 %v1601
      %v1632 = vpop.f32.mrf.mxu0
      %v1633 = vadd.f32 0.0, %v1632
      %v1634 = vpop.f32.mrf.mxu0
      %1635 = vdwg.mxu0
      %v1640 = vunpack.c.l.b16 %v1292
      %v1641 = vunpack.c.l.b16 %v1293
      %v1642 = vunpack.c.l.b16 %v1294
      %v1643 = vunpack.c.l.b16 %v1295
      %v1644 = vpack.c.b16 %v1641, %v1640
      %v1645 = vpack.c.b16 %v1643, %v1642
      %v1649 = vsel %vm1021, %v1287, 0
      %v1652 = vsel %vm1021, %v1288, 0
      %v1655 = vsel %vm1021, %v1289, 0
      %v1658 = vsel %vm1021, %v1290, 0
      %v1661 = vsel %vm1021, %v1291, 0
      %1663 = vmatpush.bf16.msra.mxu0 0
      %1664 = vmatpush.bf16.msra.mxu0 0
      %1665 = vmatpush.bf16.msra.mxu0 0
      %1666 = vmatpush.bf16.msra.mxu0 0
      %1667 = vmatpush.bf16.msra.mxu0 0
      %1668 = vmatpush.bf16.msra.mxu0 0
      %1669 = vmatpush.bf16.msra.mxu0 %v1645
      %1670 = vmatpush.bf16.msra.mxu0 %v1644
      %1671 = vmatmul.bf16.gmra.mxu0 %v1649
      %v1672 = vpop.f32.mrf.mxu0
      %v1673 = vadd.f32 %v1613, %v1672
      %v1674 = vpop.f32.mrf.mxu0
      %v1675 = vadd.f32 %v1615, %v1674
      %1676 = vmatmul.bf16.gmra.mxu0 %v1652
      %v1677 = vpop.f32.mrf.mxu0
      %v1678 = vadd.f32 %v1618, %v1677
      %v1679 = vpop.f32.mrf.mxu0
      %v1680 = vadd.f32 %v1620, %v1679
      %1681 = vmatmul.bf16.gmra.mxu0 %v1655
      %v1682 = vpop.f32.mrf.mxu0
      %v1683 = vadd.f32 %v1623, %v1682
      %v1684 = vpop.f32.mrf.mxu0
      %v1685 = vadd.f32 %v1625, %v1684
      %1686 = vmatmul.bf16.gmra.mxu0 %v1658
      %v1687 = vpop.f32.mrf.mxu0
      %v1688 = vadd.f32 %v1628, %v1687
      %v1689 = vpop.f32.mrf.mxu0
      %v1690 = vadd.f32 %v1630, %v1689
      %1691 = vmatmul.bf16.gmra.mxu0 %v1661
      %v1692 = vpop.f32.mrf.mxu0
      %v1693 = vadd.f32 %v1633, %v1692
      %v1694 = vpop.f32.mrf.mxu0
      %1695 = vdwg.mxu0
      %1696 = vrot.lane.b32.xlu0 %v993, 64
      %v1697 = vpop.permute.xlu0 %1696
      %1698 = vrot.lane.b32.xlu0 %v994, 64
      %v1699 = vpop.permute.xlu0 %1698
      %1700 = vrot.lane.b32.xlu0 %v995, 64
      %v1701 = vpop.permute.xlu0 %1700
      %1702 = vrot.lane.b32.xlu0 %v996, 64
      %v1703 = vpop.permute.xlu0 %1702
      %1704 = vrot.lane.b32.xlu0 %v997, 64
      %v1705 = vpop.permute.xlu0 %1704
      %1706 = vrot.lane.b32.xlu0 %v1016, 64
      %v1707 = vpop.permute.xlu0 %1706
      %1708 = vrot.lane.b32.xlu0 %v1017, 64
      %v1709 = vpop.permute.xlu0 %1708
      %1710 = vrot.lane.b32.xlu0 %v1018, 64
      %v1711 = vpop.permute.xlu0 %1710
      %1712 = vrot.lane.b32.xlu0 %v1019, 64
      %v1713 = vpop.permute.xlu0 %1712
      %1714 = vrot.lane.b32.xlu0 %v1020, 64
      %v1715 = vpop.permute.xlu0 %1714
      %v1717 = vsel %vm1021, %v1697, 0
      %v1720 = vsel %vm1021, %v1699, 0
      %v1723 = vsel %vm1021, %v1701, 0
      %v1726 = vsel %vm1021, %v1703, 0
      %v1729 = vsel %vm1021, %v1705, 0
      %v1732 = vsel %vm1021, %v1707, 0
      %v1735 = vsel %vm1021, %v1709, 0
      %v1738 = vsel %vm1021, %v1711, 0
      %v1741 = vsel %vm1021, %v1713, 0
      %v1744 = vsel %vm1021, %v1715, 0
      %1746 = vmatpush.bf16.xpose.msra.mxu0 0
      %1747 = vmatpush.bf16.xpose.msra.mxu0 0
      %1748 = vmatpush.bf16.xpose.msra.mxu0 0
      %1749 = vmatpush.bf16.xpose.msra.mxu0 %v1744
      %1750 = vmatpush.bf16.xpose.msra.mxu0 %v1741
      %1751 = vmatpush.bf16.xpose.msra.mxu0 %v1738
      %1752 = vmatpush.bf16.xpose.msra.mxu0 %v1735
      %1753 = vmatpush.bf16.xpose.msra.mxu0 %v1732
      %1754 = vmatmul.bf16.gmra.mxu0 %v1717
      %v1755 = vpop.f32.mrf.mxu0
      %v1756 = vadd.f32 0.0, %v1755
      %v1757 = vpop.f32.mrf.mxu0
      %v1758 = vadd.f32 0.0, %v1757
      %1759 = vmatmul.bf16.gmra.mxu0 %v1720
      %v1760 = vpop.f32.mrf.mxu0
      %v1761 = vadd.f32 0.0, %v1760
      %v1762 = vpop.f32.mrf.mxu0
      %v1763 = vadd.f32 0.0, %v1762
      %1764 = vmatmul.bf16.gmra.mxu0 %v1723
      %v1765 = vpop.f32.mrf.mxu0
      %v1766 = vadd.f32 0.0, %v1765
      %v1767 = vpop.f32.mrf.mxu0
      %v1768 = vadd.f32 0.0, %v1767
      %1769 = vmatmul.bf16.gmra.mxu0 %v1726
      %v1770 = vpop.f32.mrf.mxu0
      %v1771 = vadd.f32 0.0, %v1770
      %v1772 = vpop.f32.mrf.mxu0
      %v1773 = vadd.f32 0.0, %v1772
      %1774 = vmatmul.bf16.gmra.mxu0 %v1729
      %v1775 = vpop.f32.mrf.mxu0
      %v1776 = vadd.f32 0.0, %v1775
      %v1777 = vpop.f32.mrf.mxu0
      %1778 = vdwg.mxu0
      %v1779 = vmul.f32 %v1756, 0.17677669
      %v1780 = vmul.f32 %v1758, 0.17677669
      %v1781 = vmul.f32 %v1761, 0.17677669
      %v1782 = vmul.f32 %v1763, 0.17677669
      %v1783 = vmul.f32 %v1766, 0.17677669
      %v1784 = vmul.f32 %v1768, 0.17677669
      %v1785 = vmul.f32 %v1771, 0.17677669
      %v1786 = vmul.f32 %v1773, 0.17677669
      %v1787 = vmul.f32 %v1776, 0.17677669
      %v1788 = vsel %vm974, %v1779, -1e+30
      %v1789 = vsel %vm974, %v1780, -1e+30
      %v1790 = vsel %vm974, %v1781, -1e+30
      %v1791 = vsel %vm974, %v1782, -1e+30
      %v1792 = vsel %vm974, %v1783, -1e+30
      %v1793 = vsel %vm974, %v1784, -1e+30
      %v1794 = vsel %vm974, %v1785, -1e+30
      %v1795 = vsel %vm974, %v1786, -1e+30
      %v1796 = vsel %vm974, %v1787, -1e+30
      %v1797 = vsel %vm1103, %v1788, -inf
      %1798 = vmax.xlane.f32.xlu0 %v1797
      %v1799 = vpop.xlane.xlu0 %1798
      %v1800 = vsel %vm1103, %v1789, -inf
      %1801 = vmax.xlane.f32.xlu0 %v1800
      %v1802 = vpop.xlane.xlu0 %1801
      %v1803 = vsel %vm1103, %v1790, -inf
      %1804 = vmax.xlane.f32.xlu0 %v1803
      %v1805 = vpop.xlane.xlu0 %1804
      %v1806 = vsel %vm1103, %v1791, -inf
      %1807 = vmax.xlane.f32.xlu0 %v1806
      %v1808 = vpop.xlane.xlu0 %1807
      %v1809 = vsel %vm1103, %v1792, -inf
      %1810 = vmax.xlane.f32.xlu0 %v1809
      %v1811 = vpop.xlane.xlu0 %1810
      %v1812 = vsel %vm1103, %v1793, -inf
      %1813 = vmax.xlane.f32.xlu0 %v1812
      %v1814 = vpop.xlane.xlu0 %1813
      %v1815 = vsel %vm1103, %v1794, -inf
      %1816 = vmax.xlane.f32.xlu0 %v1815
      %v1817 = vpop.xlane.xlu0 %1816
      %v1818 = vsel %vm1103, %v1795, -inf
      %1819 = vmax.xlane.f32.xlu0 %v1818
      %v1820 = vpop.xlane.xlu0 %1819
      %v1821 = vsel %vm1103, %v1796, -inf
      %1822 = vmax.xlane.f32.xlu0 %v1821
      %v1823 = vpop.xlane.xlu0 %1822
      %v1824 = vsub.f32 %v1788, %v1799
      %v1825 = vsub.f32 %v1789, %v1802
      %v1826 = vsub.f32 %v1790, %v1805
      %v1827 = vsub.f32 %v1791, %v1808
      %v1828 = vsub.f32 %v1792, %v1811
      %v1829 = vsub.f32 %v1793, %v1814
      %v1830 = vsub.f32 %v1794, %v1817
      %v1831 = vsub.f32 %v1795, %v1820
      %v1832 = vsub.f32 %v1796, %v1823
      %v1833 = vmul.f32 %v1824, 1.442695
      %v1834 = vpow.pop %v1833
      %v1835 = vmul.f32 %v1825, 1.442695
      %v1836 = vpow.pop %v1835
      %v1837 = vmul.f32 %v1826, 1.442695
      %v1838 = vpow.pop %v1837
      %v1839 = vmul.f32 %v1827, 1.442695
      %v1840 = vpow.pop %v1839
      %v1841 = vmul.f32 %v1828, 1.442695
      %v1842 = vpow.pop %v1841
      %v1843 = vmul.f32 %v1829, 1.442695
      %v1844 = vpow.pop %v1843
      %v1845 = vmul.f32 %v1830, 1.442695
      %v1846 = vpow.pop %v1845
      %v1847 = vmul.f32 %v1831, 1.442695
      %v1848 = vpow.pop %v1847
      %v1849 = vmul.f32 %v1832, 1.442695
      %v1850 = vpow.pop %v1849
      %v1851 = vsel %vm1103, %v1834, 0.0
      %1852 = vadd.xlane.f32.xlu0 %v1851
      %v1853 = vpop.xlane.xlu0 %1852
      %v1854 = vsel %vm1103, %v1836, 0.0
      %1855 = vadd.xlane.f32.xlu0 %v1854
      %v1856 = vpop.xlane.xlu0 %1855
      %v1857 = vsel %vm1103, %v1838, 0.0
      %1858 = vadd.xlane.f32.xlu0 %v1857
      %v1859 = vpop.xlane.xlu0 %1858
      %v1860 = vsel %vm1103, %v1840, 0.0
      %1861 = vadd.xlane.f32.xlu0 %v1860
      %v1862 = vpop.xlane.xlu0 %1861
      %v1863 = vsel %vm1103, %v1842, 0.0
      %1864 = vadd.xlane.f32.xlu0 %v1863
      %v1865 = vpop.xlane.xlu0 %1864
      %v1866 = vsel %vm1103, %v1844, 0.0
      %1867 = vadd.xlane.f32.xlu0 %v1866
      %v1868 = vpop.xlane.xlu0 %1867
      %v1869 = vsel %vm1103, %v1846, 0.0
      %1870 = vadd.xlane.f32.xlu0 %v1869
      %v1871 = vpop.xlane.xlu0 %1870
      %v1872 = vsel %vm1103, %v1848, 0.0
      %1873 = vadd.xlane.f32.xlu0 %v1872
      %v1874 = vpop.xlane.xlu0 %1873
      %v1875 = vsel %vm1103, %v1850, 0.0
      %1876 = vadd.xlane.f32.xlu0 %v1875
      %v1877 = vpop.xlane.xlu0 %1876
      %v1878 = vrcp.pop %v1853
      %v1879 = vrcp.pop %v1856
      %v1880 = vrcp.pop %v1859
      %v1881 = vrcp.pop %v1862
      %v1882 = vrcp.pop %v1865
      %v1883 = vrcp.pop %v1868
      %v1884 = vrcp.pop %v1871
      %v1885 = vrcp.pop %v1874
      %v1886 = vrcp.pop %v1877
      %v1887 = vmul.f32 %v1834, %v1878
      %v1888 = vmul.f32 %v1836, %v1879
      %v1889 = vmul.f32 %v1838, %v1880
      %v1890 = vmul.f32 %v1840, %v1881
      %v1891 = vmul.f32 %v1842, %v1882
      %v1892 = vmul.f32 %v1844, %v1883
      %v1893 = vmul.f32 %v1846, %v1884
      %v1894 = vmul.f32 %v1848, %v1885
      %v1895 = vmul.f32 %v1850, %v1886
      %v1896 = vpack.c.bf16 %v1888, %v1887
      %v1897 = vpack.c.bf16 %v1890, %v1889
      %v1898 = vpack.c.bf16 %v1892, %v1891
      %v1899 = vpack.c.bf16 %v1894, %v1893
      %v1900 = vpack.c.bf16 %v1895, %v1895
      %1901 = vrot.lane.b32.xlu0 %v1226, 64
      %v1902 = vpop.permute.xlu0 %1901
      %1903 = vrot.lane.b32.xlu0 %v1227, 64
      %v1904 = vpop.permute.xlu0 %1903
      %1905 = vrot.lane.b32.xlu0 %v1228, 64
      %v1906 = vpop.permute.xlu0 %1905
      %1907 = vrot.lane.b32.xlu0 %v1229, 64
      %v1908 = vpop.permute.xlu0 %1907
      %1909 = vrot.lane.b32.xlu0 %v1230, 64
      %v1910 = vpop.permute.xlu0 %1909
      %v1916 = vsel %vm1103, %v1896, 0
      %v1919 = vsel %vm1103, %v1897, 0
      %v1922 = vsel %vm1103, %v1898, 0
      %v1925 = vsel %vm1103, %v1899, 0
      %v1928 = vsel %vm1103, %v1900, 0
      %v1931 = vsel %vm1250, %v1910, 0
      %1933 = vmatpush.bf16.msra.mxu0 0
      %1934 = vmatpush.bf16.msra.mxu0 0
      %1935 = vmatpush.bf16.msra.mxu0 0
      %1936 = vmatpush.bf16.msra.mxu0 %v1931
      %1937 = vmatpush.bf16.msra.mxu0 %v1908
      %1938 = vmatpush.bf16.msra.mxu0 %v1906
      %1939 = vmatpush.bf16.msra.mxu0 %v1904
      %1940 = vmatpush.bf16.msra.mxu0 %v1902
      %1941 = vmatmul.bf16.gmra.mxu0 %v1916
      %v1942 = vpop.f32.mrf.mxu0
      %v1943 = vadd.f32 0.0, %v1942
      %v1944 = vpop.f32.mrf.mxu0
      %v1945 = vadd.f32 0.0, %v1944
      %1946 = vmatmul.bf16.gmra.mxu0 %v1919
      %v1947 = vpop.f32.mrf.mxu0
      %v1948 = vadd.f32 0.0, %v1947
      %v1949 = vpop.f32.mrf.mxu0
      %v1950 = vadd.f32 0.0, %v1949
      %1951 = vmatmul.bf16.gmra.mxu0 %v1922
      %v1952 = vpop.f32.mrf.mxu0
      %v1953 = vadd.f32 0.0, %v1952
      %v1954 = vpop.f32.mrf.mxu0
      %v1955 = vadd.f32 0.0, %v1954
      %1956 = vmatmul.bf16.gmra.mxu0 %v1925
      %v1957 = vpop.f32.mrf.mxu0
      %v1958 = vadd.f32 0.0, %v1957
      %v1959 = vpop.f32.mrf.mxu0
      %v1960 = vadd.f32 0.0, %v1959
      %1961 = vmatmul.bf16.gmra.mxu0 %v1928
      %v1962 = vpop.f32.mrf.mxu0
      %v1963 = vadd.f32 0.0, %v1962
      %v1964 = vpop.f32.mrf.mxu0
      %1965 = vdwg.mxu0
      %v1966 = vpack.c.bf16 %v1945, %v1943
      %v1967 = vpack.c.bf16 %v1950, %v1948
      %v1968 = vpack.c.bf16 %v1955, %v1953
      %v1969 = vpack.c.bf16 %v1960, %v1958
      %v1970 = vpack.c.bf16 %v1963, %v1963
      %s1971 = scalar_lea.vmem %s5, 32
      %v1972 = vld [vmem:[%s1971] sm:$0xf]
      %v1973 = vld [vmem:[%s1971 + $0x4] sm:$0xf]
      %v1974 = vld [vmem:[%s1971 + $0x8] sm:$0xf]
      %v1975 = vld [vmem:[%s1971 + $0xc] sm:$0xf]
      %v1980 = vunpack.c.l.b16 %v1972
      %v1981 = vunpack.c.l.b16 %v1973
      %v1982 = vunpack.c.l.b16 %v1974
      %v1983 = vunpack.c.l.b16 %v1975
      %v1984 = vpack.c.b16 %v1981, %v1980
      %v1985 = vpack.c.b16 %v1983, %v1982
      %v1989 = vsel %vm1021, %v1966, 0
      %v1992 = vsel %vm1021, %v1967, 0
      %v1995 = vsel %vm1021, %v1968, 0
      %v1998 = vsel %vm1021, %v1969, 0
      %v2001 = vsel %vm1021, %v1970, 0
      %2003 = vmatpush.bf16.msra.mxu0 0
      %2004 = vmatpush.bf16.msra.mxu0 0
      %2005 = vmatpush.bf16.msra.mxu0 0
      %2006 = vmatpush.bf16.msra.mxu0 0
      %2007 = vmatpush.bf16.msra.mxu0 0
      %2008 = vmatpush.bf16.msra.mxu0 0
      %2009 = vmatpush.bf16.msra.mxu0 %v1985
      %2010 = vmatpush.bf16.msra.mxu0 %v1984
      %2011 = vmatmul.bf16.gmra.mxu0 %v1989
      %v2012 = vpop.f32.mrf.mxu0
      %v2013 = vadd.f32 0.0, %v2012
      %v2014 = vpop.f32.mrf.mxu0
      %v2015 = vadd.f32 0.0, %v2014
      %2016 = vmatmul.bf16.gmra.mxu0 %v1992
      %v2017 = vpop.f32.mrf.mxu0
      %v2018 = vadd.f32 0.0, %v2017
      %v2019 = vpop.f32.mrf.mxu0
      %v2020 = vadd.f32 0.0, %v2019
      %2021 = vmatmul.bf16.gmra.mxu0 %v1995
      %v2022 = vpop.f32.mrf.mxu0
      %v2023 = vadd.f32 0.0, %v2022
      %v2024 = vpop.f32.mrf.mxu0
      %v2025 = vadd.f32 0.0, %v2024
      %2026 = vmatmul.bf16.gmra.mxu0 %v1998
      %v2027 = vpop.f32.mrf.mxu0
      %v2028 = vadd.f32 0.0, %v2027
      %v2029 = vpop.f32.mrf.mxu0
      %v2030 = vadd.f32 0.0, %v2029
      %2031 = vmatmul.bf16.gmra.mxu0 %v2001
      %v2032 = vpop.f32.mrf.mxu0
      %v2033 = vadd.f32 0.0, %v2032
      %v2034 = vpop.f32.mrf.mxu0
      %2035 = vdwg.mxu0
      %v2036 = vadd.f32 %v1673, %v2013
      %v2037 = vadd.f32 %v1675, %v2015
      %v2038 = vadd.f32 %v1678, %v2018
      %v2039 = vadd.f32 %v1680, %v2020
      %v2040 = vadd.f32 %v1683, %v2023
      %v2041 = vadd.f32 %v1685, %v2025
      %v2042 = vadd.f32 %v1688, %v2028
      %v2043 = vadd.f32 %v1690, %v2030
      %v2044 = vadd.f32 %v1693, %v2033
      %2045 = vrot.lane.b32.xlu0 %v993, 32
      %v2046 = vpop.permute.xlu0 %2045
      %2047 = vrot.lane.b32.xlu0 %v994, 32
      %v2048 = vpop.permute.xlu0 %2047
      %2049 = vrot.lane.b32.xlu0 %v995, 32
      %v2050 = vpop.permute.xlu0 %2049
      %2051 = vrot.lane.b32.xlu0 %v996, 32
      %v2052 = vpop.permute.xlu0 %2051
      %2053 = vrot.lane.b32.xlu0 %v997, 32
      %v2054 = vpop.permute.xlu0 %2053
      %2055 = vrot.lane.b32.xlu0 %v1016, 32
      %v2056 = vpop.permute.xlu0 %2055
      %2057 = vrot.lane.b32.xlu0 %v1017, 32
      %v2058 = vpop.permute.xlu0 %2057
      %2059 = vrot.lane.b32.xlu0 %v1018, 32
      %v2060 = vpop.permute.xlu0 %2059
      %2061 = vrot.lane.b32.xlu0 %v1019, 32
      %v2062 = vpop.permute.xlu0 %2061
      %2063 = vrot.lane.b32.xlu0 %v1020, 32
      %v2064 = vpop.permute.xlu0 %2063
      %v2066 = vsel %vm1021, %v2046, 0
      %v2069 = vsel %vm1021, %v2048, 0
      %v2072 = vsel %vm1021, %v2050, 0
      %v2075 = vsel %vm1021, %v2052, 0
      %v2078 = vsel %vm1021, %v2054, 0
      %v2081 = vsel %vm1021, %v2056, 0
      %v2084 = vsel %vm1021, %v2058, 0
      %v2087 = vsel %vm1021, %v2060, 0
      %v2090 = vsel %vm1021, %v2062, 0
      %v2093 = vsel %vm1021, %v2064, 0
      %2095 = vmatpush.bf16.xpose.msra.mxu0 0
      %2096 = vmatpush.bf16.xpose.msra.mxu0 0
      %2097 = vmatpush.bf16.xpose.msra.mxu0 0
      %2098 = vmatpush.bf16.xpose.msra.mxu0 %v2093
      %2099 = vmatpush.bf16.xpose.msra.mxu0 %v2090
      %2100 = vmatpush.bf16.xpose.msra.mxu0 %v2087
      %2101 = vmatpush.bf16.xpose.msra.mxu0 %v2084
      %2102 = vmatpush.bf16.xpose.msra.mxu0 %v2081
      %2103 = vmatmul.bf16.gmra.mxu0 %v2066
      %v2104 = vpop.f32.mrf.mxu0
      %v2105 = vadd.f32 0.0, %v2104
      %v2106 = vpop.f32.mrf.mxu0
      %v2107 = vadd.f32 0.0, %v2106
      %2108 = vmatmul.bf16.gmra.mxu0 %v2069
      %v2109 = vpop.f32.mrf.mxu0
      %v2110 = vadd.f32 0.0, %v2109
      %v2111 = vpop.f32.mrf.mxu0
      %v2112 = vadd.f32 0.0, %v2111
      %2113 = vmatmul.bf16.gmra.mxu0 %v2072
      %v2114 = vpop.f32.mrf.mxu0
      %v2115 = vadd.f32 0.0, %v2114
      %v2116 = vpop.f32.mrf.mxu0
      %v2117 = vadd.f32 0.0, %v2116
      %2118 = vmatmul.bf16.gmra.mxu0 %v2075
      %v2119 = vpop.f32.mrf.mxu0
      %v2120 = vadd.f32 0.0, %v2119
      %v2121 = vpop.f32.mrf.mxu0
      %v2122 = vadd.f32 0.0, %v2121
      %2123 = vmatmul.bf16.gmra.mxu0 %v2078
      %v2124 = vpop.f32.mrf.mxu0
      %v2125 = vadd.f32 0.0, %v2124
      %v2126 = vpop.f32.mrf.mxu0
      %2127 = vdwg.mxu0
      %v2128 = vmul.f32 %v2105, 0.17677669
      %v2129 = vmul.f32 %v2107, 0.17677669
      %v2130 = vmul.f32 %v2110, 0.17677669
      %v2131 = vmul.f32 %v2112, 0.17677669
      %v2132 = vmul.f32 %v2115, 0.17677669
      %v2133 = vmul.f32 %v2117, 0.17677669
      %v2134 = vmul.f32 %v2120, 0.17677669
      %v2135 = vmul.f32 %v2122, 0.17677669
      %v2136 = vmul.f32 %v2125, 0.17677669
      %v2137 = vsel %vm974, %v2128, -1e+30
      %v2138 = vsel %vm974, %v2129, -1e+30
      %v2139 = vsel %vm974, %v2130, -1e+30
      %v2140 = vsel %vm974, %v2131, -1e+30
      %v2141 = vsel %vm974, %v2132, -1e+30
      %v2142 = vsel %vm974, %v2133, -1e+30
      %v2143 = vsel %vm974, %v2134, -1e+30
      %v2144 = vsel %vm974, %v2135, -1e+30
      %v2145 = vsel %vm974, %v2136, -1e+30
      %v2146 = vsel %vm1103, %v2137, -inf
      %2147 = vmax.xlane.f32.xlu0 %v2146
      %v2148 = vpop.xlane.xlu0 %2147
      %v2149 = vsel %vm1103, %v2138, -inf
      %2150 = vmax.xlane.f32.xlu0 %v2149
      %v2151 = vpop.xlane.xlu0 %2150
      %v2152 = vsel %vm1103, %v2139, -inf
      %2153 = vmax.xlane.f32.xlu0 %v2152
      %v2154 = vpop.xlane.xlu0 %2153
      %v2155 = vsel %vm1103, %v2140, -inf
      %2156 = vmax.xlane.f32.xlu0 %v2155
      %v2157 = vpop.xlane.xlu0 %2156
      %v2158 = vsel %vm1103, %v2141, -inf
      %2159 = vmax.xlane.f32.xlu0 %v2158
      %v2160 = vpop.xlane.xlu0 %2159
      %v2161 = vsel %vm1103, %v2142, -inf
      %2162 = vmax.xlane.f32.xlu0 %v2161
      %v2163 = vpop.xlane.xlu0 %2162
      %v2164 = vsel %vm1103, %v2143, -inf
      %2165 = vmax.xlane.f32.xlu0 %v2164
      %v2166 = vpop.xlane.xlu0 %2165
      %v2167 = vsel %vm1103, %v2144, -inf
      %2168 = vmax.xlane.f32.xlu0 %v2167
      %v2169 = vpop.xlane.xlu0 %2168
      %v2170 = vsel %vm1103, %v2145, -inf
      %2171 = vmax.xlane.f32.xlu0 %v2170
      %v2172 = vpop.xlane.xlu0 %2171
      %v2173 = vsub.f32 %v2137, %v2148
      %v2174 = vsub.f32 %v2138, %v2151
      %v2175 = vsub.f32 %v2139, %v2154
      %v2176 = vsub.f32 %v2140, %v2157
      %v2177 = vsub.f32 %v2141, %v2160
      %v2178 = vsub.f32 %v2142, %v2163
      %v2179 = vsub.f32 %v2143, %v2166
      %v2180 = vsub.f32 %v2144, %v2169
      %v2181 = vsub.f32 %v2145, %v2172
      %v2182 = vmul.f32 %v2173, 1.442695
      %v2183 = vpow.pop %v2182
      %v2184 = vmul.f32 %v2174, 1.442695
      %v2185 = vpow.pop %v2184
      %v2186 = vmul.f32 %v2175, 1.442695
      %v2187 = vpow.pop %v2186
      %v2188 = vmul.f32 %v2176, 1.442695
      %v2189 = vpow.pop %v2188
      %v2190 = vmul.f32 %v2177, 1.442695
      %v2191 = vpow.pop %v2190
      %v2192 = vmul.f32 %v2178, 1.442695
      %v2193 = vpow.pop %v2192
      %v2194 = vmul.f32 %v2179, 1.442695
      %v2195 = vpow.pop %v2194
      %v2196 = vmul.f32 %v2180, 1.442695
      %v2197 = vpow.pop %v2196
      %v2198 = vmul.f32 %v2181, 1.442695
      %v2199 = vpow.pop %v2198
      %v2200 = vsel %vm1103, %v2183, 0.0
      %2201 = vadd.xlane.f32.xlu0 %v2200
      %v2202 = vpop.xlane.xlu0 %2201
      %v2203 = vsel %vm1103, %v2185, 0.0
      %2204 = vadd.xlane.f32.xlu0 %v2203
      %v2205 = vpop.xlane.xlu0 %2204
      %v2206 = vsel %vm1103, %v2187, 0.0
      %2207 = vadd.xlane.f32.xlu0 %v2206
      %v2208 = vpop.xlane.xlu0 %2207
      %v2209 = vsel %vm1103, %v2189, 0.0
      %2210 = vadd.xlane.f32.xlu0 %v2209
      %v2211 = vpop.xlane.xlu0 %2210
      %v2212 = vsel %vm1103, %v2191, 0.0
      %2213 = vadd.xlane.f32.xlu0 %v2212
      %v2214 = vpop.xlane.xlu0 %2213
      %v2215 = vsel %vm1103, %v2193, 0.0
      %2216 = vadd.xlane.f32.xlu0 %v2215
      %v2217 = vpop.xlane.xlu0 %2216
      %v2218 = vsel %vm1103, %v2195, 0.0
      %2219 = vadd.xlane.f32.xlu0 %v2218
      %v2220 = vpop.xlane.xlu0 %2219
      %v2221 = vsel %vm1103, %v2197, 0.0
      %2222 = vadd.xlane.f32.xlu0 %v2221
      %v2223 = vpop.xlane.xlu0 %2222
      %v2224 = vsel %vm1103, %v2199, 0.0
      %2225 = vadd.xlane.f32.xlu0 %v2224
      %v2226 = vpop.xlane.xlu0 %2225
      %v2227 = vrcp.pop %v2202
      %v2228 = vrcp.pop %v2205
      %v2229 = vrcp.pop %v2208
      %v2230 = vrcp.pop %v2211
      %v2231 = vrcp.pop %v2214
      %v2232 = vrcp.pop %v2217
      %v2233 = vrcp.pop %v2220
      %v2234 = vrcp.pop %v2223
      %v2235 = vrcp.pop %v2226
      %v2236 = vmul.f32 %v2183, %v2227
      %v2237 = vmul.f32 %v2185, %v2228
      %v2238 = vmul.f32 %v2187, %v2229
      %v2239 = vmul.f32 %v2189, %v2230
      %v2240 = vmul.f32 %v2191, %v2231
      %v2241 = vmul.f32 %v2193, %v2232
      %v2242 = vmul.f32 %v2195, %v2233
      %v2243 = vmul.f32 %v2197, %v2234
      %v2244 = vmul.f32 %v2199, %v2235
      %v2245 = vpack.c.bf16 %v2237, %v2236
      %v2246 = vpack.c.bf16 %v2239, %v2238
      %v2247 = vpack.c.bf16 %v2241, %v2240
      %v2248 = vpack.c.bf16 %v2243, %v2242
      %v2249 = vpack.c.bf16 %v2244, %v2244
      %2250 = vrot.lane.b32.xlu0 %v1226, 32
      %v2251 = vpop.permute.xlu0 %2250
      %2252 = vrot.lane.b32.xlu0 %v1227, 32
      %v2253 = vpop.permute.xlu0 %2252
      %2254 = vrot.lane.b32.xlu0 %v1228, 32
      %v2255 = vpop.permute.xlu0 %2254
      %2256 = vrot.lane.b32.xlu0 %v1229, 32
      %v2257 = vpop.permute.xlu0 %2256
      %2258 = vrot.lane.b32.xlu0 %v1230, 32
      %v2259 = vpop.permute.xlu0 %2258
      %v2265 = vsel %vm1103, %v2245, 0
      %v2268 = vsel %vm1103, %v2246, 0
      %v2271 = vsel %vm1103, %v2247, 0
      %v2274 = vsel %vm1103, %v2248, 0
      %v2277 = vsel %vm1103, %v2249, 0
      %v2280 = vsel %vm1250, %v2259, 0
      %2282 = vmatpush.bf16.msra.mxu0 0
      %2283 = vmatpush.bf16.msra.mxu0 0
      %2284 = vmatpush.bf16.msra.mxu0 0
      %2285 = vmatpush.bf16.msra.mxu0 %v2280
      %2286 = vmatpush.bf16.msra.mxu0 %v2257
      %2287 = vmatpush.bf16.msra.mxu0 %v2255
      %2288 = vmatpush.bf16.msra.mxu0 %v2253
      %2289 = vmatpush.bf16.msra.mxu0 %v2251
      %2290 = vmatmul.bf16.gmra.mxu0 %v2265
      %v2291 = vpop.f32.mrf.mxu0
      %v2292 = vadd.f32 0.0, %v2291
      %v2293 = vpop.f32.mrf.mxu0
      %v2294 = vadd.f32 0.0, %v2293
      %2295 = vmatmul.bf16.gmra.mxu0 %v2268
      %v2296 = vpop.f32.mrf.mxu0
      %v2297 = vadd.f32 0.0, %v2296
      %v2298 = vpop.f32.mrf.mxu0
      %v2299 = vadd.f32 0.0, %v2298
      %2300 = vmatmul.bf16.gmra.mxu0 %v2271
      %v2301 = vpop.f32.mrf.mxu0
      %v2302 = vadd.f32 0.0, %v2301
      %v2303 = vpop.f32.mrf.mxu0
      %v2304 = vadd.f32 0.0, %v2303
      %2305 = vmatmul.bf16.gmra.mxu0 %v2274
      %v2306 = vpop.f32.mrf.mxu0
      %v2307 = vadd.f32 0.0, %v2306
      %v2308 = vpop.f32.mrf.mxu0
      %v2309 = vadd.f32 0.0, %v2308
      %2310 = vmatmul.bf16.gmra.mxu0 %v2277
      %v2311 = vpop.f32.mrf.mxu0
      %v2312 = vadd.f32 0.0, %v2311
      %v2313 = vpop.f32.mrf.mxu0
      %2314 = vdwg.mxu0
      %v2315 = vpack.c.bf16 %v2294, %v2292
      %v2316 = vpack.c.bf16 %v2299, %v2297
      %v2317 = vpack.c.bf16 %v2304, %v2302
      %v2318 = vpack.c.bf16 %v2309, %v2307
      %v2319 = vpack.c.bf16 %v2312, %v2312
      %s2320 = scalar_lea.vmem %s5, 48
      %v2321 = vld [vmem:[%s2320] sm:$0xf]
      %v2322 = vld [vmem:[%s2320 + $0x4] sm:$0xf]
      %v2323 = vld [vmem:[%s2320 + $0x8] sm:$0xf]
      %v2324 = vld [vmem:[%s2320 + $0xc] sm:$0xf]
      %v2329 = vunpack.c.l.b16 %v2321
      %v2330 = vunpack.c.l.b16 %v2322
      %v2331 = vunpack.c.l.b16 %v2323
      %v2332 = vunpack.c.l.b16 %v2324
      %v2333 = vpack.c.b16 %v2330, %v2329
      %v2334 = vpack.c.b16 %v2332, %v2331
      %v2338 = vsel %vm1021, %v2315, 0
      %v2341 = vsel %vm1021, %v2316, 0
      %v2344 = vsel %vm1021, %v2317, 0
      %v2347 = vsel %vm1021, %v2318, 0
      %v2350 = vsel %vm1021, %v2319, 0
      %2352 = vmatpush.bf16.msra.mxu0 0
      %2353 = vmatpush.bf16.msra.mxu0 0
      %2354 = vmatpush.bf16.msra.mxu0 0
      %2355 = vmatpush.bf16.msra.mxu0 0
      %2356 = vmatpush.bf16.msra.mxu0 0
      %2357 = vmatpush.bf16.msra.mxu0 0
      %2358 = vmatpush.bf16.msra.mxu0 %v2334
      %2359 = vmatpush.bf16.msra.mxu0 %v2333
      %2360 = vmatmul.bf16.gmra.mxu0 %v2338
      %v2361 = vpop.f32.mrf.mxu0
      %v2362 = vadd.f32 0.0, %v2361
      %v2363 = vpop.f32.mrf.mxu0
      %v2364 = vadd.f32 0.0, %v2363
      %2365 = vmatmul.bf16.gmra.mxu0 %v2341
      %v2366 = vpop.f32.mrf.mxu0
      %v2367 = vadd.f32 0.0, %v2366
      %v2368 = vpop.f32.mrf.mxu0
      %v2369 = vadd.f32 0.0, %v2368
      %2370 = vmatmul.bf16.gmra.mxu0 %v2344
      %v2371 = vpop.f32.mrf.mxu0
      %v2372 = vadd.f32 0.0, %v2371
      %v2373 = vpop.f32.mrf.mxu0
      %v2374 = vadd.f32 0.0, %v2373
      %2375 = vmatmul.bf16.gmra.mxu0 %v2347
      %v2376 = vpop.f32.mrf.mxu0
      %v2377 = vadd.f32 0.0, %v2376
      %v2378 = vpop.f32.mrf.mxu0
      %v2379 = vadd.f32 0.0, %v2378
      %2380 = vmatmul.bf16.gmra.mxu0 %v2350
      %v2381 = vpop.f32.mrf.mxu0
      %v2382 = vadd.f32 0.0, %v2381
      %v2383 = vpop.f32.mrf.mxu0
      %2384 = vdwg.mxu0
      %v2385 = vadd.f32 %v2036, %v2362
      %v2386 = vadd.f32 %v2037, %v2364
      %v2387 = vadd.f32 %v2038, %v2367
      %v2388 = vadd.f32 %v2039, %v2369
      %v2389 = vadd.f32 %v2040, %v2372
      %v2390 = vadd.f32 %v2041, %v2374
      %v2391 = vadd.f32 %v2042, %v2377
      %v2392 = vadd.f32 %v2043, %v2379
      %v2393 = vadd.f32 %v2044, %v2382
      %v2394 = vadd.f32 %v451, %v2385
      %v2395 = vadd.f32 %v452, %v2386
      %v2396 = vadd.f32 %v453, %v2387
      %v2397 = vadd.f32 %v454, %v2388
      %v2398 = vadd.f32 %v455, %v2389
      %v2399 = vadd.f32 %v456, %v2390
      %v2400 = vadd.f32 %v457, %v2391
      %v2401 = vadd.f32 %v458, %v2392
      %v2402 = vadd.f32 %v459, %v2393
      %v2403 = vld [vmem:[%s6] sm:$0x1]
      %v2405 = vperm.slane %v2403, 0
      %v2407 = vadd.f32 %v2394, %v2405
      %v2408 = vadd.f32 %v2395, %v2405
      %v2409 = vadd.f32 %v2396, %v2405
      %v2410 = vadd.f32 %v2397, %v2405
      %v2411 = vadd.f32 %v2398, %v2405
      %v2412 = vadd.f32 %v2399, %v2405
      %v2413 = vadd.f32 %v2400, %v2405
      %v2414 = vadd.f32 %v2401, %v2405
      %v2415 = vadd.f32 %v2402, %v2405
      %v2416 = vld [vmem:[%s7] sm:$0x1]
      %v2417 = vld [vmem:[%s8] sm:$0x1]
      %2418 = vadd.xlane.f32.xlu0 %v2407
      %v2419 = vpop.xlane.xlu0 %2418
      %2420 = vadd.xlane.f32.xlu0 %v2408
      %v2421 = vpop.xlane.xlu0 %2420
      %2422 = vadd.xlane.f32.xlu0 %v2409
      %v2423 = vpop.xlane.xlu0 %2422
      %2424 = vadd.xlane.f32.xlu0 %v2410
      %v2425 = vpop.xlane.xlu0 %2424
      %2426 = vadd.xlane.f32.xlu0 %v2411
      %v2427 = vpop.xlane.xlu0 %2426
      %2428 = vadd.xlane.f32.xlu0 %v2412
      %v2429 = vpop.xlane.xlu0 %2428
      %2430 = vadd.xlane.f32.xlu0 %v2413
      %v2431 = vpop.xlane.xlu0 %2430
      %2432 = vadd.xlane.f32.xlu0 %v2414
      %v2433 = vpop.xlane.xlu0 %2432
      %2434 = vadd.xlane.f32.xlu0 %v2415
      %v2435 = vpop.xlane.xlu0 %2434
      %v2436 = vmul.f32 %v2419, %v486
      %v2437 = vmul.f32 %v2421, %v486
      %v2438 = vmul.f32 %v2423, %v486
      %v2439 = vmul.f32 %v2425, %v486
      %v2440 = vmul.f32 %v2427, %v486
      %v2441 = vmul.f32 %v2429, %v486
      %v2442 = vmul.f32 %v2431, %v486
      %v2443 = vmul.f32 %v2433, %v486
      %v2444 = vmul.f32 %v2435, %v486
      %v2445 = vsub.f32 %v2407, %v2436
      %v2446 = vsub.f32 %v2408, %v2437
      %v2447 = vsub.f32 %v2409, %v2438
      %v2448 = vsub.f32 %v2410, %v2439
      %v2449 = vsub.f32 %v2411, %v2440
      %v2450 = vsub.f32 %v2412, %v2441
      %v2451 = vsub.f32 %v2413, %v2442
      %v2452 = vsub.f32 %v2414, %v2443
      %v2453 = vsub.f32 %v2415, %v2444
      %v2454 = vmul.f32 %v2445, %v2445
      %v2455 = vmul.f32 %v2446, %v2446
      %v2456 = vmul.f32 %v2447, %v2447
      %v2457 = vmul.f32 %v2448, %v2448
      %v2458 = vmul.f32 %v2449, %v2449
      %v2459 = vmul.f32 %v2450, %v2450
      %v2460 = vmul.f32 %v2451, %v2451
      %v2461 = vmul.f32 %v2452, %v2452
      %v2462 = vmul.f32 %v2453, %v2453
      %2463 = vadd.xlane.f32.xlu0 %v2454
      %v2464 = vpop.xlane.xlu0 %2463
      %2465 = vadd.xlane.f32.xlu0 %v2455
      %v2466 = vpop.xlane.xlu0 %2465
      %2467 = vadd.xlane.f32.xlu0 %v2456
      %v2468 = vpop.xlane.xlu0 %2467
      %2469 = vadd.xlane.f32.xlu0 %v2457
      %v2470 = vpop.xlane.xlu0 %2469
      %2471 = vadd.xlane.f32.xlu0 %v2458
      %v2472 = vpop.xlane.xlu0 %2471
      %2473 = vadd.xlane.f32.xlu0 %v2459
      %v2474 = vpop.xlane.xlu0 %2473
      %2475 = vadd.xlane.f32.xlu0 %v2460
      %v2476 = vpop.xlane.xlu0 %2475
      %2477 = vadd.xlane.f32.xlu0 %v2461
      %v2478 = vpop.xlane.xlu0 %2477
      %2479 = vadd.xlane.f32.xlu0 %v2462
      %v2480 = vpop.xlane.xlu0 %2479
      %v2481 = vmul.f32 %v2464, %v486
      %v2482 = vmul.f32 %v2466, %v486
      %v2483 = vmul.f32 %v2468, %v486
      %v2484 = vmul.f32 %v2470, %v486
      %v2485 = vmul.f32 %v2472, %v486
      %v2486 = vmul.f32 %v2474, %v486
      %v2487 = vmul.f32 %v2476, %v486
      %v2488 = vmul.f32 %v2478, %v486
      %v2489 = vmul.f32 %v2480, %v486
      %v2490 = vadd.f32 %v2481, 1e-06
      %v2491 = vadd.f32 %v2482, 1e-06
      %v2492 = vadd.f32 %v2483, 1e-06
      %v2493 = vadd.f32 %v2484, 1e-06
      %v2494 = vadd.f32 %v2485, 1e-06
      %v2495 = vadd.f32 %v2486, 1e-06
      %v2496 = vadd.f32 %v2487, 1e-06
      %v2497 = vadd.f32 %v2488, 1e-06
      %v2498 = vadd.f32 %v2489, 1e-06
      %v2499 = vrsqrt.pop %v2490
      %v2500 = vmul.f32 %v2499, %v2490
      %v2501 = vmul.f32 %v2500, %v2499
      %v2502 = vmul.f32 0.5, %v2501
      %v2503 = vsub.f32 1.5, %v2502
      %v2504 = vmul.f32 %v2499, %v2503
      %vm2505 = vweird.f32 %v2490
      %vm2506 = vweird.f32 %v2499
      %vm2507 = vmor %vm2505, %vm2506
      %v2508 = vsel %vm2507, %v2499, %v2504
      %v2509 = vrsqrt.pop %v2491
      %v2510 = vmul.f32 %v2509, %v2491
      %v2511 = vmul.f32 %v2510, %v2509
      %v2512 = vmul.f32 0.5, %v2511
      %v2513 = vsub.f32 1.5, %v2512
      %v2514 = vmul.f32 %v2509, %v2513
      %vm2515 = vweird.f32 %v2491
      %vm2516 = vweird.f32 %v2509
      %vm2517 = vmor %vm2515, %vm2516
      %v2518 = vsel %vm2517, %v2509, %v2514
      %v2519 = vrsqrt.pop %v2492
      %v2520 = vmul.f32 %v2519, %v2492
      %v2521 = vmul.f32 %v2520, %v2519
      %v2522 = vmul.f32 0.5, %v2521
      %v2523 = vsub.f32 1.5, %v2522
      %v2524 = vmul.f32 %v2519, %v2523
      %vm2525 = vweird.f32 %v2492
      %vm2526 = vweird.f32 %v2519
      %vm2527 = vmor %vm2525, %vm2526
      %v2528 = vsel %vm2527, %v2519, %v2524
      %v2529 = vrsqrt.pop %v2493
      %v2530 = vmul.f32 %v2529, %v2493
      %v2531 = vmul.f32 %v2530, %v2529
      %v2532 = vmul.f32 0.5, %v2531
      %v2533 = vsub.f32 1.5, %v2532
      %v2534 = vmul.f32 %v2529, %v2533
      %vm2535 = vweird.f32 %v2493
      %vm2536 = vweird.f32 %v2529
      %vm2537 = vmor %vm2535, %vm2536
      %v2538 = vsel %vm2537, %v2529, %v2534
      %v2539 = vrsqrt.pop %v2494
      %v2540 = vmul.f32 %v2539, %v2494
      %v2541 = vmul.f32 %v2540, %v2539
      %v2542 = vmul.f32 0.5, %v2541
      %v2543 = vsub.f32 1.5, %v2542
      %v2544 = vmul.f32 %v2539, %v2543
      %vm2545 = vweird.f32 %v2494
      %vm2546 = vweird.f32 %v2539
      %vm2547 = vmor %vm2545, %vm2546
      %v2548 = vsel %vm2547, %v2539, %v2544
      %v2549 = vrsqrt.pop %v2495
      %v2550 = vmul.f32 %v2549, %v2495
      %v2551 = vmul.f32 %v2550, %v2549
      %v2552 = vmul.f32 0.5, %v2551
      %v2553 = vsub.f32 1.5, %v2552
      %v2554 = vmul.f32 %v2549, %v2553
      %vm2555 = vweird.f32 %v2495
      %vm2556 = vweird.f32 %v2549
      %vm2557 = vmor %vm2555, %vm2556
      %v2558 = vsel %vm2557, %v2549, %v2554
      %v2559 = vrsqrt.pop %v2496
      %v2560 = vmul.f32 %v2559, %v2496
      %v2561 = vmul.f32 %v2560, %v2559
      %v2562 = vmul.f32 0.5, %v2561
      %v2563 = vsub.f32 1.5, %v2562
      %v2564 = vmul.f32 %v2559, %v2563
      %vm2565 = vweird.f32 %v2496
      %vm2566 = vweird.f32 %v2559
      %vm2567 = vmor %vm2565, %vm2566
      %v2568 = vsel %vm2567, %v2559, %v2564
      %v2569 = vrsqrt.pop %v2497
      %v2570 = vmul.f32 %v2569, %v2497
      %v2571 = vmul.f32 %v2570, %v2569
      %v2572 = vmul.f32 0.5, %v2571
      %v2573 = vsub.f32 1.5, %v2572
      %v2574 = vmul.f32 %v2569, %v2573
      %vm2575 = vweird.f32 %v2497
      %vm2576 = vweird.f32 %v2569
      %vm2577 = vmor %vm2575, %vm2576
      %v2578 = vsel %vm2577, %v2569, %v2574
      %v2579 = vrsqrt.pop %v2498
      %v2580 = vmul.f32 %v2579, %v2498
      %v2581 = vmul.f32 %v2580, %v2579
      %v2582 = vmul.f32 0.5, %v2581
      %v2583 = vsub.f32 1.5, %v2582
      %v2584 = vmul.f32 %v2579, %v2583
      %vm2585 = vweird.f32 %v2498
      %vm2586 = vweird.f32 %v2579
      %vm2587 = vmor %vm2585, %vm2586
      %v2588 = vsel %vm2587, %v2579, %v2584
      %v2589 = vmul.f32 %v2445, %v2508
      %v2590 = vmul.f32 %v2446, %v2518
      %v2591 = vmul.f32 %v2447, %v2528
      %v2592 = vmul.f32 %v2448, %v2538
      %v2593 = vmul.f32 %v2449, %v2548
      %v2594 = vmul.f32 %v2450, %v2558
      %v2595 = vmul.f32 %v2451, %v2568
      %v2596 = vmul.f32 %v2452, %v2578
      %v2597 = vmul.f32 %v2453, %v2588
      %v2599 = vperm.slane %v2416, 0
      %v2601 = vmul.f32 %v2589, %v2599
      %v2602 = vmul.f32 %v2590, %v2599
      %v2603 = vmul.f32 %v2591, %v2599
      %v2604 = vmul.f32 %v2592, %v2599
      %v2605 = vmul.f32 %v2593, %v2599
      %v2606 = vmul.f32 %v2594, %v2599
      %v2607 = vmul.f32 %v2595, %v2599
      %v2608 = vmul.f32 %v2596, %v2599
      %v2609 = vmul.f32 %v2597, %v2599
      %v2611 = vperm.slane %v2417, 0
      %v2613 = vadd.f32 %v2601, %v2611
      %v2614 = vadd.f32 %v2602, %v2611
      %v2615 = vadd.f32 %v2603, %v2611
      %v2616 = vadd.f32 %v2604, %v2611
      %v2617 = vadd.f32 %v2605, %v2611
      %v2618 = vadd.f32 %v2606, %v2611
      %v2619 = vadd.f32 %v2607, %v2611
      %v2620 = vadd.f32 %v2608, %v2611
      %v2621 = vadd.f32 %v2609, %v2611
      %v2622 = vpack.c.bf16 %v2614, %v2613
      %v2623 = vpack.c.bf16 %v2616, %v2615
      %v2624 = vpack.c.bf16 %v2618, %v2617
      %v2625 = vpack.c.bf16 %v2620, %v2619
      %v2626 = vpack.c.bf16 %v2621, %v2621
      %v2627 = vld [vmem:[%s9] sm:$0xff]
      %v2628 = vld [vmem:[%s9 + $0x8] sm:$0xff]
      %v2629 = vld [vmem:[%s9 + $0x10] sm:$0xff]
      %v2630 = vld [vmem:[%s9 + $0x18] sm:$0xff]
      %v2631 = vld [vmem:[%s9 + $0x20] sm:$0xff]
      %v2632 = vld [vmem:[%s9 + $0x28] sm:$0xff]
      %v2633 = vld [vmem:[%s9 + $0x30] sm:$0xff]
      %v2634 = vld [vmem:[%s9 + $0x38] sm:$0xff]
      %v2635 = vld [vmem:[%s9 + $0x40] sm:$0xff]
      %v2636 = vld [vmem:[%s9 + $0x48] sm:$0xff]
      %v2637 = vld [vmem:[%s9 + $0x50] sm:$0xff]
      %v2638 = vld [vmem:[%s9 + $0x58] sm:$0xff]
      %v2639 = vld [vmem:[%s9 + $0x60] sm:$0xff]
      %v2640 = vld [vmem:[%s9 + $0x68] sm:$0xff]
      %v2641 = vld [vmem:[%s9 + $0x70] sm:$0xff]
      %v2642 = vld [vmem:[%s9 + $0x78] sm:$0xff]
      %v2643 = vld [vmem:[%s9 + $0x80] sm:$0xff]
      %v2644 = vld [vmem:[%s9 + $0x88] sm:$0xff]
      %v2645 = vld [vmem:[%s9 + $0x90] sm:$0xff]
      %v2646 = vld [vmem:[%s9 + $0x98] sm:$0xff]
      %v2647 = vld [vmem:[%s9 + $0xa0] sm:$0xff]
      %v2648 = vld [vmem:[%s9 + $0xa8] sm:$0xff]
      %v2649 = vld [vmem:[%s9 + $0xb0] sm:$0xff]
      %v2650 = vld [vmem:[%s9 + $0xb8] sm:$0xff]
      %v2651 = vld [vmem:[%s9 + $0xc0] sm:$0xff]
      %v2652 = vld [vmem:[%s9 + $0xc8] sm:$0xff]
      %v2653 = vld [vmem:[%s9 + $0xd0] sm:$0xff]
      %v2654 = vld [vmem:[%s9 + $0xd8] sm:$0xff]
      %v2655 = vld [vmem:[%s9 + $0xe0] sm:$0xff]
      %v2656 = vld [vmem:[%s9 + $0xe8] sm:$0xff]
      %v2657 = vld [vmem:[%s9 + $0xf0] sm:$0xff]
      %v2658 = vld [vmem:[%s9 + $0xf8] sm:$0xff]
      %v2659 = vld [vmem:[%s10] sm:$0xf]
      %v2661 = vperm.slane %v2659, 0
      %v2662 = vperm.slane %v2659, 1
      %v2663 = vperm.slane %v2659, 2
      %v2664 = vperm.slane %v2659, 3
      %v2701 = vunpack.c.l.b16 %v2627
      %v2702 = vunpack.c.h.b16 %v2627
      %v2703 = vunpack.c.l.b16 %v2628
      %v2704 = vunpack.c.h.b16 %v2628
      %v2705 = vunpack.c.l.b16 %v2629
      %v2706 = vunpack.c.h.b16 %v2629
      %v2707 = vunpack.c.l.b16 %v2630
      %v2708 = vunpack.c.h.b16 %v2630
      %v2709 = vunpack.c.l.b16 %v2631
      %v2710 = vunpack.c.h.b16 %v2631
      %v2711 = vunpack.c.l.b16 %v2632
      %v2712 = vunpack.c.h.b16 %v2632
      %v2713 = vunpack.c.l.b16 %v2633
      %v2714 = vunpack.c.h.b16 %v2633
      %v2715 = vunpack.c.l.b16 %v2634
      %v2716 = vunpack.c.h.b16 %v2634
      %v2717 = vunpack.c.l.b16 %v2635
      %v2718 = vunpack.c.h.b16 %v2635
      %v2719 = vunpack.c.l.b16 %v2636
      %v2720 = vunpack.c.h.b16 %v2636
      %v2721 = vunpack.c.l.b16 %v2637
      %v2722 = vunpack.c.h.b16 %v2637
      %v2723 = vunpack.c.l.b16 %v2638
      %v2724 = vunpack.c.h.b16 %v2638
      %v2725 = vunpack.c.l.b16 %v2639
      %v2726 = vunpack.c.h.b16 %v2639
      %v2727 = vunpack.c.l.b16 %v2640
      %v2728 = vunpack.c.h.b16 %v2640
      %v2729 = vunpack.c.l.b16 %v2641
      %v2730 = vunpack.c.h.b16 %v2641
      %v2731 = vunpack.c.l.b16 %v2642
      %v2732 = vunpack.c.h.b16 %v2642
      %v2733 = vunpack.c.l.b16 %v2643
      %v2734 = vunpack.c.h.b16 %v2643
      %v2735 = vunpack.c.l.b16 %v2644
      %v2736 = vunpack.c.h.b16 %v2644
      %v2737 = vunpack.c.l.b16 %v2645
      %v2738 = vunpack.c.h.b16 %v2645
      %v2739 = vunpack.c.l.b16 %v2646
      %v2740 = vunpack.c.h.b16 %v2646
      %v2741 = vunpack.c.l.b16 %v2647
      %v2742 = vunpack.c.h.b16 %v2647
      %v2743 = vunpack.c.l.b16 %v2648
      %v2744 = vunpack.c.h.b16 %v2648
      %v2745 = vunpack.c.l.b16 %v2649
      %v2746 = vunpack.c.h.b16 %v2649
      %v2747 = vunpack.c.l.b16 %v2650
      %v2748 = vunpack.c.h.b16 %v2650
      %v2749 = vunpack.c.l.b16 %v2651
      %v2750 = vunpack.c.h.b16 %v2651
      %v2751 = vunpack.c.l.b16 %v2652
      %v2752 = vunpack.c.h.b16 %v2652
      %v2753 = vunpack.c.l.b16 %v2653
      %v2754 = vunpack.c.h.b16 %v2653
      %v2755 = vunpack.c.l.b16 %v2654
      %v2756 = vunpack.c.h.b16 %v2654
      %v2757 = vunpack.c.l.b16 %v2655
      %v2758 = vunpack.c.h.b16 %v2655
      %v2759 = vunpack.c.l.b16 %v2656
      %v2760 = vunpack.c.h.b16 %v2656
      %v2761 = vunpack.c.l.b16 %v2657
      %v2762 = vunpack.c.h.b16 %v2657
      %v2763 = vunpack.c.l.b16 %v2658
      %v2764 = vunpack.c.h.b16 %v2658
      %v2765 = vpack.c.b16 %v2705, %v2701
      %v2766 = vpack.c.b16 %v2706, %v2702
      %v2767 = vpack.c.b16 %v2707, %v2703
      %v2768 = vpack.c.b16 %v2708, %v2704
      %v2769 = vpack.c.b16 %v2713, %v2709
      %v2770 = vpack.c.b16 %v2714, %v2710
      %v2771 = vpack.c.b16 %v2715, %v2711
      %v2772 = vpack.c.b16 %v2716, %v2712
      %v2773 = vpack.c.b16 %v2721, %v2717
      %v2774 = vpack.c.b16 %v2722, %v2718
      %v2775 = vpack.c.b16 %v2723, %v2719
      %v2776 = vpack.c.b16 %v2724, %v2720
      %v2777 = vpack.c.b16 %v2729, %v2725
      %v2778 = vpack.c.b16 %v2730, %v2726
      %v2779 = vpack.c.b16 %v2731, %v2727
      %v2780 = vpack.c.b16 %v2732, %v2728
      %v2781 = vpack.c.b16 %v2737, %v2733
      %v2782 = vpack.c.b16 %v2738, %v2734
      %v2783 = vpack.c.b16 %v2739, %v2735
      %v2784 = vpack.c.b16 %v2740, %v2736
      %v2785 = vpack.c.b16 %v2745, %v2741
      %v2786 = vpack.c.b16 %v2746, %v2742
      %v2787 = vpack.c.b16 %v2747, %v2743
      %v2788 = vpack.c.b16 %v2748, %v2744
      %v2789 = vpack.c.b16 %v2753, %v2749
      %v2790 = vpack.c.b16 %v2754, %v2750
      %v2791 = vpack.c.b16 %v2755, %v2751
      %v2792 = vpack.c.b16 %v2756, %v2752
      %v2793 = vpack.c.b16 %v2761, %v2757
      %v2794 = vpack.c.b16 %v2762, %v2758
      %v2795 = vpack.c.b16 %v2763, %v2759
      %v2796 = vpack.c.b16 %v2764, %v2760
      %2829 = vmatpush.bf16.msra.mxu0 %v2793
      %2830 = vmatpush.bf16.msra.mxu0 %v2789
      %2831 = vmatpush.bf16.msra.mxu0 %v2785
      %2832 = vmatpush.bf16.msra.mxu0 %v2781
      %2833 = vmatpush.bf16.msra.mxu0 %v2777
      %2834 = vmatpush.bf16.msra.mxu0 %v2773
      %2835 = vmatpush.bf16.msra.mxu0 %v2769
      %2836 = vmatpush.bf16.msra.mxu0 %v2765
      %2837 = vmatmul.bf16.gmra.mxu0 %v2622
      %v2838 = vpop.f32.mrf.mxu0
      %v2839 = vadd.f32 %v2661, %v2838
      %v2840 = vpop.f32.mrf.mxu0
      %v2841 = vadd.f32 %v2661, %v2840
      %2842 = vmatmul.bf16.gmra.mxu0 %v2623
      %v2843 = vpop.f32.mrf.mxu0
      %v2844 = vadd.f32 %v2661, %v2843
      %v2845 = vpop.f32.mrf.mxu0
      %v2846 = vadd.f32 %v2661, %v2845
      %2847 = vmatmul.bf16.gmra.mxu0 %v2624
      %v2848 = vpop.f32.mrf.mxu0
      %v2849 = vadd.f32 %v2661, %v2848
      %v2850 = vpop.f32.mrf.mxu0
      %v2851 = vadd.f32 %v2661, %v2850
      %2852 = vmatmul.bf16.gmra.mxu0 %v2625
      %v2853 = vpop.f32.mrf.mxu0
      %v2854 = vadd.f32 %v2661, %v2853
      %v2855 = vpop.f32.mrf.mxu0
      %v2856 = vadd.f32 %v2661, %v2855
      %2857 = vmatmul.bf16.gmra.mxu0 %v2626
      %v2858 = vpop.f32.mrf.mxu0
      %v2859 = vadd.f32 %v2661, %v2858
      %v2860 = vpop.f32.mrf.mxu0
      %2861 = vdwg.mxu0
      %2862 = vmatpush.bf16.msra.mxu0 %v2794
      %2863 = vmatpush.bf16.msra.mxu0 %v2790
      %2864 = vmatpush.bf16.msra.mxu0 %v2786
      %2865 = vmatpush.bf16.msra.mxu0 %v2782
      %2866 = vmatpush.bf16.msra.mxu0 %v2778
      %2867 = vmatpush.bf16.msra.mxu0 %v2774
      %2868 = vmatpush.bf16.msra.mxu0 %v2770
      %2869 = vmatpush.bf16.msra.mxu0 %v2766
      %2870 = vmatmul.bf16.gmra.mxu0 %v2622
      %v2871 = vpop.f32.mrf.mxu0
      %v2872 = vadd.f32 %v2662, %v2871
      %v2873 = vpop.f32.mrf.mxu0
      %v2874 = vadd.f32 %v2662, %v2873
      %2875 = vmatmul.bf16.gmra.mxu0 %v2623
      %v2876 = vpop.f32.mrf.mxu0
      %v2877 = vadd.f32 %v2662, %v2876
      %v2878 = vpop.f32.mrf.mxu0
      %v2879 = vadd.f32 %v2662, %v2878
      %2880 = vmatmul.bf16.gmra.mxu0 %v2624
      %v2881 = vpop.f32.mrf.mxu0
      %v2882 = vadd.f32 %v2662, %v2881
      %v2883 = vpop.f32.mrf.mxu0
      %v2884 = vadd.f32 %v2662, %v2883
      %2885 = vmatmul.bf16.gmra.mxu0 %v2625
      %v2886 = vpop.f32.mrf.mxu0
      %v2887 = vadd.f32 %v2662, %v2886
      %v2888 = vpop.f32.mrf.mxu0
      %v2889 = vadd.f32 %v2662, %v2888
      %2890 = vmatmul.bf16.gmra.mxu0 %v2626
      %v2891 = vpop.f32.mrf.mxu0
      %v2892 = vadd.f32 %v2662, %v2891
      %v2893 = vpop.f32.mrf.mxu0
      %2894 = vdwg.mxu0
      %2895 = vmatpush.bf16.msra.mxu0 %v2795
      %2896 = vmatpush.bf16.msra.mxu0 %v2791
      %2897 = vmatpush.bf16.msra.mxu0 %v2787
      %2898 = vmatpush.bf16.msra.mxu0 %v2783
      %2899 = vmatpush.bf16.msra.mxu0 %v2779
      %2900 = vmatpush.bf16.msra.mxu0 %v2775
      %2901 = vmatpush.bf16.msra.mxu0 %v2771
      %2902 = vmatpush.bf16.msra.mxu0 %v2767
      %2903 = vmatmul.bf16.gmra.mxu0 %v2622
      %v2904 = vpop.f32.mrf.mxu0
      %v2905 = vadd.f32 %v2663, %v2904
      %v2906 = vpop.f32.mrf.mxu0
      %v2907 = vadd.f32 %v2663, %v2906
      %2908 = vmatmul.bf16.gmra.mxu0 %v2623
      %v2909 = vpop.f32.mrf.mxu0
      %v2910 = vadd.f32 %v2663, %v2909
      %v2911 = vpop.f32.mrf.mxu0
      %v2912 = vadd.f32 %v2663, %v2911
      %2913 = vmatmul.bf16.gmra.mxu0 %v2624
      %v2914 = vpop.f32.mrf.mxu0
      %v2915 = vadd.f32 %v2663, %v2914
      %v2916 = vpop.f32.mrf.mxu0
      %v2917 = vadd.f32 %v2663, %v2916
      %2918 = vmatmul.bf16.gmra.mxu0 %v2625
      %v2919 = vpop.f32.mrf.mxu0
      %v2920 = vadd.f32 %v2663, %v2919
      %v2921 = vpop.f32.mrf.mxu0
      %v2922 = vadd.f32 %v2663, %v2921
      %2923 = vmatmul.bf16.gmra.mxu0 %v2626
      %v2924 = vpop.f32.mrf.mxu0
      %v2925 = vadd.f32 %v2663, %v2924
      %v2926 = vpop.f32.mrf.mxu0
      %2927 = vdwg.mxu0
      %2928 = vmatpush.bf16.msra.mxu0 %v2796
      %2929 = vmatpush.bf16.msra.mxu0 %v2792
      %2930 = vmatpush.bf16.msra.mxu0 %v2788
      %2931 = vmatpush.bf16.msra.mxu0 %v2784
      %2932 = vmatpush.bf16.msra.mxu0 %v2780
      %2933 = vmatpush.bf16.msra.mxu0 %v2776
      %2934 = vmatpush.bf16.msra.mxu0 %v2772
      %2935 = vmatpush.bf16.msra.mxu0 %v2768
      %2936 = vmatmul.bf16.gmra.mxu0 %v2622
      %v2937 = vpop.f32.mrf.mxu0
      %v2938 = vadd.f32 %v2664, %v2937
      %v2939 = vpop.f32.mrf.mxu0
      %v2940 = vadd.f32 %v2664, %v2939
      %2941 = vmatmul.bf16.gmra.mxu0 %v2623
      %v2942 = vpop.f32.mrf.mxu0
      %v2943 = vadd.f32 %v2664, %v2942
      %v2944 = vpop.f32.mrf.mxu0
      %v2945 = vadd.f32 %v2664, %v2944
      %2946 = vmatmul.bf16.gmra.mxu0 %v2624
      %v2947 = vpop.f32.mrf.mxu0
      %v2948 = vadd.f32 %v2664, %v2947
      %v2949 = vpop.f32.mrf.mxu0
      %v2950 = vadd.f32 %v2664, %v2949
      %2951 = vmatmul.bf16.gmra.mxu0 %v2625
      %v2952 = vpop.f32.mrf.mxu0
      %v2953 = vadd.f32 %v2664, %v2952
      %v2954 = vpop.f32.mrf.mxu0
      %v2955 = vadd.f32 %v2664, %v2954
      %2956 = vmatmul.bf16.gmra.mxu0 %v2626
      %v2957 = vpop.f32.mrf.mxu0
      %v2958 = vadd.f32 %v2664, %v2957
      %v2959 = vpop.f32.mrf.mxu0
      %2960 = vdwg.mxu0
      %v2961 = vmul.f32 %v2839, %v2839
      %v2962 = vmul.f32 %v2872, %v2872
      %v2963 = vmul.f32 %v2905, %v2905
      %v2964 = vmul.f32 %v2938, %v2938
      %v2965 = vmul.f32 %v2841, %v2841
      %v2966 = vmul.f32 %v2874, %v2874
      %v2967 = vmul.f32 %v2907, %v2907
      %v2968 = vmul.f32 %v2940, %v2940
      %v2969 = vmul.f32 %v2844, %v2844
      %v2970 = vmul.f32 %v2877, %v2877
      %v2971 = vmul.f32 %v2910, %v2910
      %v2972 = vmul.f32 %v2943, %v2943
      %v2973 = vmul.f32 %v2846, %v2846
      %v2974 = vmul.f32 %v2879, %v2879
      %v2975 = vmul.f32 %v2912, %v2912
      %v2976 = vmul.f32 %v2945, %v2945
      %v2977 = vmul.f32 %v2849, %v2849
      %v2978 = vmul.f32 %v2882, %v2882
      %v2979 = vmul.f32 %v2915, %v2915
      %v2980 = vmul.f32 %v2948, %v2948
      %v2981 = vmul.f32 %v2851, %v2851
      %v2982 = vmul.f32 %v2884, %v2884
      %v2983 = vmul.f32 %v2917, %v2917
      %v2984 = vmul.f32 %v2950, %v2950
      %v2985 = vmul.f32 %v2854, %v2854
      %v2986 = vmul.f32 %v2887, %v2887
      %v2987 = vmul.f32 %v2920, %v2920
      %v2988 = vmul.f32 %v2953, %v2953
      %v2989 = vmul.f32 %v2856, %v2856
      %v2990 = vmul.f32 %v2889, %v2889
      %v2991 = vmul.f32 %v2922, %v2922
      %v2992 = vmul.f32 %v2955, %v2955
      %v2993 = vmul.f32 %v2859, %v2859
      %v2994 = vmul.f32 %v2892, %v2892
      %v2995 = vmul.f32 %v2925, %v2925
      %v2996 = vmul.f32 %v2958, %v2958
      %v2997 = vmul.f32 %v2839, %v2961
      %v2998 = vmul.f32 %v2872, %v2962
      %v2999 = vmul.f32 %v2905, %v2963
      %v3000 = vmul.f32 %v2938, %v2964
      %v3001 = vmul.f32 %v2841, %v2965
      %v3002 = vmul.f32 %v2874, %v2966
      %v3003 = vmul.f32 %v2907, %v2967
      %v3004 = vmul.f32 %v2940, %v2968
      %v3005 = vmul.f32 %v2844, %v2969
      %v3006 = vmul.f32 %v2877, %v2970
      %v3007 = vmul.f32 %v2910, %v2971
      %v3008 = vmul.f32 %v2943, %v2972
      %v3009 = vmul.f32 %v2846, %v2973
      %v3010 = vmul.f32 %v2879, %v2974
      %v3011 = vmul.f32 %v2912, %v2975
      %v3012 = vmul.f32 %v2945, %v2976
      %v3013 = vmul.f32 %v2849, %v2977
      %v3014 = vmul.f32 %v2882, %v2978
      %v3015 = vmul.f32 %v2915, %v2979
      %v3016 = vmul.f32 %v2948, %v2980
      %v3017 = vmul.f32 %v2851, %v2981
      %v3018 = vmul.f32 %v2884, %v2982
      %v3019 = vmul.f32 %v2917, %v2983
      %v3020 = vmul.f32 %v2950, %v2984
      %v3021 = vmul.f32 %v2854, %v2985
      %v3022 = vmul.f32 %v2887, %v2986
      %v3023 = vmul.f32 %v2920, %v2987
      %v3024 = vmul.f32 %v2953, %v2988
      %v3025 = vmul.f32 %v2856, %v2989
      %v3026 = vmul.f32 %v2889, %v2990
      %v3027 = vmul.f32 %v2922, %v2991
      %v3028 = vmul.f32 %v2955, %v2992
      %v3029 = vmul.f32 %v2859, %v2993
      %v3030 = vmul.f32 %v2892, %v2994
      %v3031 = vmul.f32 %v2925, %v2995
      %v3032 = vmul.f32 %v2958, %v2996
      %v3033 = vmul.f32 %v2997, 0.044715
      %v3034 = vmul.f32 %v2998, 0.044715
      %v3035 = vmul.f32 %v2999, 0.044715
      %v3036 = vmul.f32 %v3000, 0.044715
      %v3037 = vmul.f32 %v3001, 0.044715
      %v3038 = vmul.f32 %v3002, 0.044715
      %v3039 = vmul.f32 %v3003, 0.044715
      %v3040 = vmul.f32 %v3004, 0.044715
      %v3041 = vmul.f32 %v3005, 0.044715
      %v3042 = vmul.f32 %v3006, 0.044715
      %v3043 = vmul.f32 %v3007, 0.044715
      %v3044 = vmul.f32 %v3008, 0.044715
      %v3045 = vmul.f32 %v3009, 0.044715
      %v3046 = vmul.f32 %v3010, 0.044715
      %v3047 = vmul.f32 %v3011, 0.044715
      %v3048 = vmul.f32 %v3012, 0.044715
      %v3049 = vmul.f32 %v3013, 0.044715
      %v3050 = vmul.f32 %v3014, 0.044715
      %v3051 = vmul.f32 %v3015, 0.044715
      %v3052 = vmul.f32 %v3016, 0.044715
      %v3053 = vmul.f32 %v3017, 0.044715
      %v3054 = vmul.f32 %v3018, 0.044715
      %v3055 = vmul.f32 %v3019, 0.044715
      %v3056 = vmul.f32 %v3020, 0.044715
      %v3057 = vmul.f32 %v3021, 0.044715
      %v3058 = vmul.f32 %v3022, 0.044715
      %v3059 = vmul.f32 %v3023, 0.044715
      %v3060 = vmul.f32 %v3024, 0.044715
      %v3061 = vmul.f32 %v3025, 0.044715
      %v3062 = vmul.f32 %v3026, 0.044715
      %v3063 = vmul.f32 %v3027, 0.044715
      %v3064 = vmul.f32 %v3028, 0.044715
      %v3065 = vmul.f32 %v3029, 0.044715
      %v3066 = vmul.f32 %v3030, 0.044715
      %v3067 = vmul.f32 %v3031, 0.044715
      %v3068 = vmul.f32 %v3032, 0.044715
      %v3069 = vadd.f32 %v2839, %v3033
      %v3070 = vadd.f32 %v2872, %v3034
      %v3071 = vadd.f32 %v2905, %v3035
      %v3072 = vadd.f32 %v2938, %v3036
      %v3073 = vadd.f32 %v2841, %v3037
      %v3074 = vadd.f32 %v2874, %v3038
      %v3075 = vadd.f32 %v2907, %v3039
      %v3076 = vadd.f32 %v2940, %v3040
      %v3077 = vadd.f32 %v2844, %v3041
      %v3078 = vadd.f32 %v2877, %v3042
      %v3079 = vadd.f32 %v2910, %v3043
      %v3080 = vadd.f32 %v2943, %v3044
      %v3081 = vadd.f32 %v2846, %v3045
      %v3082 = vadd.f32 %v2879, %v3046
      %v3083 = vadd.f32 %v2912, %v3047
      %v3084 = vadd.f32 %v2945, %v3048
      %v3085 = vadd.f32 %v2849, %v3049
      %v3086 = vadd.f32 %v2882, %v3050
      %v3087 = vadd.f32 %v2915, %v3051
      %v3088 = vadd.f32 %v2948, %v3052
      %v3089 = vadd.f32 %v2851, %v3053
      %v3090 = vadd.f32 %v2884, %v3054
      %v3091 = vadd.f32 %v2917, %v3055
      %v3092 = vadd.f32 %v2950, %v3056
      %v3093 = vadd.f32 %v2854, %v3057
      %v3094 = vadd.f32 %v2887, %v3058
      %v3095 = vadd.f32 %v2920, %v3059
      %v3096 = vadd.f32 %v2953, %v3060
      %v3097 = vadd.f32 %v2856, %v3061
      %v3098 = vadd.f32 %v2889, %v3062
      %v3099 = vadd.f32 %v2922, %v3063
      %v3100 = vadd.f32 %v2955, %v3064
      %v3101 = vadd.f32 %v2859, %v3065
      %v3102 = vadd.f32 %v2892, %v3066
      %v3103 = vadd.f32 %v2925, %v3067
      %v3104 = vadd.f32 %v2958, %v3068
      %v3105 = vmul.f32 %v3069, 0.7978846
      %v3106 = vmul.f32 %v3070, 0.7978846
      %v3107 = vmul.f32 %v3071, 0.7978846
      %v3108 = vmul.f32 %v3072, 0.7978846
      %v3109 = vmul.f32 %v3073, 0.7978846
      %v3110 = vmul.f32 %v3074, 0.7978846
      %v3111 = vmul.f32 %v3075, 0.7978846
      %v3112 = vmul.f32 %v3076, 0.7978846
      %v3113 = vmul.f32 %v3077, 0.7978846
      %v3114 = vmul.f32 %v3078, 0.7978846
      %v3115 = vmul.f32 %v3079, 0.7978846
      %v3116 = vmul.f32 %v3080, 0.7978846
      %v3117 = vmul.f32 %v3081, 0.7978846
      %v3118 = vmul.f32 %v3082, 0.7978846
      %v3119 = vmul.f32 %v3083, 0.7978846
      %v3120 = vmul.f32 %v3084, 0.7978846
      %v3121 = vmul.f32 %v3085, 0.7978846
      %v3122 = vmul.f32 %v3086, 0.7978846
      %v3123 = vmul.f32 %v3087, 0.7978846
      %v3124 = vmul.f32 %v3088, 0.7978846
      %v3125 = vmul.f32 %v3089, 0.7978846
      %v3126 = vmul.f32 %v3090, 0.7978846
      %v3127 = vmul.f32 %v3091, 0.7978846
      %v3128 = vmul.f32 %v3092, 0.7978846
      %v3129 = vmul.f32 %v3093, 0.7978846
      %v3130 = vmul.f32 %v3094, 0.7978846
      %v3131 = vmul.f32 %v3095, 0.7978846
      %v3132 = vmul.f32 %v3096, 0.7978846
      %v3133 = vmul.f32 %v3097, 0.7978846
      %v3134 = vmul.f32 %v3098, 0.7978846
      %v3135 = vmul.f32 %v3099, 0.7978846
      %v3136 = vmul.f32 %v3100, 0.7978846
      %v3137 = vmul.f32 %v3101, 0.7978846
      %v3138 = vmul.f32 %v3102, 0.7978846
      %v3139 = vmul.f32 %v3103, 0.7978846
      %v3140 = vmul.f32 %v3104, 0.7978846
      %v3141 = vtanh.pop %v3105
      %v3142 = vtanh.pop %v3106
      %v3143 = vtanh.pop %v3107
      %v3144 = vtanh.pop %v3108
      %v3145 = vtanh.pop %v3109
      %v3146 = vtanh.pop %v3110
      %v3147 = vtanh.pop %v3111
      %v3148 = vtanh.pop %v3112
      %v3149 = vtanh.pop %v3113
      %v3150 = vtanh.pop %v3114
      %v3151 = vtanh.pop %v3115
      %v3152 = vtanh.pop %v3116
      %v3153 = vtanh.pop %v3117
      %v3154 = vtanh.pop %v3118
      %v3155 = vtanh.pop %v3119
      %v3156 = vtanh.pop %v3120
      %v3157 = vtanh.pop %v3121
      %v3158 = vtanh.pop %v3122
      %v3159 = vtanh.pop %v3123
      %v3160 = vtanh.pop %v3124
      %v3161 = vtanh.pop %v3125
      %v3162 = vtanh.pop %v3126
      %v3163 = vtanh.pop %v3127
      %v3164 = vtanh.pop %v3128
      %v3165 = vtanh.pop %v3129
      %v3166 = vtanh.pop %v3130
      %v3167 = vtanh.pop %v3131
      %v3168 = vtanh.pop %v3132
      %v3169 = vtanh.pop %v3133
      %v3170 = vtanh.pop %v3134
      %v3171 = vtanh.pop %v3135
      %v3172 = vtanh.pop %v3136
      %v3173 = vtanh.pop %v3137
      %v3174 = vtanh.pop %v3138
      %v3175 = vtanh.pop %v3139
      %v3176 = vtanh.pop %v3140
      %v3177 = vadd.f32 %v3141, 1.0
      %v3178 = vadd.f32 %v3142, 1.0
      %v3179 = vadd.f32 %v3143, 1.0
      %v3180 = vadd.f32 %v3144, 1.0
      %v3181 = vadd.f32 %v3145, 1.0
      %v3182 = vadd.f32 %v3146, 1.0
      %v3183 = vadd.f32 %v3147, 1.0
      %v3184 = vadd.f32 %v3148, 1.0
      %v3185 = vadd.f32 %v3149, 1.0
      %v3186 = vadd.f32 %v3150, 1.0
      %v3187 = vadd.f32 %v3151, 1.0
      %v3188 = vadd.f32 %v3152, 1.0
      %v3189 = vadd.f32 %v3153, 1.0
      %v3190 = vadd.f32 %v3154, 1.0
      %v3191 = vadd.f32 %v3155, 1.0
      %v3192 = vadd.f32 %v3156, 1.0
      %v3193 = vadd.f32 %v3157, 1.0
      %v3194 = vadd.f32 %v3158, 1.0
      %v3195 = vadd.f32 %v3159, 1.0
      %v3196 = vadd.f32 %v3160, 1.0
      %v3197 = vadd.f32 %v3161, 1.0
      %v3198 = vadd.f32 %v3162, 1.0
      %v3199 = vadd.f32 %v3163, 1.0
      %v3200 = vadd.f32 %v3164, 1.0
      %v3201 = vadd.f32 %v3165, 1.0
      %v3202 = vadd.f32 %v3166, 1.0
      %v3203 = vadd.f32 %v3167, 1.0
      %v3204 = vadd.f32 %v3168, 1.0
      %v3205 = vadd.f32 %v3169, 1.0
      %v3206 = vadd.f32 %v3170, 1.0
      %v3207 = vadd.f32 %v3171, 1.0
      %v3208 = vadd.f32 %v3172, 1.0
      %v3209 = vadd.f32 %v3173, 1.0
      %v3210 = vadd.f32 %v3174, 1.0
      %v3211 = vadd.f32 %v3175, 1.0
      %v3212 = vadd.f32 %v3176, 1.0
      %v3213 = vmul.f32 %v3177, 0.5
      %v3214 = vmul.f32 %v3178, 0.5
      %v3215 = vmul.f32 %v3179, 0.5
      %v3216 = vmul.f32 %v3180, 0.5
      %v3217 = vmul.f32 %v3181, 0.5
      %v3218 = vmul.f32 %v3182, 0.5
      %v3219 = vmul.f32 %v3183, 0.5
      %v3220 = vmul.f32 %v3184, 0.5
      %v3221 = vmul.f32 %v3185, 0.5
      %v3222 = vmul.f32 %v3186, 0.5
      %v3223 = vmul.f32 %v3187, 0.5
      %v3224 = vmul.f32 %v3188, 0.5
      %v3225 = vmul.f32 %v3189, 0.5
      %v3226 = vmul.f32 %v3190, 0.5
      %v3227 = vmul.f32 %v3191, 0.5
      %v3228 = vmul.f32 %v3192, 0.5
      %v3229 = vmul.f32 %v3193, 0.5
      %v3230 = vmul.f32 %v3194, 0.5
      %v3231 = vmul.f32 %v3195, 0.5
      %v3232 = vmul.f32 %v3196, 0.5
      %v3233 = vmul.f32 %v3197, 0.5
      %v3234 = vmul.f32 %v3198, 0.5
      %v3235 = vmul.f32 %v3199, 0.5
      %v3236 = vmul.f32 %v3200, 0.5
      %v3237 = vmul.f32 %v3201, 0.5
      %v3238 = vmul.f32 %v3202, 0.5
      %v3239 = vmul.f32 %v3203, 0.5
      %v3240 = vmul.f32 %v3204, 0.5
      %v3241 = vmul.f32 %v3205, 0.5
      %v3242 = vmul.f32 %v3206, 0.5
      %v3243 = vmul.f32 %v3207, 0.5
      %v3244 = vmul.f32 %v3208, 0.5
      %v3245 = vmul.f32 %v3209, 0.5
      %v3246 = vmul.f32 %v3210, 0.5
      %v3247 = vmul.f32 %v3211, 0.5
      %v3248 = vmul.f32 %v3212, 0.5
      %v3249 = vmul.f32 %v2839, %v3213
      %v3250 = vmul.f32 %v2872, %v3214
      %v3251 = vmul.f32 %v2905, %v3215
      %v3252 = vmul.f32 %v2938, %v3216
      %v3253 = vmul.f32 %v2841, %v3217
      %v3254 = vmul.f32 %v2874, %v3218
      %v3255 = vmul.f32 %v2907, %v3219
      %v3256 = vmul.f32 %v2940, %v3220
      %v3257 = vmul.f32 %v2844, %v3221
      %v3258 = vmul.f32 %v2877, %v3222
      %v3259 = vmul.f32 %v2910, %v3223
      %v3260 = vmul.f32 %v2943, %v3224
      %v3261 = vmul.f32 %v2846, %v3225
      %v3262 = vmul.f32 %v2879, %v3226
      %v3263 = vmul.f32 %v2912, %v3227
      %v3264 = vmul.f32 %v2945, %v3228
      %v3265 = vmul.f32 %v2849, %v3229
      %v3266 = vmul.f32 %v2882, %v3230
      %v3267 = vmul.f32 %v2915, %v3231
      %v3268 = vmul.f32 %v2948, %v3232
      %v3269 = vmul.f32 %v2851, %v3233
      %v3270 = vmul.f32 %v2884, %v3234
      %v3271 = vmul.f32 %v2917, %v3235
      %v3272 = vmul.f32 %v2950, %v3236
      %v3273 = vmul.f32 %v2854, %v3237
      %v3274 = vmul.f32 %v2887, %v3238
      %v3275 = vmul.f32 %v2920, %v3239
      %v3276 = vmul.f32 %v2953, %v3240
      %v3277 = vmul.f32 %v2856, %v3241
      %v3278 = vmul.f32 %v2889, %v3242
      %v3279 = vmul.f32 %v2922, %v3243
      %v3280 = vmul.f32 %v2955, %v3244
      %v3281 = vmul.f32 %v2859, %v3245
      %v3282 = vmul.f32 %v2892, %v3246
      %v3283 = vmul.f32 %v2925, %v3247
      %v3284 = vmul.f32 %v2958, %v3248
      %v3285 = vpack.c.bf16 %v3253, %v3249
      %v3286 = vpack.c.bf16 %v3254, %v3250
      %v3287 = vpack.c.bf16 %v3255, %v3251
      %v3288 = vpack.c.bf16 %v3256, %v3252
      %v3289 = vpack.c.bf16 %v3261, %v3257
      %v3290 = vpack.c.bf16 %v3262, %v3258
      %v3291 = vpack.c.bf16 %v3263, %v3259
      %v3292 = vpack.c.bf16 %v3264, %v3260
      %v3293 = vpack.c.bf16 %v3269, %v3265
      %v3294 = vpack.c.bf16 %v3270, %v3266
      %v3295 = vpack.c.bf16 %v3271, %v3267
      %v3296 = vpack.c.bf16 %v3272, %v3268
      %v3297 = vpack.c.bf16 %v3277, %v3273
      %v3298 = vpack.c.bf16 %v3278, %v3274
      %v3299 = vpack.c.bf16 %v3279, %v3275
      %v3300 = vpack.c.bf16 %v3280, %v3276
      %v3301 = vpack.c.bf16 %v3281, %v3281
      %v3302 = vpack.c.bf16 %v3282, %v3282
      %v3303 = vpack.c.bf16 %v3283, %v3283
      %v3304 = vpack.c.bf16 %v3284, %v3284
      %v3305 = vld [vmem:[%s11] sm:$0xf]
      %v3306 = vld [vmem:[%s11 + $0x4] sm:$0xf]
      %v3307 = vld [vmem:[%s11 + $0x8] sm:$0xf]
      %v3308 = vld [vmem:[%s11 + $0xc] sm:$0xf]
      %v3309 = vld [vmem:[%s11 + $0x10] sm:$0xf]
      %v3310 = vld [vmem:[%s11 + $0x14] sm:$0xf]
      %v3311 = vld [vmem:[%s11 + $0x18] sm:$0xf]
      %v3312 = vld [vmem:[%s11 + $0x1c] sm:$0xf]
      %v3313 = vld [vmem:[%s11 + $0x20] sm:$0xf]
      %v3314 = vld [vmem:[%s11 + $0x24] sm:$0xf]
      %v3315 = vld [vmem:[%s11 + $0x28] sm:$0xf]
      %v3316 = vld [vmem:[%s11 + $0x2c] sm:$0xf]
      %v3317 = vld [vmem:[%s11 + $0x30] sm:$0xf]
      %v3318 = vld [vmem:[%s11 + $0x34] sm:$0xf]
      %v3319 = vld [vmem:[%s11 + $0x38] sm:$0xf]
      %v3320 = vld [vmem:[%s11 + $0x3c] sm:$0xf]
      %v3321 = vld [vmem:[%s11 + $0x40] sm:$0xf]
      %v3322 = vld [vmem:[%s11 + $0x44] sm:$0xf]
      %v3323 = vld [vmem:[%s11 + $0x48] sm:$0xf]
      %v3324 = vld [vmem:[%s11 + $0x4c] sm:$0xf]
      %v3325 = vld [vmem:[%s11 + $0x50] sm:$0xf]
      %v3326 = vld [vmem:[%s11 + $0x54] sm:$0xf]
      %v3327 = vld [vmem:[%s11 + $0x58] sm:$0xf]
      %v3328 = vld [vmem:[%s11 + $0x5c] sm:$0xf]
      %v3329 = vld [vmem:[%s11 + $0x60] sm:$0xf]
      %v3330 = vld [vmem:[%s11 + $0x64] sm:$0xf]
      %v3331 = vld [vmem:[%s11 + $0x68] sm:$0xf]
      %v3332 = vld [vmem:[%s11 + $0x6c] sm:$0xf]
      %v3333 = vld [vmem:[%s11 + $0x70] sm:$0xf]
      %v3334 = vld [vmem:[%s11 + $0x74] sm:$0xf]
      %v3335 = vld [vmem:[%s11 + $0x78] sm:$0xf]
      %v3336 = vld [vmem:[%s11 + $0x7c] sm:$0xf]
      %v3337 = vld [vmem:[%s11 + $0x80] sm:$0xf]
      %v3338 = vld [vmem:[%s11 + $0x84] sm:$0xf]
      %v3339 = vld [vmem:[%s11 + $0x88] sm:$0xf]
      %v3340 = vld [vmem:[%s11 + $0x8c] sm:$0xf]
      %v3341 = vld [vmem:[%s11 + $0x90] sm:$0xf]
      %v3342 = vld [vmem:[%s11 + $0x94] sm:$0xf]
      %v3343 = vld [vmem:[%s11 + $0x98] sm:$0xf]
      %v3344 = vld [vmem:[%s11 + $0x9c] sm:$0xf]
      %v3345 = vld [vmem:[%s11 + $0xa0] sm:$0xf]
      %v3346 = vld [vmem:[%s11 + $0xa4] sm:$0xf]
      %v3347 = vld [vmem:[%s11 + $0xa8] sm:$0xf]
      %v3348 = vld [vmem:[%s11 + $0xac] sm:$0xf]
      %v3349 = vld [vmem:[%s11 + $0xb0] sm:$0xf]
      %v3350 = vld [vmem:[%s11 + $0xb4] sm:$0xf]
      %v3351 = vld [vmem:[%s11 + $0xb8] sm:$0xf]
      %v3352 = vld [vmem:[%s11 + $0xbc] sm:$0xf]
      %v3353 = vld [vmem:[%s11 + $0xc0] sm:$0xf]
      %v3354 = vld [vmem:[%s11 + $0xc4] sm:$0xf]
      %v3355 = vld [vmem:[%s11 + $0xc8] sm:$0xf]
      %v3356 = vld [vmem:[%s11 + $0xcc] sm:$0xf]
      %v3357 = vld [vmem:[%s11 + $0xd0] sm:$0xf]
      %v3358 = vld [vmem:[%s11 + $0xd4] sm:$0xf]
      %v3359 = vld [vmem:[%s11 + $0xd8] sm:$0xf]
      %v3360 = vld [vmem:[%s11 + $0xdc] sm:$0xf]
      %v3361 = vld [vmem:[%s11 + $0xe0] sm:$0xf]
      %v3362 = vld [vmem:[%s11 + $0xe4] sm:$0xf]
      %v3363 = vld [vmem:[%s11 + $0xe8] sm:$0xf]
      %v3364 = vld [vmem:[%s11 + $0xec] sm:$0xf]
      %v3365 = vld [vmem:[%s11 + $0xf0] sm:$0xf]
      %v3366 = vld [vmem:[%s11 + $0xf4] sm:$0xf]
      %v3367 = vld [vmem:[%s11 + $0xf8] sm:$0xf]
      %v3368 = vld [vmem:[%s11 + $0xfc] sm:$0xf]
      %v3433 = vunpack.c.l.b16 %v3305
      %v3434 = vunpack.c.l.b16 %v3306
      %v3435 = vunpack.c.l.b16 %v3307
      %v3436 = vunpack.c.l.b16 %v3308
      %v3437 = vunpack.c.l.b16 %v3309
      %v3438 = vunpack.c.l.b16 %v3310
      %v3439 = vunpack.c.l.b16 %v3311
      %v3440 = vunpack.c.l.b16 %v3312
      %v3441 = vunpack.c.l.b16 %v3313
      %v3442 = vunpack.c.l.b16 %v3314
      %v3443 = vunpack.c.l.b16 %v3315
      %v3444 = vunpack.c.l.b16 %v3316
      %v3445 = vunpack.c.l.b16 %v3317
      %v3446 = vunpack.c.l.b16 %v3318
      %v3447 = vunpack.c.l.b16 %v3319
      %v3448 = vunpack.c.l.b16 %v3320
      %v3449 = vunpack.c.l.b16 %v3321
      %v3450 = vunpack.c.l.b16 %v3322
      %v3451 = vunpack.c.l.b16 %v3323
      %v3452 = vunpack.c.l.b16 %v3324
      %v3453 = vunpack.c.l.b16 %v3325
      %v3454 = vunpack.c.l.b16 %v3326
      %v3455 = vunpack.c.l.b16 %v3327
      %v3456 = vunpack.c.l.b16 %v3328
      %v3457 = vunpack.c.l.b16 %v3329
      %v3458 = vunpack.c.l.b16 %v3330
      %v3459 = vunpack.c.l.b16 %v3331
      %v3460 = vunpack.c.l.b16 %v3332
      %v3461 = vunpack.c.l.b16 %v3333
      %v3462 = vunpack.c.l.b16 %v3334
      %v3463 = vunpack.c.l.b16 %v3335
      %v3464 = vunpack.c.l.b16 %v3336
      %v3465 = vunpack.c.l.b16 %v3337
      %v3466 = vunpack.c.l.b16 %v3338
      %v3467 = vunpack.c.l.b16 %v3339
      %v3468 = vunpack.c.l.b16 %v3340
      %v3469 = vunpack.c.l.b16 %v3341
      %v3470 = vunpack.c.l.b16 %v3342
      %v3471 = vunpack.c.l.b16 %v3343
      %v3472 = vunpack.c.l.b16 %v3344
      %v3473 = vunpack.c.l.b16 %v3345
      %v3474 = vunpack.c.l.b16 %v3346
      %v3475 = vunpack.c.l.b16 %v3347
      %v3476 = vunpack.c.l.b16 %v3348
      %v3477 = vunpack.c.l.b16 %v3349
      %v3478 = vunpack.c.l.b16 %v3350
      %v3479 = vunpack.c.l.b16 %v3351
      %v3480 = vunpack.c.l.b16 %v3352
      %v3481 = vunpack.c.l.b16 %v3353
      %v3482 = vunpack.c.l.b16 %v3354
      %v3483 = vunpack.c.l.b16 %v3355
      %v3484 = vunpack.c.l.b16 %v3356
      %v3485 = vunpack.c.l.b16 %v3357
      %v3486 = vunpack.c.l.b16 %v3358
      %v3487 = vunpack.c.l.b16 %v3359
      %v3488 = vunpack.c.l.b16 %v3360
      %v3489 = vunpack.c.l.b16 %v3361
      %v3490 = vunpack.c.l.b16 %v3362
      %v3491 = vunpack.c.l.b16 %v3363
      %v3492 = vunpack.c.l.b16 %v3364
      %v3493 = vunpack.c.l.b16 %v3365
      %v3494 = vunpack.c.l.b16 %v3366
      %v3495 = vunpack.c.l.b16 %v3367
      %v3496 = vunpack.c.l.b16 %v3368
      %v3497 = vpack.c.b16 %v3434, %v3433
      %v3498 = vpack.c.b16 %v3436, %v3435
      %v3499 = vpack.c.b16 %v3438, %v3437
      %v3500 = vpack.c.b16 %v3440, %v3439
      %v3501 = vpack.c.b16 %v3442, %v3441
      %v3502 = vpack.c.b16 %v3444, %v3443
      %v3503 = vpack.c.b16 %v3446, %v3445
      %v3504 = vpack.c.b16 %v3448, %v3447
      %v3505 = vpack.c.b16 %v3450, %v3449
      %v3506 = vpack.c.b16 %v3452, %v3451
      %v3507 = vpack.c.b16 %v3454, %v3453
      %v3508 = vpack.c.b16 %v3456, %v3455
      %v3509 = vpack.c.b16 %v3458, %v3457
      %v3510 = vpack.c.b16 %v3460, %v3459
      %v3511 = vpack.c.b16 %v3462, %v3461
      %v3512 = vpack.c.b16 %v3464, %v3463
      %v3513 = vpack.c.b16 %v3466, %v3465
      %v3514 = vpack.c.b16 %v3468, %v3467
      %v3515 = vpack.c.b16 %v3470, %v3469
      %v3516 = vpack.c.b16 %v3472, %v3471
      %v3517 = vpack.c.b16 %v3474, %v3473
      %v3518 = vpack.c.b16 %v3476, %v3475
      %v3519 = vpack.c.b16 %v3478, %v3477
      %v3520 = vpack.c.b16 %v3480, %v3479
      %v3521 = vpack.c.b16 %v3482, %v3481
      %v3522 = vpack.c.b16 %v3484, %v3483
      %v3523 = vpack.c.b16 %v3486, %v3485
      %v3524 = vpack.c.b16 %v3488, %v3487
      %v3525 = vpack.c.b16 %v3490, %v3489
      %v3526 = vpack.c.b16 %v3492, %v3491
      %v3527 = vpack.c.b16 %v3494, %v3493
      %v3528 = vpack.c.b16 %v3496, %v3495
      %3561 = vmatpush.bf16.msra.mxu0 %v3504
      %3562 = vmatpush.bf16.msra.mxu0 %v3503
      %3563 = vmatpush.bf16.msra.mxu0 %v3502
      %3564 = vmatpush.bf16.msra.mxu0 %v3501
      %3565 = vmatpush.bf16.msra.mxu0 %v3500
      %3566 = vmatpush.bf16.msra.mxu0 %v3499
      %3567 = vmatpush.bf16.msra.mxu0 %v3498
      %3568 = vmatpush.bf16.msra.mxu0 %v3497
      %3569 = vmatmul.bf16.gmra.mxu0 %v3285
      %v3570 = vpop.f32.mrf.mxu0
      %v3571 = vadd.f32 0.0, %v3570
      %v3572 = vpop.f32.mrf.mxu0
      %v3573 = vadd.f32 0.0, %v3572
      %3574 = vmatmul.bf16.gmra.mxu0 %v3289
      %v3575 = vpop.f32.mrf.mxu0
      %v3576 = vadd.f32 0.0, %v3575
      %v3577 = vpop.f32.mrf.mxu0
      %v3578 = vadd.f32 0.0, %v3577
      %3579 = vmatmul.bf16.gmra.mxu0 %v3293
      %v3580 = vpop.f32.mrf.mxu0
      %v3581 = vadd.f32 0.0, %v3580
      %v3582 = vpop.f32.mrf.mxu0
      %v3583 = vadd.f32 0.0, %v3582
      %3584 = vmatmul.bf16.gmra.mxu0 %v3297
      %v3585 = vpop.f32.mrf.mxu0
      %v3586 = vadd.f32 0.0, %v3585
      %v3587 = vpop.f32.mrf.mxu0
      %v3588 = vadd.f32 0.0, %v3587
      %3589 = vmatmul.bf16.gmra.mxu0 %v3301
      %v3590 = vpop.f32.mrf.mxu0
      %v3591 = vadd.f32 0.0, %v3590
      %v3592 = vpop.f32.mrf.mxu0
      %3593 = vdwg.mxu0
      %3594 = vmatpush.bf16.msra.mxu0 %v3512
      %3595 = vmatpush.bf16.msra.mxu0 %v3511
      %3596 = vmatpush.bf16.msra.mxu0 %v3510
      %3597 = vmatpush.bf16.msra.mxu0 %v3509
      %3598 = vmatpush.bf16.msra.mxu0 %v3508
      %3599 = vmatpush.bf16.msra.mxu0 %v3507
      %3600 = vmatpush.bf16.msra.mxu0 %v3506
      %3601 = vmatpush.bf16.msra.mxu0 %v3505
      %3602 = vmatmul.bf16.gmra.mxu0 %v3286
      %v3603 = vpop.f32.mrf.mxu0
      %v3604 = vadd.f32 %v3571, %v3603
      %v3605 = vpop.f32.mrf.mxu0
      %v3606 = vadd.f32 %v3573, %v3605
      %3607 = vmatmul.bf16.gmra.mxu0 %v3290
      %v3608 = vpop.f32.mrf.mxu0
      %v3609 = vadd.f32 %v3576, %v3608
      %v3610 = vpop.f32.mrf.mxu0
      %v3611 = vadd.f32 %v3578, %v3610
      %3612 = vmatmul.bf16.gmra.mxu0 %v3294
      %v3613 = vpop.f32.mrf.mxu0
      %v3614 = vadd.f32 %v3581, %v3613
      %v3615 = vpop.f32.mrf.mxu0
      %v3616 = vadd.f32 %v3583, %v3615
      %3617 = vmatmul.bf16.gmra.mxu0 %v3298
      %v3618 = vpop.f32.mrf.mxu0
      %v3619 = vadd.f32 %v3586, %v3618
      %v3620 = vpop.f32.mrf.mxu0
      %v3621 = vadd.f32 %v3588, %v3620
      %3622 = vmatmul.bf16.gmra.mxu0 %v3302
      %v3623 = vpop.f32.mrf.mxu0
      %v3624 = vadd.f32 %v3591, %v3623
      %v3625 = vpop.f32.mrf.mxu0
      %3626 = vdwg.mxu0
      %3627 = vmatpush.bf16.msra.mxu0 %v3520
      %3628 = vmatpush.bf16.msra.mxu0 %v3519
      %3629 = vmatpush.bf16.msra.mxu0 %v3518
      %3630 = vmatpush.bf16.msra.mxu0 %v3517
      %3631 = vmatpush.bf16.msra.mxu0 %v3516
      %3632 = vmatpush.bf16.msra.mxu0 %v3515
      %3633 = vmatpush.bf16.msra.mxu0 %v3514
      %3634 = vmatpush.bf16.msra.mxu0 %v3513
      %3635 = vmatmul.bf16.gmra.mxu0 %v3287
      %v3636 = vpop.f32.mrf.mxu0
      %v3637 = vadd.f32 %v3604, %v3636
      %v3638 = vpop.f32.mrf.mxu0
      %v3639 = vadd.f32 %v3606, %v3638
      %3640 = vmatmul.bf16.gmra.mxu0 %v3291
      %v3641 = vpop.f32.mrf.mxu0
      %v3642 = vadd.f32 %v3609, %v3641
      %v3643 = vpop.f32.mrf.mxu0
      %v3644 = vadd.f32 %v3611, %v3643
      %3645 = vmatmul.bf16.gmra.mxu0 %v3295
      %v3646 = vpop.f32.mrf.mxu0
      %v3647 = vadd.f32 %v3614, %v3646
      %v3648 = vpop.f32.mrf.mxu0
      %v3649 = vadd.f32 %v3616, %v3648
      %3650 = vmatmul.bf16.gmra.mxu0 %v3299
      %v3651 = vpop.f32.mrf.mxu0
      %v3652 = vadd.f32 %v3619, %v3651
      %v3653 = vpop.f32.mrf.mxu0
      %v3654 = vadd.f32 %v3621, %v3653
      %3655 = vmatmul.bf16.gmra.mxu0 %v3303
      %v3656 = vpop.f32.mrf.mxu0
      %v3657 = vadd.f32 %v3624, %v3656
      %v3658 = vpop.f32.mrf.mxu0
      %3659 = vdwg.mxu0
      %3660 = vmatpush.bf16.msra.mxu0 %v3528
      %3661 = vmatpush.bf16.msra.mxu0 %v3527
      %3662 = vmatpush.bf16.msra.mxu0 %v3526
      %3663 = vmatpush.bf16.msra.mxu0 %v3525
      %3664 = vmatpush.bf16.msra.mxu0 %v3524
      %3665 = vmatpush.bf16.msra.mxu0 %v3523
      %3666 = vmatpush.bf16.msra.mxu0 %v3522
      %3667 = vmatpush.bf16.msra.mxu0 %v3521
      %3668 = vmatmul.bf16.gmra.mxu0 %v3288
      %v3669 = vpop.f32.mrf.mxu0
      %v3670 = vadd.f32 %v3637, %v3669
      %v3671 = vpop.f32.mrf.mxu0
      %v3672 = vadd.f32 %v3639, %v3671
      %3673 = vmatmul.bf16.gmra.mxu0 %v3292
      %v3674 = vpop.f32.mrf.mxu0
      %v3675 = vadd.f32 %v3642, %v3674
      %v3676 = vpop.f32.mrf.mxu0
      %v3677 = vadd.f32 %v3644, %v3676
      %3678 = vmatmul.bf16.gmra.mxu0 %v3296
      %v3679 = vpop.f32.mrf.mxu0
      %v3680 = vadd.f32 %v3647, %v3679
      %v3681 = vpop.f32.mrf.mxu0
      %v3682 = vadd.f32 %v3649, %v3681
      %3683 = vmatmul.bf16.gmra.mxu0 %v3300
      %v3684 = vpop.f32.mrf.mxu0
      %v3685 = vadd.f32 %v3652, %v3684
      %v3686 = vpop.f32.mrf.mxu0
      %v3687 = vadd.f32 %v3654, %v3686
      %3688 = vmatmul.bf16.gmra.mxu0 %v3304
      %v3689 = vpop.f32.mrf.mxu0
      %v3690 = vadd.f32 %v3657, %v3689
      %v3691 = vpop.f32.mrf.mxu0
      %3692 = vdwg.mxu0
      %v3693 = vadd.f32 %v2407, %v3670
      %v3694 = vadd.f32 %v2408, %v3672
      %v3695 = vadd.f32 %v2409, %v3675
      %v3696 = vadd.f32 %v2410, %v3677
      %v3697 = vadd.f32 %v2411, %v3680
      %v3698 = vadd.f32 %v2412, %v3682
      %v3699 = vadd.f32 %v2413, %v3685
      %v3700 = vadd.f32 %v2414, %v3687
      %v3701 = vadd.f32 %v2415, %v3690
      %v3702 = vld [vmem:[%s12] sm:$0x1]
      %v3704 = vperm.slane %v3702, 0
      %v3706 = vadd.f32 %v3693, %v3704
      %v3707 = vadd.f32 %v3694, %v3704
      %v3708 = vadd.f32 %v3695, %v3704
      %v3709 = vadd.f32 %v3696, %v3704
      %v3710 = vadd.f32 %v3697, %v3704
      %v3711 = vadd.f32 %v3698, %v3704
      %v3712 = vadd.f32 %v3699, %v3704
      %v3713 = vadd.f32 %v3700, %v3704
      %v3714 = vadd.f32 %v3701, %v3704
      %v3715 = vpack.c.bf16 %v3706, %v3706
      %v3716 = vpack.c.bf16 %v3707, %v3707
      %v3717 = vpack.c.bf16 %v3708, %v3708
      %v3718 = vpack.c.bf16 %v3709, %v3709
      %v3719 = vpack.c.bf16 %v3710, %v3710
      %v3720 = vpack.c.bf16 %v3711, %v3711
      %v3721 = vpack.c.bf16 %v3712, %v3712
      %v3722 = vpack.c.bf16 %v3713, %v3713
      %v3723 = vpack.c.bf16 %v3714, %v3714
      %3724 = vst [vmem:[%s440] sm:$0xf] %v3715
      %3725 = vst [vmem:[%s440 + $0x4] sm:$0xf] %v3716
      %3726 = vst [vmem:[%s440 + $0x8] sm:$0xf] %v3717
      %3727 = vst [vmem:[%s440 + $0xc] sm:$0xf] %v3718
      %3728 = vst [vmem:[%s440 + $0x10] sm:$0xf] %v3719
      %3729 = vst [vmem:[%s440 + $0x14] sm:$0xf] %v3720
      %3730 = vst [vmem:[%s440 + $0x18] sm:$0xf] %v3721
      %3731 = vst [vmem:[%s440 + $0x1c] sm:$0xf] %v3722
      %3732 = vst [vmem:[%s440 + $0x20] sm:$0xf] %v3723
      %p3733 = scmp.lt.s32.totalorder %s24, 1
      %s3734 = scalar_select %p3733, %s24, 1
      %s3735 = smul.addr %s3734, 9
      %s3736 = smul.addr %s3735, 4
      %s3737 = scalar_lea.vmem %s13, %s3736
      // Predicated region
      $region73: #{forward.9} parent=71 // pred_check
        %p3738 = pneg %p320
      $region74: #{forward.9} parent=71 // pred_check_branch
        %3740 = sbr.rel (%p3738) target = $region76
      $region75: #{forward.9} parent=71 // pred_region
        _
      $region76: #{forward.9} parent=71 // pred_fallthru
        _
    $region72: #{forward.9} parent=5 // pred_fallthru
      _
    %p3741 = scmp.le.s32.totalorder 2, %s19
    // Predicated region
    $region77: #{forward.9} parent=5 // pred_check
      %p3742 = pneg %p3741
    $region78: #{forward.9} parent=5 // pred_check_branch
      %3744 = sbr.rel (%p3742) target = $region80
    $region79: #{forward.9} parent=5 // pred_region
      %s3745 = ssub.s32 %s19, 2
      // Predicated region
      $region81: #{forward.9} parent=79 // pred_check
        %p3746 = pneg %p326
      $region82: #{forward.9} parent=79 // pred_check_branch
        %3748 = sbr.rel (%p3746) target = $region84
      $region83: #{forward.9} parent=79 // pred_region
        %p3749 = scmp.lt.s32.totalorder %s25, 1
        %s3750 = scalar_select %p3749, %s25, 1
        %s3751 = smul.addr %s3750, 9
        %s3752 = smul.addr %s3751, 4
        %s3753 = scalar_lea.vmem %s13, %s3752
      $region84: #{forward.9} parent=79 // pred_fallthru
        _
    $region80: #{forward.9} parent=5 // pred_fallthru
      _
  $region6: #{forward.9} parent=0 // loop_footer
    %s23 = sadd.s32 1, %s19
  $region7: #{forward.9} parent=0 // loop_footer_branch
    %18 = sbr.rel target = $region3
  $region8: #{forward.9} parent=0 // loop_exit
    _

</llo_original>
